<compile_context>
chip_gen: v5e
topology: v5e:2x2
jax: 0.10.0
libtpu: 0.0.40
codegen_flags: <defaults>
</compile_context>

<pallas_src>
import functools

import jax
import jax.numpy as jnp
from jax.experimental import pallas as pl
from jax.experimental.pallas import tpu as pltpu

N_RES = 7
# (in_features, out_features) per residual block; block1's in is padded to 64.
_DIMS = [(64, 64), (64, 128), (128, 256), (256, 512), (512, 256), (256, 128), (128, 64)]
_LANE = 128


def _round_up(x, m):
    return ((x + m - 1) // m) * m


def _make_layout(data_dim):
    """Static packing layout: weight blobs (grouped by contraction dim K) + bias pack."""
    entries = []
    for l, (i, o) in enumerate(_DIMS):
        entries += [(f"r{l}w1", i, o), (f"r{l}w2", o, o // 2), (f"r{l}w3", o // 2, o)]
    entries += [("aw1", 64, 64), ("aw2", 64, 16), ("aw3", 64, 16), ("fw", 64, data_dim)]

    blob_keys, blob_cols, w_off = [], {}, {}
    for name, k, o in entries:                       # first-needed order: 64,32,128,256,512
        if k not in blob_cols:
            blob_cols[k] = 0
            blob_keys.append(k)
        w_off[name] = (k, blob_cols[k], o)
        blob_cols[k] += _round_up(o, _LANE)          # keep every slice lane-aligned

    bias_entries = []
    for l, (_, o) in enumerate(_DIMS):
        bias_entries += [(f"r{l}b1", o), (f"r{l}b2", o // 2), (f"r{l}b3", o),
                         (f"r{l}bg", o), (f"r{l}bb", o)]
    bias_entries += [("ab1", 64), ("ab2", 16), ("ab3", 16), ("fb", data_dim)]
    b_off, b_tot = {}, 0
    for name, w in bias_entries:
        b_off[name] = (b_tot, w)
        b_tot += _round_up(w, _LANE)
    return blob_keys, blob_cols, w_off, b_off, b_tot


# ----------------------------------------------------------------------------
# Fused Pallas kernel: the entire Generator forward (dim <= 64 branch)
# ----------------------------------------------------------------------------
def _generator_kernel(*refs, blob_keys, w_off, b_off):
    nb = len(blob_keys)
    x_ref, csum_ref, mask_ref, bias_ref, scal_ref = refs[:5]
    hbm = refs[5:5 + nb]                  # bf16 weight blobs in HBM (memory_space=ANY)
    out_ref = refs[5 + nb]
    wbuf = refs[6 + nb:6 + 2 * nb]        # VMEM scratch, one buffer per blob
    sem = refs[6 + 2 * nb]                # DMA semaphores, shape (nb,)

    # Read SMEM scalars before any DMA wait (wait() breaks sst->sld forwarding).
    gamma = scal_ref[0, 0]                # attention gamma
    inv_n = scal_ref[0, 1]                # 1 / (number of valid batch rows)
    mask = mask_ref[...]                  # [B_pad, 1], 1.0 for valid rows else 0.0

    # Issue all weight-blob DMAs up front; wait lazily, once per blob, at first use.
    copies, waited = {}, set()
    for bi, k in enumerate(blob_keys):
        cp = pltpu.make_async_copy(hbm[bi], wbuf[bi], sem.at[bi])
        cp.start()
        copies[k] = (bi, cp)

    def weight(name):
        k, off, w = w_off[name]
        bi, cp = copies[k]
        if k not in waited:               # trace-time bookkeeping: exactly nb waits total
            cp.wait()
            waited.add(k)
        return wbuf[bi][:, off:off + w]

    def bias(name):
        off, w = b_off[name]
        return bias_ref[:, off:off + w]

    def linear(a, wname, bname):
        return (jnp.dot(a.astype(jnp.bfloat16), weight(wname),
                        preferred_element_type=jnp.float32) + bias(bname))

    def residual(h, l):
        h1 = linear(h, f"r{l}w1", f"r{l}b1")
        h2 = linear(h1, f"r{l}w2", f"r{l}b2")
        h3 = linear(h2, f"r{l}w3", f"r{l}b3")
        s = h1 + h3
        # BatchNorm1d, training-mode batch stats (affine = identity), masked two-pass.
        mean = jnp.sum(s * mask, axis=0, keepdims=True) * inv_n
        d = (s - mean) * mask
        var = jnp.sum(d * d, axis=0, keepdims=True) * inv_n
        s_hat = (s - mean) * jax.lax.rsqrt(var + 1e-5)
        # ConditionalNorm with the all-ones embed weight constant-folded.
        c = csum_ref[:, l:l + 1]                                   # [B_pad, 1]
        y = (c + bias(f"r{l}bg")) * s_hat + (c + bias(f"r{l}bb"))
        return jnp.where(y >= 0.0, y, 0.2 * y)                     # LeakyReLU(0.2)

    def attention(h):
        q = linear(h, "aw1", "ab1")                                # [B, W]
        k = linear(h, "aw2", "ab2")                                # [B, W//4]
        v = linear(h, "aw3", "ab3")                                # [B, W//4]
        # scores[b, j, w] = k[b, j] * q[b, w]; softmax over j = W//4 axis (matches the
        # reference bmm layout); wide W axis stays on lanes.
        scores = k[:, :, None] * q[:, None, :]                     # [B, W//4, W]
        m = jnp.max(scores, axis=1, keepdims=True)
        e = jnp.exp(scores - m)
        p = e * pl.reciprocal(jnp.sum(e, axis=1, keepdims=True), approx=True)
        o = jnp.sum(p * v[:, :, None], axis=1)                     # [B, W]
        return gamma * o + h

    out1 = residual(x_ref[...], 0)
    out2 = residual(out1, 1)
    out3 = residual(out2, 2)
    out4 = residual(out3, 3)
    out5 = residual(out4, 4)
    out6 = residual(out3 + out5, 5)
    out7 = residual(out2 + out6, 6)
    out7_8 = attention(out7)
    out_ref[...] = linear(out1 + out7_8, "fw", "fb")


# ----------------------------------------------------------------------------
# pallas_call wrapper + plain-JAX glue (concat, folded ConditionalNorm row-sums)
# ----------------------------------------------------------------------------
def generator_forward(params, x, label, em_label, noise, *, data_dim):
    """Generator.forward, `dim <= 64` branch; the hot path is one fused Pallas call.

    x/label/em_label: [B, *] (or [G, B, *] for G independent forwards);
    noise: [7, B, 40] (or [G, 7, B, 40]) -- the per-block Truncated_normal draws.
    """
    blob_keys, blob_cols, w_off, b_off, b_tot = _make_layout(data_dim)

    squeeze = x.ndim == 2
    if squeeze:
        x, label, em_label, noise = x[None], label[None], em_label[None], noise[None]
    G, B, _ = x.shape

    gen_input = jnp.concatenate([x, label], axis=-1)                   # [G, B, indim]
    indim = gen_input.shape[-1]
    assert indim <= 64, "only the `indim <= 64` Generator branch is implemented"
    B_pad = _round_up(max(B, 16), 16)
    gen_input = jnp.pad(gen_input, ((0, 0), (0, B_pad - B), (0, 64 - indim)))

    # Folded ConditionalNorm row-sums:
    #   csum[g, b, l] = sum(fc_l(em_label)[g, b]) + sum(noise[g, l, b, :]).
    csum = (jnp.einsum("gbc,lc->gbl", em_label, params["vfc"])
            + params["sfc"] + jnp.sum(noise, axis=-1).transpose(0, 2, 1))  # [G, B, 7]
    csum = jnp.pad(csum, ((0, 0), (0, B_pad - B), (0, 0)))

    mask = (jnp.arange(B_pad) < B).astype(jnp.float32)[:, None]        # [B_pad, 1]
    scal = jnp.stack([params["gamma"].astype(jnp.float32),
                      jnp.asarray(1.0 / B, jnp.float32)]).reshape(1, 2)

    nb = len(blob_keys)
    kernel = functools.partial(_generator_kernel, blob_keys=blob_keys,
                               w_off=w_off, b_off=b_off)
    in_specs = (
        [pl.BlockSpec((None, B_pad, 64), lambda g: (g, 0, 0)),         # gen_input
         pl.BlockSpec((None, B_pad, N_RES), lambda g: (g, 0, 0)),      # csum
         pl.BlockSpec((B_pad, 1), lambda g: (0, 0)),                   # BN row mask
         pl.BlockSpec((1, b_tot), lambda g: (0, 0)),                   # packed biases
         pl.BlockSpec((1, 2), lambda g: (0, 0),
                      memory_space=pltpu.MemorySpace.SMEM)]            # gamma, 1/B
        + [pl.BlockSpec(memory_space=pl.ANY)] * nb)                    # weight blobs (HBM)

    out = pl.pallas_call(
        kernel,
        grid=(G,),
        out_shape=jax.ShapeDtypeStruct((G, B_pad, data_dim), jnp.float32),
        in_specs=in_specs,
        out_specs=pl.BlockSpec((None, B_pad, data_dim), lambda g: (g, 0, 0)),
        scratch_shapes=([pltpu.VMEM((k, blob_cols[k]), jnp.bfloat16) for k in blob_keys]
                        + [pltpu.SemaphoreType.DMA((nb,))]),
        compiler_params=pltpu.CompilerParams(
            dimension_semantics=("parallel",),
            vmem_limit_bytes=8 * 1024 * 1024),
    )(gen_input, csum, mask, params["bias_pack"], scal, *params["blobs"])

    out = out[:, :B]
    return out[0] if squeeze else out


# ----------------------------------------------------------------------------
# Deterministic parameter initialization (shapes follow the PyTorch __init__),
# packed directly into the coalesced HBM blobs / bias pack.
# ----------------------------------------------------------------------------
def _linear_params(key, fan_in, fan_out):
    kw, kb = jax.random.split(key)
    bound = 1.0 / float(fan_in) ** 0.5
    w = jax.random.uniform(kw, (fan_in, fan_out), jnp.float32, -bound, bound)
    b = jax.random.uniform(kb, (1, fan_out), jnp.float32, -bound, bound)
    return w, b


def init_generator(key, indim, data_dim, n_class):
    assert indim <= 64, "only the `indim <= 64` branch of Generator is instantiated here"
    blob_keys, blob_cols, w_off, b_off, b_tot = _make_layout(data_dim)
    blobs = {k: jnp.zeros((k, blob_cols[k]), jnp.float32) for k in blob_keys}
    bias_pack = jnp.zeros((1, b_tot), jnp.float32)

    def put_w(name, w):
        k, off, out = w_off[name]
        blobs[k] = blobs[k].at[:w.shape[0], off:off + out].set(w)   # extra rows stay 0

    def put_b(name, b):
        nonlocal bias_pack
        off, wd = b_off[name]
        bias_pack = bias_pack.at[:, off:off + wd].set(b)

    ks = jax.random.split(key, 9)
    vfc, sfc = [], []
    for l, (i, o) in enumerate(_DIMS):
        fan_in = indim if l == 0 else i     # block1's true fan-in; rows beyond it are 0
        sub = jax.random.split(ks[l], 5)
        w1, b1 = _linear_params(sub[0], fan_in, o)
        w2, b2 = _linear_params(sub[1], o, o // 2)
        w3, b3 = _linear_params(sub[2], o // 2, o)
        # ConditionalNorm.fc = Linear(n_class, 20): only rowsum(fc(em)) is ever used.
        wfc, bfc = _linear_params(sub[3], n_class, 20)
        # ConditionalNorm.embed = Linear(60, 2*o): weight[:, :o] = 1 with o >= 60 makes
        # the whole [2o, 60] weight ones; weight[:, o:] = 0 indexes nothing.
        assert o >= 60
        bound = 1.0 / 60.0 ** 0.5
        bemb = jax.random.uniform(sub[4], (1, 2 * o), jnp.float32, -bound, bound)
        put_w(f"r{l}w1", w1); put_w(f"r{l}w2", w2); put_w(f"r{l}w3", w3)
        put_b(f"r{l}b1", b1); put_b(f"r{l}b2", b2); put_b(f"r{l}b3", b3)
        put_b(f"r{l}bg", bemb[:, :o]); put_b(f"r{l}bb", bemb[:, o:])
        vfc.append(jnp.sum(wfc, axis=1))
        sfc.append(jnp.sum(bfc))

    sub = jax.random.split(ks[7], 3)
    aw1, ab1 = _linear_params(sub[0], 64, 64)
    aw2, ab2 = _linear_params(sub[1], 64, 16)
    aw3, ab3 = _linear_params(sub[2], 64, 16)
    put_w("aw1", aw1); put_w("aw2", aw2); put_w("aw3", aw3)
    put_b("ab1", ab1); put_b("ab2", ab2); put_b("ab3", ab3)

    fw, fb = _linear_params(ks[8], 64, data_dim)
    put_w("fw", fw); put_b("fb", fb)

    return dict(
        blobs=[blobs[k].astype(jnp.bfloat16) for k in blob_keys],   # 5 coalesced blobs
        bias_pack=bias_pack,                                        # [1, 7680] f32
        gamma=jnp.zeros((), jnp.float32),                           # attention gamma
        vfc=jnp.stack(vfc),                                         # [7, n_class]
        sfc=jnp.stack(sfc),                                         # [7]
    )


if __name__ == "__main__":
    key = jax.random.PRNGKey(0)
    k_par, k_x, k_lab, k_noise = jax.random.split(key, 4)

    B = 8
    n_class = 4
    data_dim = 32
    in_feat = 20
    indim = in_feat + n_class            # 24 -> "indim <= 64" / "dim <= 64" path

    params = init_generator(k_par, indim, data_dim, n_class)

    x = jax.random.normal(k_x, (B, in_feat), jnp.float32)
    label = jax.nn.one_hot(jax.random.randint(k_lab, (B,), 0, n_class), n_class,
                           dtype=jnp.float32)
    em_label = label

    # TODO(synk): PyTorch's Truncated_normal uses torch's RNG + a 4-sample rejection
    # scheme; the equivalent runtime noise here comes from jax.random.truncated_normal.
    noise = jax.random.truncated_normal(k_noise, -2.5, 2.5, (N_RES, B, 40), jnp.float32)

    fwd = jax.jit(generator_forward, static_argnames=("data_dim",))
    out = fwd(params, x, label, em_label, noise, data_dim=data_dim)
    jax.block_until_ready(out)
    assert out.shape == (B, data_dim)
    print("KERNEL_OK")
</pallas_src>

<mosaic_0001>
module attributes {stable_mosaic.version = 11 : i64} {
  func.func @_generator_kernel(%arg0: i32, %arg1: memref<1x16x64xf32, #tpu.memory_space<vmem>>, %arg2: memref<1x16x7xf32, #tpu.memory_space<vmem>>, %arg3: memref<16x1xf32, #tpu.memory_space<vmem>>, %arg4: memref<1x7680xf32, #tpu.memory_space<vmem>>, %arg5: memref<1x2xf32, #tpu.memory_space<smem>>, %arg6: memref<64x1280xbf16, #tpu.memory_space<any>>, %arg7: memref<32x256xbf16, #tpu.memory_space<any>>, %arg8: memref<128x1152xbf16, #tpu.memory_space<any>>, %arg9: memref<256x1408xbf16, #tpu.memory_space<any>>, %arg10: memref<512x512xbf16, #tpu.memory_space<any>>, %arg11: memref<1x16x32xf32, #tpu.memory_space<vmem>>, %arg12: memref<64x1280xbf16, #tpu.memory_space<vmem>>, %arg13: memref<32x256xbf16, #tpu.memory_space<vmem>>, %arg14: memref<128x1152xbf16, #tpu.memory_space<vmem>>, %arg15: memref<256x1408xbf16, #tpu.memory_space<vmem>>, %arg16: memref<512x512xbf16, #tpu.memory_space<vmem>>, %arg17: memref<5x!tpu.dma_semaphore, #tpu.memory_space<semaphore_mem>>) attributes {dimension_semantics = [#tpu.dimension_semantics<parallel>], iteration_bounds = array<i64: 1>, scalar_prefetch = 0 : i64, scratch_operands = 6 : i64, tpu.core_type = #tpu.core_type<tc>, window_params = [{transform_indices = @transform_0, window_bounds = array<i64: 1, 16, 64>}, {transform_indices = @transform_1, window_bounds = array<i64: 1, 16, 7>}, {pipeline_mode = #tpu.pipeline_mode<synchronous>, transform_indices = @transform_2, window_bounds = array<i64: 16, 1>}, {pipeline_mode = #tpu.pipeline_mode<synchronous>, transform_indices = @transform_3, window_bounds = array<i64: 1, 7680>}, {transform_indices = @transform_4, window_bounds = array<i64: 1, 2>}, {}, {}, {}, {}, {}, {transform_indices = @transform_10, window_bounds = array<i64: 1, 16, 32>}]} {
    %c0 = arith.constant 0 : index
    %c0_0 = arith.constant 0 : index
    %0 = memref.load %arg5[%c0, %c0_0] : memref<1x2xf32, #tpu.memory_space<smem>>
    %c0_1 = arith.constant 0 : index
    %c1 = arith.constant 1 : index
    %1 = memref.load %arg5[%c0_1, %c1] : memref<1x2xf32, #tpu.memory_space<smem>>
    %c0_2 = arith.constant 0 : index
    %c0_3 = arith.constant 0 : index
    %2 = vector.load %arg3[%c0_2, %c0_3] : memref<16x1xf32, #tpu.memory_space<vmem>>, vector<16x1xf32>
    %c0_i32 = arith.constant 0 : i32
    %3 = tpu.memref_slice %arg17[%c0_i32] : memref<5x!tpu.dma_semaphore, #tpu.memory_space<semaphore_mem>> -> memref<1x!tpu.dma_semaphore, #tpu.memory_space<semaphore_mem>>
    %4 = tpu.memref_squeeze %3 : memref<1x!tpu.dma_semaphore, #tpu.memory_space<semaphore_mem>> -> memref<!tpu.dma_semaphore, #tpu.memory_space<semaphore_mem>>
    tpu.enqueue_dma source(%arg6 : memref<64x1280xbf16, #tpu.memory_space<any>>) target(%arg12 : memref<64x1280xbf16, #tpu.memory_space<vmem>>) target_semaphore(%4 : memref<!tpu.dma_semaphore, #tpu.memory_space<semaphore_mem>>)
    %c1_i32 = arith.constant 1 : i32
    %5 = tpu.memref_slice %arg17[%c1_i32] : memref<5x!tpu.dma_semaphore, #tpu.memory_space<semaphore_mem>> -> memref<1x!tpu.dma_semaphore, #tpu.memory_space<semaphore_mem>>
    %6 = tpu.memref_squeeze %5 : memref<1x!tpu.dma_semaphore, #tpu.memory_space<semaphore_mem>> -> memref<!tpu.dma_semaphore, #tpu.memory_space<semaphore_mem>>
    tpu.enqueue_dma source(%arg7 : memref<32x256xbf16, #tpu.memory_space<any>>) target(%arg13 : memref<32x256xbf16, #tpu.memory_space<vmem>>) target_semaphore(%6 : memref<!tpu.dma_semaphore, #tpu.memory_space<semaphore_mem>>)
    %c2_i32 = arith.constant 2 : i32
    %7 = tpu.memref_slice %arg17[%c2_i32] : memref<5x!tpu.dma_semaphore, #tpu.memory_space<semaphore_mem>> -> memref<1x!tpu.dma_semaphore, #tpu.memory_space<semaphore_mem>>
    %8 = tpu.memref_squeeze %7 : memref<1x!tpu.dma_semaphore, #tpu.memory_space<semaphore_mem>> -> memref<!tpu.dma_semaphore, #tpu.memory_space<semaphore_mem>>
    tpu.enqueue_dma source(%arg8 : memref<128x1152xbf16, #tpu.memory_space<any>>) target(%arg14 : memref<128x1152xbf16, #tpu.memory_space<vmem>>) target_semaphore(%8 : memref<!tpu.dma_semaphore, #tpu.memory_space<semaphore_mem>>)
    %c3_i32 = arith.constant 3 : i32
    %9 = tpu.memref_slice %arg17[%c3_i32] : memref<5x!tpu.dma_semaphore, #tpu.memory_space<semaphore_mem>> -> memref<1x!tpu.dma_semaphore, #tpu.memory_space<semaphore_mem>>
    %10 = tpu.memref_squeeze %9 : memref<1x!tpu.dma_semaphore, #tpu.memory_space<semaphore_mem>> -> memref<!tpu.dma_semaphore, #tpu.memory_space<semaphore_mem>>
    tpu.enqueue_dma source(%arg9 : memref<256x1408xbf16, #tpu.memory_space<any>>) target(%arg15 : memref<256x1408xbf16, #tpu.memory_space<vmem>>) target_semaphore(%10 : memref<!tpu.dma_semaphore, #tpu.memory_space<semaphore_mem>>)
    %c4_i32 = arith.constant 4 : i32
    %11 = tpu.memref_slice %arg17[%c4_i32] : memref<5x!tpu.dma_semaphore, #tpu.memory_space<semaphore_mem>> -> memref<1x!tpu.dma_semaphore, #tpu.memory_space<semaphore_mem>>
    %12 = tpu.memref_squeeze %11 : memref<1x!tpu.dma_semaphore, #tpu.memory_space<semaphore_mem>> -> memref<!tpu.dma_semaphore, #tpu.memory_space<semaphore_mem>>
    tpu.enqueue_dma source(%arg10 : memref<512x512xbf16, #tpu.memory_space<any>>) target(%arg16 : memref<512x512xbf16, #tpu.memory_space<vmem>>) target_semaphore(%12 : memref<!tpu.dma_semaphore, #tpu.memory_space<semaphore_mem>>)
    %c0_4 = arith.constant 0 : index
    %c0_5 = arith.constant 0 : index
    %c0_6 = arith.constant 0 : index
    %13 = vector.load %arg1[%c0_4, %c0_5, %c0_6] : memref<1x16x64xf32, #tpu.memory_space<vmem>>, vector<1x16x64xf32>
    %14 = vector.shape_cast %13 : vector<1x16x64xf32> to vector<16x64xf32>
    %15 = arith.truncf %14 : vector<16x64xf32> to vector<16x64xbf16>
    %c0_i32_7 = arith.constant 0 : i32
    %16 = tpu.memref_slice %arg17[%c0_i32_7] : memref<5x!tpu.dma_semaphore, #tpu.memory_space<semaphore_mem>> -> memref<1x!tpu.dma_semaphore, #tpu.memory_space<semaphore_mem>>
    %17 = tpu.memref_squeeze %16 : memref<1x!tpu.dma_semaphore, #tpu.memory_space<semaphore_mem>> -> memref<!tpu.dma_semaphore, #tpu.memory_space<semaphore_mem>>
    tpu.wait_dma2 semaphore(%17 : memref<!tpu.dma_semaphore, #tpu.memory_space<semaphore_mem>>) src(%arg6 : memref<64x1280xbf16, #tpu.memory_space<any>>) dst(%arg12 : memref<64x1280xbf16, #tpu.memory_space<vmem>>)
    %c0_8 = arith.constant 0 : index
    %c0_9 = arith.constant 0 : index
    %18 = vector.load %arg12[%c0_8, %c0_9] : memref<64x1280xbf16, #tpu.memory_space<vmem>>, vector<64x64xbf16>
    %cst = arith.constant dense<0.000000e+00> : vector<16x64xf32>
    %19 = tpu.matmul %15, %18, %cst {dimension_numbers = #tpu.dot_dimension_numbers<[1], [0], [0], [1], [0, 0, 1, 1], [], []>} : vector<16x64xbf16>, vector<64x64xbf16>, vector<16x64xf32> -> vector<16x64xf32>
    %c0_10 = arith.constant 0 : index
    %c0_11 = arith.constant 0 : index
    %20 = vector.load %arg4[%c0_10, %c0_11] : memref<1x7680xf32, #tpu.memory_space<vmem>>, vector<1x64xf32>
    %21 = vector.broadcast %20 : vector<1x64xf32> to vector<16x64xf32>
    %22 = arith.addf %19, %21 : vector<16x64xf32>
    %23 = arith.truncf %22 : vector<16x64xf32> to vector<16x64xbf16>
    %c0_12 = arith.constant 0 : index
    %c128 = arith.constant 128 : index
    %24 = vector.load %arg12[%c0_12, %c128] : memref<64x1280xbf16, #tpu.memory_space<vmem>>, vector<64x32xbf16>
    %cst_13 = arith.constant dense<0.000000e+00> : vector<16x32xf32>
    %25 = tpu.matmul %23, %24, %cst_13 {dimension_numbers = #tpu.dot_dimension_numbers<[1], [0], [0], [1], [0, 0, 1, 1], [], []>} : vector<16x64xbf16>, vector<64x32xbf16>, vector<16x32xf32> -> vector<16x32xf32>
    %c0_14 = arith.constant 0 : index
    %c128_15 = arith.constant 128 : index
    %26 = vector.load %arg4[%c0_14, %c128_15] : memref<1x7680xf32, #tpu.memory_space<vmem>>, vector<1x32xf32>
    %27 = vector.broadcast %26 : vector<1x32xf32> to vector<16x32xf32>
    %28 = arith.addf %25, %27 : vector<16x32xf32>
    %29 = arith.truncf %28 : vector<16x32xf32> to vector<16x32xbf16>
    %c1_i32_16 = arith.constant 1 : i32
    %30 = tpu.memref_slice %arg17[%c1_i32_16] : memref<5x!tpu.dma_semaphore, #tpu.memory_space<semaphore_mem>> -> memref<1x!tpu.dma_semaphore, #tpu.memory_space<semaphore_mem>>
    %31 = tpu.memref_squeeze %30 : memref<1x!tpu.dma_semaphore, #tpu.memory_space<semaphore_mem>> -> memref<!tpu.dma_semaphore, #tpu.memory_space<semaphore_mem>>
    tpu.wait_dma2 semaphore(%31 : memref<!tpu.dma_semaphore, #tpu.memory_space<semaphore_mem>>) src(%arg7 : memref<32x256xbf16, #tpu.memory_space<any>>) dst(%arg13 : memref<32x256xbf16, #tpu.memory_space<vmem>>)
    %c0_17 = arith.constant 0 : index
    %c0_18 = arith.constant 0 : index
    %32 = vector.load %arg13[%c0_17, %c0_18] : memref<32x256xbf16, #tpu.memory_space<vmem>>, vector<32x64xbf16>
    %cst_19 = arith.constant dense<0.000000e+00> : vector<16x64xf32>
    %33 = tpu.matmul %29, %32, %cst_19 {dimension_numbers = #tpu.dot_dimension_numbers<[1], [0], [0], [1], [0, 0, 1, 1], [], []>} : vector<16x32xbf16>, vector<32x64xbf16>, vector<16x64xf32> -> vector<16x64xf32>
    %c0_20 = arith.constant 0 : index
    %c256 = arith.constant 256 : index
    %34 = vector.load %arg4[%c0_20, %c256] : memref<1x7680xf32, #tpu.memory_space<vmem>>, vector<1x64xf32>
    %35 = vector.broadcast %34 : vector<1x64xf32> to vector<16x64xf32>
    %36 = arith.addf %33, %35 : vector<16x64xf32>
    %37 = arith.addf %22, %36 : vector<16x64xf32>
    %38 = vector.broadcast %2 : vector<16x1xf32> to vector<16x64xf32>
    %39 = arith.mulf %37, %38 : vector<16x64xf32>
    %cst_21 = arith.constant dense<0.000000e+00> : vector<64xf32>
    %40 = vector.multi_reduction <add>, %39, %cst_21 [0] : vector<16x64xf32> to vector<64xf32>
    %41 = vector.shape_cast %40 : vector<64xf32> to vector<1x64xf32>
    %42 = vector.broadcast %1 : f32 to vector<1x64xf32>
    %43 = arith.mulf %41, %42 : vector<1x64xf32>
    %44 = vector.broadcast %43 : vector<1x64xf32> to vector<16x64xf32>
    %45 = arith.subf %37, %44 : vector<16x64xf32>
    %46 = vector.broadcast %2 : vector<16x1xf32> to vector<16x64xf32>
    %47 = arith.mulf %45, %46 : vector<16x64xf32>
    %48 = arith.mulf %47, %47 : vector<16x64xf32>
    %cst_22 = arith.constant dense<0.000000e+00> : vector<64xf32>
    %49 = vector.multi_reduction <add>, %48, %cst_22 [0] : vector<16x64xf32> to vector<64xf32>
    %50 = vector.shape_cast %49 : vector<64xf32> to vector<1x64xf32>
    %51 = vector.broadcast %1 : f32 to vector<1x64xf32>
    %52 = arith.mulf %50, %51 : vector<1x64xf32>
    %53 = vector.broadcast %43 : vector<1x64xf32> to vector<16x64xf32>
    %54 = arith.subf %37, %53 : vector<16x64xf32>
    %cst_23 = arith.constant 9.99999974E-6 : f32
    %55 = vector.broadcast %cst_23 : f32 to vector<1x64xf32>
    %56 = arith.addf %52, %55 : vector<1x64xf32>
    %57 = math.rsqrt %56 : vector<1x64xf32>
    %58 = vector.broadcast %57 : vector<1x64xf32> to vector<16x64xf32>
    %59 = arith.mulf %54, %58 : vector<16x64xf32>
    %c0_24 = arith.constant 0 : index
    %c0_25 = arith.constant 0 : index
    %c0_26 = arith.constant 0 : index
    %60 = vector.load %arg2[%c0_24, %c0_25, %c0_26] : memref<1x16x7xf32, #tpu.memory_space<vmem>>, vector<1x16x1xf32>
    %61 = vector.shape_cast %60 : vector<1x16x1xf32> to vector<16x1xf32>
    %c0_27 = arith.constant 0 : index
    %c384 = arith.constant 384 : index
    %62 = vector.load %arg4[%c0_27, %c384] : memref<1x7680xf32, #tpu.memory_space<vmem>>, vector<1x64xf32>
    %63 = vector.broadcast %61 : vector<16x1xf32> to vector<16x64xf32>
    %64 = vector.broadcast %62 : vector<1x64xf32> to vector<16x64xf32>
    %65 = arith.addf %63, %64 : vector<16x64xf32>
    %66 = arith.mulf %65, %59 : vector<16x64xf32>
    %c0_28 = arith.constant 0 : index
    %c512 = arith.constant 512 : index
    %67 = vector.load %arg4[%c0_28, %c512] : memref<1x7680xf32, #tpu.memory_space<vmem>>, vector<1x64xf32>
    %68 = vector.broadcast %61 : vector<16x1xf32> to vector<16x64xf32>
    %69 = vector.broadcast %67 : vector<1x64xf32> to vector<16x64xf32>
    %70 = arith.addf %68, %69 : vector<16x64xf32>
    %71 = arith.addf %66, %70 : vector<16x64xf32>
    %cst_29 = arith.constant 0.000000e+00 : f32
    %72 = vector.broadcast %cst_29 : f32 to vector<16x64xf32>
    %73 = arith.cmpf oge, %71, %72 : vector<16x64xf32>
    %cst_30 = arith.constant 2.000000e-01 : f32
    %74 = vector.broadcast %cst_30 : f32 to vector<16x64xf32>
    %75 = arith.mulf %74, %71 : vector<16x64xf32>
    %76 = arith.select %73, %71, %75 : vector<16x64xi1>, vector<16x64xf32>
    %77 = arith.truncf %76 : vector<16x64xf32> to vector<16x64xbf16>
    %c0_31 = arith.constant 0 : index
    %c256_32 = arith.constant 256 : index
    %78 = vector.load %arg12[%c0_31, %c256_32] : memref<64x1280xbf16, #tpu.memory_space<vmem>>, vector<64x128xbf16>
    %cst_33 = arith.constant dense<0.000000e+00> : vector<16x128xf32>
    %79 = tpu.matmul %77, %78, %cst_33 {dimension_numbers = #tpu.dot_dimension_numbers<[1], [0], [0], [1], [0, 0, 1, 1], [], []>} : vector<16x64xbf16>, vector<64x128xbf16>, vector<16x128xf32> -> vector<16x128xf32>
    %c0_34 = arith.constant 0 : index
    %c640 = arith.constant 640 : index
    %80 = vector.load %arg4[%c0_34, %c640] : memref<1x7680xf32, #tpu.memory_space<vmem>>, vector<1x128xf32>
    %81 = vector.broadcast %80 : vector<1x128xf32> to vector<16x128xf32>
    %82 = arith.addf %79, %81 : vector<16x128xf32>
    %83 = arith.truncf %82 : vector<16x128xf32> to vector<16x128xbf16>
    %c2_i32_35 = arith.constant 2 : i32
    %84 = tpu.memref_slice %arg17[%c2_i32_35] : memref<5x!tpu.dma_semaphore, #tpu.memory_space<semaphore_mem>> -> memref<1x!tpu.dma_semaphore, #tpu.memory_space<semaphore_mem>>
    %85 = tpu.memref_squeeze %84 : memref<1x!tpu.dma_semaphore, #tpu.memory_space<semaphore_mem>> -> memref<!tpu.dma_semaphore, #tpu.memory_space<semaphore_mem>>
    tpu.wait_dma2 semaphore(%85 : memref<!tpu.dma_semaphore, #tpu.memory_space<semaphore_mem>>) src(%arg8 : memref<128x1152xbf16, #tpu.memory_space<any>>) dst(%arg14 : memref<128x1152xbf16, #tpu.memory_space<vmem>>)
    %c0_36 = arith.constant 0 : index
    %c0_37 = arith.constant 0 : index
    %86 = vector.load %arg14[%c0_36, %c0_37] : memref<128x1152xbf16, #tpu.memory_space<vmem>>, vector<128x64xbf16>
    %cst_38 = arith.constant dense<0.000000e+00> : vector<16x64xf32>
    %87 = tpu.matmul %83, %86, %cst_38 {dimension_numbers = #tpu.dot_dimension_numbers<[1], [0], [0], [1], [0, 0, 1, 1], [], []>} : vector<16x128xbf16>, vector<128x64xbf16>, vector<16x64xf32> -> vector<16x64xf32>
    %c0_39 = arith.constant 0 : index
    %c768 = arith.constant 768 : index
    %88 = vector.load %arg4[%c0_39, %c768] : memref<1x7680xf32, #tpu.memory_space<vmem>>, vector<1x64xf32>
    %89 = vector.broadcast %88 : vector<1x64xf32> to vector<16x64xf32>
    %90 = arith.addf %87, %89 : vector<16x64xf32>
    %91 = arith.truncf %90 : vector<16x64xf32> to vector<16x64xbf16>
    %c0_40 = arith.constant 0 : index
    %c384_41 = arith.constant 384 : index
    %92 = vector.load %arg12[%c0_40, %c384_41] : memref<64x1280xbf16, #tpu.memory_space<vmem>>, vector<64x128xbf16>
    %cst_42 = arith.constant dense<0.000000e+00> : vector<16x128xf32>
    %93 = tpu.matmul %91, %92, %cst_42 {dimension_numbers = #tpu.dot_dimension_numbers<[1], [0], [0], [1], [0, 0, 1, 1], [], []>} : vector<16x64xbf16>, vector<64x128xbf16>, vector<16x128xf32> -> vector<16x128xf32>
    %c0_43 = arith.constant 0 : index
    %c896 = arith.constant 896 : index
    %94 = vector.load %arg4[%c0_43, %c896] : memref<1x7680xf32, #tpu.memory_space<vmem>>, vector<1x128xf32>
    %95 = vector.broadcast %94 : vector<1x128xf32> to vector<16x128xf32>
    %96 = arith.addf %93, %95 : vector<16x128xf32>
    %97 = arith.addf %82, %96 : vector<16x128xf32>
    %98 = vector.broadcast %2 : vector<16x1xf32> to vector<16x128xf32>
    %99 = arith.mulf %97, %98 : vector<16x128xf32>
    %cst_44 = arith.constant dense<0.000000e+00> : vector<128xf32>
    %100 = vector.multi_reduction <add>, %99, %cst_44 [0] : vector<16x128xf32> to vector<128xf32>
    %101 = vector.shape_cast %100 : vector<128xf32> to vector<1x128xf32>
    %102 = vector.broadcast %1 : f32 to vector<1x128xf32>
    %103 = arith.mulf %101, %102 : vector<1x128xf32>
    %104 = vector.broadcast %103 : vector<1x128xf32> to vector<16x128xf32>
    %105 = arith.subf %97, %104 : vector<16x128xf32>
    %106 = vector.broadcast %2 : vector<16x1xf32> to vector<16x128xf32>
    %107 = arith.mulf %105, %106 : vector<16x128xf32>
    %108 = arith.mulf %107, %107 : vector<16x128xf32>
    %cst_45 = arith.constant dense<0.000000e+00> : vector<128xf32>
    %109 = vector.multi_reduction <add>, %108, %cst_45 [0] : vector<16x128xf32> to vector<128xf32>
    %110 = vector.shape_cast %109 : vector<128xf32> to vector<1x128xf32>
    %111 = vector.broadcast %1 : f32 to vector<1x128xf32>
    %112 = arith.mulf %110, %111 : vector<1x128xf32>
    %113 = vector.broadcast %103 : vector<1x128xf32> to vector<16x128xf32>
    %114 = arith.subf %97, %113 : vector<16x128xf32>
    %cst_46 = arith.constant 9.99999974E-6 : f32
    %115 = vector.broadcast %cst_46 : f32 to vector<1x128xf32>
    %116 = arith.addf %112, %115 : vector<1x128xf32>
    %117 = math.rsqrt %116 : vector<1x128xf32>
    %118 = vector.broadcast %117 : vector<1x128xf32> to vector<16x128xf32>
    %119 = arith.mulf %114, %118 : vector<16x128xf32>
    %c0_47 = arith.constant 0 : index
    %c0_48 = arith.constant 0 : index
    %c1_49 = arith.constant 1 : index
    %120 = vector.load %arg2[%c0_47, %c0_48, %c1_49] : memref<1x16x7xf32, #tpu.memory_space<vmem>>, vector<1x16x1xf32>
    %121 = vector.shape_cast %120 : vector<1x16x1xf32> to vector<16x1xf32>
    %c0_50 = arith.constant 0 : index
    %c1024 = arith.constant 1024 : index
    %122 = vector.load %arg4[%c0_50, %c1024] : memref<1x7680xf32, #tpu.memory_space<vmem>>, vector<1x128xf32>
    %123 = vector.broadcast %121 : vector<16x1xf32> to vector<16x128xf32>
    %124 = vector.broadcast %122 : vector<1x128xf32> to vector<16x128xf32>
    %125 = arith.addf %123, %124 : vector<16x128xf32>
    %126 = arith.mulf %125, %119 : vector<16x128xf32>
    %c0_51 = arith.constant 0 : index
    %c1152 = arith.constant 1152 : index
    %127 = vector.load %arg4[%c0_51, %c1152] : memref<1x7680xf32, #tpu.memory_space<vmem>>, vector<1x128xf32>
    %128 = vector.broadcast %121 : vector<16x1xf32> to vector<16x128xf32>
    %129 = vector.broadcast %127 : vector<1x128xf32> to vector<16x128xf32>
    %130 = arith.addf %128, %129 : vector<16x128xf32>
    %131 = arith.addf %126, %130 : vector<16x128xf32>
    %cst_52 = arith.constant 0.000000e+00 : f32
    %132 = vector.broadcast %cst_52 : f32 to vector<16x128xf32>
    %133 = arith.cmpf oge, %131, %132 : vector<16x128xf32>
    %cst_53 = arith.constant 2.000000e-01 : f32
    %134 = vector.broadcast %cst_53 : f32 to vector<16x128xf32>
    %135 = arith.mulf %134, %131 : vector<16x128xf32>
    %136 = arith.select %133, %131, %135 : vector<16x128xi1>, vector<16x128xf32>
    %137 = arith.truncf %136 : vector<16x128xf32> to vector<16x128xbf16>
    %c0_54 = arith.constant 0 : index
    %c128_55 = arith.constant 128 : index
    %138 = vector.load %arg14[%c0_54, %c128_55] : memref<128x1152xbf16, #tpu.memory_space<vmem>>, vector<128x256xbf16>
    %cst_56 = arith.constant dense<0.000000e+00> : vector<16x256xf32>
    %139 = tpu.matmul %137, %138, %cst_56 {dimension_numbers = #tpu.dot_dimension_numbers<[1], [0], [0], [1], [0, 0, 1, 1], [], []>} : vector<16x128xbf16>, vector<128x256xbf16>, vector<16x256xf32> -> vector<16x256xf32>
    %c0_57 = arith.constant 0 : index
    %c1280 = arith.constant 1280 : index
    %140 = vector.load %arg4[%c0_57, %c1280] : memref<1x7680xf32, #tpu.memory_space<vmem>>, vector<1x256xf32>
    %141 = vector.broadcast %140 : vector<1x256xf32> to vector<16x256xf32>
    %142 = arith.addf %139, %141 : vector<16x256xf32>
    %143 = arith.truncf %142 : vector<16x256xf32> to vector<16x256xbf16>
    %c3_i32_58 = arith.constant 3 : i32
    %144 = tpu.memref_slice %arg17[%c3_i32_58] : memref<5x!tpu.dma_semaphore, #tpu.memory_space<semaphore_mem>> -> memref<1x!tpu.dma_semaphore, #tpu.memory_space<semaphore_mem>>
    %145 = tpu.memref_squeeze %144 : memref<1x!tpu.dma_semaphore, #tpu.memory_space<semaphore_mem>> -> memref<!tpu.dma_semaphore, #tpu.memory_space<semaphore_mem>>
    tpu.wait_dma2 semaphore(%145 : memref<!tpu.dma_semaphore, #tpu.memory_space<semaphore_mem>>) src(%arg9 : memref<256x1408xbf16, #tpu.memory_space<any>>) dst(%arg15 : memref<256x1408xbf16, #tpu.memory_space<vmem>>)
    %c0_59 = arith.constant 0 : index
    %c0_60 = arith.constant 0 : index
    %146 = vector.load %arg15[%c0_59, %c0_60] : memref<256x1408xbf16, #tpu.memory_space<vmem>>, vector<256x128xbf16>
    %cst_61 = arith.constant dense<0.000000e+00> : vector<16x128xf32>
    %147 = tpu.matmul %143, %146, %cst_61 {dimension_numbers = #tpu.dot_dimension_numbers<[1], [0], [0], [1], [0, 0, 1, 1], [], []>} : vector<16x256xbf16>, vector<256x128xbf16>, vector<16x128xf32> -> vector<16x128xf32>
    %c0_62 = arith.constant 0 : index
    %c1536 = arith.constant 1536 : index
    %148 = vector.load %arg4[%c0_62, %c1536] : memref<1x7680xf32, #tpu.memory_space<vmem>>, vector<1x128xf32>
    %149 = vector.broadcast %148 : vector<1x128xf32> to vector<16x128xf32>
    %150 = arith.addf %147, %149 : vector<16x128xf32>
    %151 = arith.truncf %150 : vector<16x128xf32> to vector<16x128xbf16>
    %c0_63 = arith.constant 0 : index
    %c384_64 = arith.constant 384 : index
    %152 = vector.load %arg14[%c0_63, %c384_64] : memref<128x1152xbf16, #tpu.memory_space<vmem>>, vector<128x256xbf16>
    %cst_65 = arith.constant dense<0.000000e+00> : vector<16x256xf32>
    %153 = tpu.matmul %151, %152, %cst_65 {dimension_numbers = #tpu.dot_dimension_numbers<[1], [0], [0], [1], [0, 0, 1, 1], [], []>} : vector<16x128xbf16>, vector<128x256xbf16>, vector<16x256xf32> -> vector<16x256xf32>
    %c0_66 = arith.constant 0 : index
    %c1664 = arith.constant 1664 : index
    %154 = vector.load %arg4[%c0_66, %c1664] : memref<1x7680xf32, #tpu.memory_space<vmem>>, vector<1x256xf32>
    %155 = vector.broadcast %154 : vector<1x256xf32> to vector<16x256xf32>
    %156 = arith.addf %153, %155 : vector<16x256xf32>
    %157 = arith.addf %142, %156 : vector<16x256xf32>
    %158 = vector.broadcast %2 : vector<16x1xf32> to vector<16x256xf32>
    %159 = arith.mulf %157, %158 : vector<16x256xf32>
    %cst_67 = arith.constant dense<0.000000e+00> : vector<256xf32>
    %160 = vector.multi_reduction <add>, %159, %cst_67 [0] : vector<16x256xf32> to vector<256xf32>
    %161 = vector.shape_cast %160 : vector<256xf32> to vector<1x256xf32>
    %162 = vector.broadcast %1 : f32 to vector<1x256xf32>
    %163 = arith.mulf %161, %162 : vector<1x256xf32>
    %164 = vector.broadcast %163 : vector<1x256xf32> to vector<16x256xf32>
    %165 = arith.subf %157, %164 : vector<16x256xf32>
    %166 = vector.broadcast %2 : vector<16x1xf32> to vector<16x256xf32>
    %167 = arith.mulf %165, %166 : vector<16x256xf32>
    %168 = arith.mulf %167, %167 : vector<16x256xf32>
    %cst_68 = arith.constant dense<0.000000e+00> : vector<256xf32>
    %169 = vector.multi_reduction <add>, %168, %cst_68 [0] : vector<16x256xf32> to vector<256xf32>
    %170 = vector.shape_cast %169 : vector<256xf32> to vector<1x256xf32>
    %171 = vector.broadcast %1 : f32 to vector<1x256xf32>
    %172 = arith.mulf %170, %171 : vector<1x256xf32>
    %173 = vector.broadcast %163 : vector<1x256xf32> to vector<16x256xf32>
    %174 = arith.subf %157, %173 : vector<16x256xf32>
    %cst_69 = arith.constant 9.99999974E-6 : f32
    %175 = vector.broadcast %cst_69 : f32 to vector<1x256xf32>
    %176 = arith.addf %172, %175 : vector<1x256xf32>
    %177 = math.rsqrt %176 : vector<1x256xf32>
    %178 = vector.broadcast %177 : vector<1x256xf32> to vector<16x256xf32>
    %179 = arith.mulf %174, %178 : vector<16x256xf32>
    %c0_70 = arith.constant 0 : index
    %c0_71 = arith.constant 0 : index
    %c2 = arith.constant 2 : index
    %180 = vector.load %arg2[%c0_70, %c0_71, %c2] : memref<1x16x7xf32, #tpu.memory_space<vmem>>, vector<1x16x1xf32>
    %181 = vector.shape_cast %180 : vector<1x16x1xf32> to vector<16x1xf32>
    %c0_72 = arith.constant 0 : index
    %c1920 = arith.constant 1920 : index
    %182 = vector.load %arg4[%c0_72, %c1920] : memref<1x7680xf32, #tpu.memory_space<vmem>>, vector<1x256xf32>
    %183 = vector.broadcast %181 : vector<16x1xf32> to vector<16x256xf32>
    %184 = vector.broadcast %182 : vector<1x256xf32> to vector<16x256xf32>
    %185 = arith.addf %183, %184 : vector<16x256xf32>
    %186 = arith.mulf %185, %179 : vector<16x256xf32>
    %c0_73 = arith.constant 0 : index
    %c2176 = arith.constant 2176 : index
    %187 = vector.load %arg4[%c0_73, %c2176] : memref<1x7680xf32, #tpu.memory_space<vmem>>, vector<1x256xf32>
    %188 = vector.broadcast %181 : vector<16x1xf32> to vector<16x256xf32>
    %189 = vector.broadcast %187 : vector<1x256xf32> to vector<16x256xf32>
    %190 = arith.addf %188, %189 : vector<16x256xf32>
    %191 = arith.addf %186, %190 : vector<16x256xf32>
    %cst_74 = arith.constant 0.000000e+00 : f32
    %192 = vector.broadcast %cst_74 : f32 to vector<16x256xf32>
    %193 = arith.cmpf oge, %191, %192 : vector<16x256xf32>
    %cst_75 = arith.constant 2.000000e-01 : f32
    %194 = vector.broadcast %cst_75 : f32 to vector<16x256xf32>
    %195 = arith.mulf %194, %191 : vector<16x256xf32>
    %196 = arith.select %193, %191, %195 : vector<16x256xi1>, vector<16x256xf32>
    %197 = arith.truncf %196 : vector<16x256xf32> to vector<16x256xbf16>
    %c0_76 = arith.constant 0 : index
    %c128_77 = arith.constant 128 : index
    %198 = vector.load %arg15[%c0_76, %c128_77] : memref<256x1408xbf16, #tpu.memory_space<vmem>>, vector<256x512xbf16>
    %cst_78 = arith.constant dense<0.000000e+00> : vector<16x512xf32>
    %199 = tpu.matmul %197, %198, %cst_78 {dimension_numbers = #tpu.dot_dimension_numbers<[1], [0], [0], [1], [0, 0, 1, 1], [], []>} : vector<16x256xbf16>, vector<256x512xbf16>, vector<16x512xf32> -> vector<16x512xf32>
    %c0_79 = arith.constant 0 : index
    %c2432 = arith.constant 2432 : index
    %200 = vector.load %arg4[%c0_79, %c2432] : memref<1x7680xf32, #tpu.memory_space<vmem>>, vector<1x512xf32>
    %201 = vector.broadcast %200 : vector<1x512xf32> to vector<16x512xf32>
    %202 = arith.addf %199, %201 : vector<16x512xf32>
    %203 = arith.truncf %202 : vector<16x512xf32> to vector<16x512xbf16>
    %c4_i32_80 = arith.constant 4 : i32
    %204 = tpu.memref_slice %arg17[%c4_i32_80] : memref<5x!tpu.dma_semaphore, #tpu.memory_space<semaphore_mem>> -> memref<1x!tpu.dma_semaphore, #tpu.memory_space<semaphore_mem>>
    %205 = tpu.memref_squeeze %204 : memref<1x!tpu.dma_semaphore, #tpu.memory_space<semaphore_mem>> -> memref<!tpu.dma_semaphore, #tpu.memory_space<semaphore_mem>>
    tpu.wait_dma2 semaphore(%205 : memref<!tpu.dma_semaphore, #tpu.memory_space<semaphore_mem>>) src(%arg10 : memref<512x512xbf16, #tpu.memory_space<any>>) dst(%arg16 : memref<512x512xbf16, #tpu.memory_space<vmem>>)
    %c0_81 = arith.constant 0 : index
    %c0_82 = arith.constant 0 : index
    %206 = vector.load %arg16[%c0_81, %c0_82] : memref<512x512xbf16, #tpu.memory_space<vmem>>, vector<512x256xbf16>
    %cst_83 = arith.constant dense<0.000000e+00> : vector<16x256xf32>
    %207 = tpu.matmul %203, %206, %cst_83 {dimension_numbers = #tpu.dot_dimension_numbers<[1], [0], [0], [1], [0, 0, 1, 1], [], []>} : vector<16x512xbf16>, vector<512x256xbf16>, vector<16x256xf32> -> vector<16x256xf32>
    %c0_84 = arith.constant 0 : index
    %c2944 = arith.constant 2944 : index
    %208 = vector.load %arg4[%c0_84, %c2944] : memref<1x7680xf32, #tpu.memory_space<vmem>>, vector<1x256xf32>
    %209 = vector.broadcast %208 : vector<1x256xf32> to vector<16x256xf32>
    %210 = arith.addf %207, %209 : vector<16x256xf32>
    %211 = arith.truncf %210 : vector<16x256xf32> to vector<16x256xbf16>
    %c0_85 = arith.constant 0 : index
    %c640_86 = arith.constant 640 : index
    %212 = vector.load %arg15[%c0_85, %c640_86] : memref<256x1408xbf16, #tpu.memory_space<vmem>>, vector<256x512xbf16>
    %cst_87 = arith.constant dense<0.000000e+00> : vector<16x512xf32>
    %213 = tpu.matmul %211, %212, %cst_87 {dimension_numbers = #tpu.dot_dimension_numbers<[1], [0], [0], [1], [0, 0, 1, 1], [], []>} : vector<16x256xbf16>, vector<256x512xbf16>, vector<16x512xf32> -> vector<16x512xf32>
    %c0_88 = arith.constant 0 : index
    %c3200 = arith.constant 3200 : index
    %214 = vector.load %arg4[%c0_88, %c3200] : memref<1x7680xf32, #tpu.memory_space<vmem>>, vector<1x512xf32>
    %215 = vector.broadcast %214 : vector<1x512xf32> to vector<16x512xf32>
    %216 = arith.addf %213, %215 : vector<16x512xf32>
    %217 = arith.addf %202, %216 : vector<16x512xf32>
    %218 = vector.broadcast %2 : vector<16x1xf32> to vector<16x512xf32>
    %219 = arith.mulf %217, %218 : vector<16x512xf32>
    %cst_89 = arith.constant dense<0.000000e+00> : vector<512xf32>
    %220 = vector.multi_reduction <add>, %219, %cst_89 [0] : vector<16x512xf32> to vector<512xf32>
    %221 = vector.shape_cast %220 : vector<512xf32> to vector<1x512xf32>
    %222 = vector.broadcast %1 : f32 to vector<1x512xf32>
    %223 = arith.mulf %221, %222 : vector<1x512xf32>
    %224 = vector.broadcast %223 : vector<1x512xf32> to vector<16x512xf32>
    %225 = arith.subf %217, %224 : vector<16x512xf32>
    %226 = vector.broadcast %2 : vector<16x1xf32> to vector<16x512xf32>
    %227 = arith.mulf %225, %226 : vector<16x512xf32>
    %228 = arith.mulf %227, %227 : vector<16x512xf32>
    %cst_90 = arith.constant dense<0.000000e+00> : vector<512xf32>
    %229 = vector.multi_reduction <add>, %228, %cst_90 [0] : vector<16x512xf32> to vector<512xf32>
    %230 = vector.shape_cast %229 : vector<512xf32> to vector<1x512xf32>
    %231 = vector.broadcast %1 : f32 to vector<1x512xf32>
    %232 = arith.mulf %230, %231 : vector<1x512xf32>
    %233 = vector.broadcast %223 : vector<1x512xf32> to vector<16x512xf32>
    %234 = arith.subf %217, %233 : vector<16x512xf32>
    %cst_91 = arith.constant 9.99999974E-6 : f32
    %235 = vector.broadcast %cst_91 : f32 to vector<1x512xf32>
    %236 = arith.addf %232, %235 : vector<1x512xf32>
    %237 = math.rsqrt %236 : vector<1x512xf32>
    %238 = vector.broadcast %237 : vector<1x512xf32> to vector<16x512xf32>
    %239 = arith.mulf %234, %238 : vector<16x512xf32>
    %c0_92 = arith.constant 0 : index
    %c0_93 = arith.constant 0 : index
    %c3 = arith.constant 3 : index
    %240 = vector.load %arg2[%c0_92, %c0_93, %c3] : memref<1x16x7xf32, #tpu.memory_space<vmem>>, vector<1x16x1xf32>
    %241 = vector.shape_cast %240 : vector<1x16x1xf32> to vector<16x1xf32>
    %c0_94 = arith.constant 0 : index
    %c3712 = arith.constant 3712 : index
    %242 = vector.load %arg4[%c0_94, %c3712] : memref<1x7680xf32, #tpu.memory_space<vmem>>, vector<1x512xf32>
    %243 = vector.broadcast %241 : vector<16x1xf32> to vector<16x512xf32>
    %244 = vector.broadcast %242 : vector<1x512xf32> to vector<16x512xf32>
    %245 = arith.addf %243, %244 : vector<16x512xf32>
    %246 = arith.mulf %245, %239 : vector<16x512xf32>
    %c0_95 = arith.constant 0 : index
    %c4224 = arith.constant 4224 : index
    %247 = vector.load %arg4[%c0_95, %c4224] : memref<1x7680xf32, #tpu.memory_space<vmem>>, vector<1x512xf32>
    %248 = vector.broadcast %241 : vector<16x1xf32> to vector<16x512xf32>
    %249 = vector.broadcast %247 : vector<1x512xf32> to vector<16x512xf32>
    %250 = arith.addf %248, %249 : vector<16x512xf32>
    %251 = arith.addf %246, %250 : vector<16x512xf32>
    %cst_96 = arith.constant 0.000000e+00 : f32
    %252 = vector.broadcast %cst_96 : f32 to vector<16x512xf32>
    %253 = arith.cmpf oge, %251, %252 : vector<16x512xf32>
    %cst_97 = arith.constant 2.000000e-01 : f32
    %254 = vector.broadcast %cst_97 : f32 to vector<16x512xf32>
    %255 = arith.mulf %254, %251 : vector<16x512xf32>
    %256 = arith.select %253, %251, %255 : vector<16x512xi1>, vector<16x512xf32>
    %257 = arith.truncf %256 : vector<16x512xf32> to vector<16x512xbf16>
    %c0_98 = arith.constant 0 : index
    %c256_99 = arith.constant 256 : index
    %258 = vector.load %arg16[%c0_98, %c256_99] : memref<512x512xbf16, #tpu.memory_space<vmem>>, vector<512x256xbf16>
    %cst_100 = arith.constant dense<0.000000e+00> : vector<16x256xf32>
    %259 = tpu.matmul %257, %258, %cst_100 {dimension_numbers = #tpu.dot_dimension_numbers<[1], [0], [0], [1], [0, 0, 1, 1], [], []>} : vector<16x512xbf16>, vector<512x256xbf16>, vector<16x256xf32> -> vector<16x256xf32>
    %c0_101 = arith.constant 0 : index
    %c4736 = arith.constant 4736 : index
    %260 = vector.load %arg4[%c0_101, %c4736] : memref<1x7680xf32, #tpu.memory_space<vmem>>, vector<1x256xf32>
    %261 = vector.broadcast %260 : vector<1x256xf32> to vector<16x256xf32>
    %262 = arith.addf %259, %261 : vector<16x256xf32>
    %263 = arith.truncf %262 : vector<16x256xf32> to vector<16x256xbf16>
    %c0_102 = arith.constant 0 : index
    %c1152_103 = arith.constant 1152 : index
    %264 = vector.load %arg15[%c0_102, %c1152_103] : memref<256x1408xbf16, #tpu.memory_space<vmem>>, vector<256x128xbf16>
    %cst_104 = arith.constant dense<0.000000e+00> : vector<16x128xf32>
    %265 = tpu.matmul %263, %264, %cst_104 {dimension_numbers = #tpu.dot_dimension_numbers<[1], [0], [0], [1], [0, 0, 1, 1], [], []>} : vector<16x256xbf16>, vector<256x128xbf16>, vector<16x128xf32> -> vector<16x128xf32>
    %c0_105 = arith.constant 0 : index
    %c4992 = arith.constant 4992 : index
    %266 = vector.load %arg4[%c0_105, %c4992] : memref<1x7680xf32, #tpu.memory_space<vmem>>, vector<1x128xf32>
    %267 = vector.broadcast %266 : vector<1x128xf32> to vector<16x128xf32>
    %268 = arith.addf %265, %267 : vector<16x128xf32>
    %269 = arith.truncf %268 : vector<16x128xf32> to vector<16x128xbf16>
    %c0_106 = arith.constant 0 : index
    %c640_107 = arith.constant 640 : index
    %270 = vector.load %arg14[%c0_106, %c640_107] : memref<128x1152xbf16, #tpu.memory_space<vmem>>, vector<128x256xbf16>
    %cst_108 = arith.constant dense<0.000000e+00> : vector<16x256xf32>
    %271 = tpu.matmul %269, %270, %cst_108 {dimension_numbers = #tpu.dot_dimension_numbers<[1], [0], [0], [1], [0, 0, 1, 1], [], []>} : vector<16x128xbf16>, vector<128x256xbf16>, vector<16x256xf32> -> vector<16x256xf32>
    %c0_109 = arith.constant 0 : index
    %c5120 = arith.constant 5120 : index
    %272 = vector.load %arg4[%c0_109, %c5120] : memref<1x7680xf32, #tpu.memory_space<vmem>>, vector<1x256xf32>
    %273 = vector.broadcast %272 : vector<1x256xf32> to vector<16x256xf32>
    %274 = arith.addf %271, %273 : vector<16x256xf32>
    %275 = arith.addf %262, %274 : vector<16x256xf32>
    %276 = vector.broadcast %2 : vector<16x1xf32> to vector<16x256xf32>
    %277 = arith.mulf %275, %276 : vector<16x256xf32>
    %cst_110 = arith.constant dense<0.000000e+00> : vector<256xf32>
    %278 = vector.multi_reduction <add>, %277, %cst_110 [0] : vector<16x256xf32> to vector<256xf32>
    %279 = vector.shape_cast %278 : vector<256xf32> to vector<1x256xf32>
    %280 = vector.broadcast %1 : f32 to vector<1x256xf32>
    %281 = arith.mulf %279, %280 : vector<1x256xf32>
    %282 = vector.broadcast %281 : vector<1x256xf32> to vector<16x256xf32>
    %283 = arith.subf %275, %282 : vector<16x256xf32>
    %284 = vector.broadcast %2 : vector<16x1xf32> to vector<16x256xf32>
    %285 = arith.mulf %283, %284 : vector<16x256xf32>
    %286 = arith.mulf %285, %285 : vector<16x256xf32>
    %cst_111 = arith.constant dense<0.000000e+00> : vector<256xf32>
    %287 = vector.multi_reduction <add>, %286, %cst_111 [0] : vector<16x256xf32> to vector<256xf32>
    %288 = vector.shape_cast %287 : vector<256xf32> to vector<1x256xf32>
    %289 = vector.broadcast %1 : f32 to vector<1x256xf32>
    %290 = arith.mulf %288, %289 : vector<1x256xf32>
    %291 = vector.broadcast %281 : vector<1x256xf32> to vector<16x256xf32>
    %292 = arith.subf %275, %291 : vector<16x256xf32>
    %cst_112 = arith.constant 9.99999974E-6 : f32
    %293 = vector.broadcast %cst_112 : f32 to vector<1x256xf32>
    %294 = arith.addf %290, %293 : vector<1x256xf32>
    %295 = math.rsqrt %294 : vector<1x256xf32>
    %296 = vector.broadcast %295 : vector<1x256xf32> to vector<16x256xf32>
    %297 = arith.mulf %292, %296 : vector<16x256xf32>
    %c0_113 = arith.constant 0 : index
    %c0_114 = arith.constant 0 : index
    %c4 = arith.constant 4 : index
    %298 = vector.load %arg2[%c0_113, %c0_114, %c4] : memref<1x16x7xf32, #tpu.memory_space<vmem>>, vector<1x16x1xf32>
    %299 = vector.shape_cast %298 : vector<1x16x1xf32> to vector<16x1xf32>
    %c0_115 = arith.constant 0 : index
    %c5376 = arith.constant 5376 : index
    %300 = vector.load %arg4[%c0_115, %c5376] : memref<1x7680xf32, #tpu.memory_space<vmem>>, vector<1x256xf32>
    %301 = vector.broadcast %299 : vector<16x1xf32> to vector<16x256xf32>
    %302 = vector.broadcast %300 : vector<1x256xf32> to vector<16x256xf32>
    %303 = arith.addf %301, %302 : vector<16x256xf32>
    %304 = arith.mulf %303, %297 : vector<16x256xf32>
    %c0_116 = arith.constant 0 : index
    %c5632 = arith.constant 5632 : index
    %305 = vector.load %arg4[%c0_116, %c5632] : memref<1x7680xf32, #tpu.memory_space<vmem>>, vector<1x256xf32>
    %306 = vector.broadcast %299 : vector<16x1xf32> to vector<16x256xf32>
    %307 = vector.broadcast %305 : vector<1x256xf32> to vector<16x256xf32>
    %308 = arith.addf %306, %307 : vector<16x256xf32>
    %309 = arith.addf %304, %308 : vector<16x256xf32>
    %cst_117 = arith.constant 0.000000e+00 : f32
    %310 = vector.broadcast %cst_117 : f32 to vector<16x256xf32>
    %311 = arith.cmpf oge, %309, %310 : vector<16x256xf32>
    %cst_118 = arith.constant 2.000000e-01 : f32
    %312 = vector.broadcast %cst_118 : f32 to vector<16x256xf32>
    %313 = arith.mulf %312, %309 : vector<16x256xf32>
    %314 = arith.select %311, %309, %313 : vector<16x256xi1>, vector<16x256xf32>
    %315 = arith.addf %196, %314 : vector<16x256xf32>
    %316 = arith.truncf %315 : vector<16x256xf32> to vector<16x256xbf16>
    %c0_119 = arith.constant 0 : index
    %c1280_120 = arith.constant 1280 : index
    %317 = vector.load %arg15[%c0_119, %c1280_120] : memref<256x1408xbf16, #tpu.memory_space<vmem>>, vector<256x128xbf16>
    %cst_121 = arith.constant dense<0.000000e+00> : vector<16x128xf32>
    %318 = tpu.matmul %316, %317, %cst_121 {dimension_numbers = #tpu.dot_dimension_numbers<[1], [0], [0], [1], [0, 0, 1, 1], [], []>} : vector<16x256xbf16>, vector<256x128xbf16>, vector<16x128xf32> -> vector<16x128xf32>
    %c0_122 = arith.constant 0 : index
    %c5888 = arith.constant 5888 : index
    %319 = vector.load %arg4[%c0_122, %c5888] : memref<1x7680xf32, #tpu.memory_space<vmem>>, vector<1x128xf32>
    %320 = vector.broadcast %319 : vector<1x128xf32> to vector<16x128xf32>
    %321 = arith.addf %318, %320 : vector<16x128xf32>
    %322 = arith.truncf %321 : vector<16x128xf32> to vector<16x128xbf16>
    %c0_123 = arith.constant 0 : index
    %c896_124 = arith.constant 896 : index
    %323 = vector.load %arg14[%c0_123, %c896_124] : memref<128x1152xbf16, #tpu.memory_space<vmem>>, vector<128x64xbf16>
    %cst_125 = arith.constant dense<0.000000e+00> : vector<16x64xf32>
    %324 = tpu.matmul %322, %323, %cst_125 {dimension_numbers = #tpu.dot_dimension_numbers<[1], [0], [0], [1], [0, 0, 1, 1], [], []>} : vector<16x128xbf16>, vector<128x64xbf16>, vector<16x64xf32> -> vector<16x64xf32>
    %c0_126 = arith.constant 0 : index
    %c6016 = arith.constant 6016 : index
    %325 = vector.load %arg4[%c0_126, %c6016] : memref<1x7680xf32, #tpu.memory_space<vmem>>, vector<1x64xf32>
    %326 = vector.broadcast %325 : vector<1x64xf32> to vector<16x64xf32>
    %327 = arith.addf %324, %326 : vector<16x64xf32>
    %328 = arith.truncf %327 : vector<16x64xf32> to vector<16x64xbf16>
    %c0_127 = arith.constant 0 : index
    %c512_128 = arith.constant 512 : index
    %329 = vector.load %arg12[%c0_127, %c512_128] : memref<64x1280xbf16, #tpu.memory_space<vmem>>, vector<64x128xbf16>
    %cst_129 = arith.constant dense<0.000000e+00> : vector<16x128xf32>
    %330 = tpu.matmul %328, %329, %cst_129 {dimension_numbers = #tpu.dot_dimension_numbers<[1], [0], [0], [1], [0, 0, 1, 1], [], []>} : vector<16x64xbf16>, vector<64x128xbf16>, vector<16x128xf32> -> vector<16x128xf32>
    %c0_130 = arith.constant 0 : index
    %c6144 = arith.constant 6144 : index
    %331 = vector.load %arg4[%c0_130, %c6144] : memref<1x7680xf32, #tpu.memory_space<vmem>>, vector<1x128xf32>
    %332 = vector.broadcast %331 : vector<1x128xf32> to vector<16x128xf32>
    %333 = arith.addf %330, %332 : vector<16x128xf32>
    %334 = arith.addf %321, %333 : vector<16x128xf32>
    %335 = vector.broadcast %2 : vector<16x1xf32> to vector<16x128xf32>
    %336 = arith.mulf %334, %335 : vector<16x128xf32>
    %cst_131 = arith.constant dense<0.000000e+00> : vector<128xf32>
    %337 = vector.multi_reduction <add>, %336, %cst_131 [0] : vector<16x128xf32> to vector<128xf32>
    %338 = vector.shape_cast %337 : vector<128xf32> to vector<1x128xf32>
    %339 = vector.broadcast %1 : f32 to vector<1x128xf32>
    %340 = arith.mulf %338, %339 : vector<1x128xf32>
    %341 = vector.broadcast %340 : vector<1x128xf32> to vector<16x128xf32>
    %342 = arith.subf %334, %341 : vector<16x128xf32>
    %343 = vector.broadcast %2 : vector<16x1xf32> to vector<16x128xf32>
    %344 = arith.mulf %342, %343 : vector<16x128xf32>
    %345 = arith.mulf %344, %344 : vector<16x128xf32>
    %cst_132 = arith.constant dense<0.000000e+00> : vector<128xf32>
    %346 = vector.multi_reduction <add>, %345, %cst_132 [0] : vector<16x128xf32> to vector<128xf32>
    %347 = vector.shape_cast %346 : vector<128xf32> to vector<1x128xf32>
    %348 = vector.broadcast %1 : f32 to vector<1x128xf32>
    %349 = arith.mulf %347, %348 : vector<1x128xf32>
    %350 = vector.broadcast %340 : vector<1x128xf32> to vector<16x128xf32>
    %351 = arith.subf %334, %350 : vector<16x128xf32>
    %cst_133 = arith.constant 9.99999974E-6 : f32
    %352 = vector.broadcast %cst_133 : f32 to vector<1x128xf32>
    %353 = arith.addf %349, %352 : vector<1x128xf32>
    %354 = math.rsqrt %353 : vector<1x128xf32>
    %355 = vector.broadcast %354 : vector<1x128xf32> to vector<16x128xf32>
    %356 = arith.mulf %351, %355 : vector<16x128xf32>
    %c0_134 = arith.constant 0 : index
    %c0_135 = arith.constant 0 : index
    %c5 = arith.constant 5 : index
    %357 = vector.load %arg2[%c0_134, %c0_135, %c5] : memref<1x16x7xf32, #tpu.memory_space<vmem>>, vector<1x16x1xf32>
    %358 = vector.shape_cast %357 : vector<1x16x1xf32> to vector<16x1xf32>
    %c0_136 = arith.constant 0 : index
    %c6272 = arith.constant 6272 : index
    %359 = vector.load %arg4[%c0_136, %c6272] : memref<1x7680xf32, #tpu.memory_space<vmem>>, vector<1x128xf32>
    %360 = vector.broadcast %358 : vector<16x1xf32> to vector<16x128xf32>
    %361 = vector.broadcast %359 : vector<1x128xf32> to vector<16x128xf32>
    %362 = arith.addf %360, %361 : vector<16x128xf32>
    %363 = arith.mulf %362, %356 : vector<16x128xf32>
    %c0_137 = arith.constant 0 : index
    %c6400 = arith.constant 6400 : index
    %364 = vector.load %arg4[%c0_137, %c6400] : memref<1x7680xf32, #tpu.memory_space<vmem>>, vector<1x128xf32>
    %365 = vector.broadcast %358 : vector<16x1xf32> to vector<16x128xf32>
    %366 = vector.broadcast %364 : vector<1x128xf32> to vector<16x128xf32>
    %367 = arith.addf %365, %366 : vector<16x128xf32>
    %368 = arith.addf %363, %367 : vector<16x128xf32>
    %cst_138 = arith.constant 0.000000e+00 : f32
    %369 = vector.broadcast %cst_138 : f32 to vector<16x128xf32>
    %370 = arith.cmpf oge, %368, %369 : vector<16x128xf32>
    %cst_139 = arith.constant 2.000000e-01 : f32
    %371 = vector.broadcast %cst_139 : f32 to vector<16x128xf32>
    %372 = arith.mulf %371, %368 : vector<16x128xf32>
    %373 = arith.select %370, %368, %372 : vector<16x128xi1>, vector<16x128xf32>
    %374 = arith.addf %136, %373 : vector<16x128xf32>
    %375 = arith.truncf %374 : vector<16x128xf32> to vector<16x128xbf16>
    %c0_140 = arith.constant 0 : index
    %c1024_141 = arith.constant 1024 : index
    %376 = vector.load %arg14[%c0_140, %c1024_141] : memref<128x1152xbf16, #tpu.memory_space<vmem>>, vector<128x64xbf16>
    %cst_142 = arith.constant dense<0.000000e+00> : vector<16x64xf32>
    %377 = tpu.matmul %375, %376, %cst_142 {dimension_numbers = #tpu.dot_dimension_numbers<[1], [0], [0], [1], [0, 0, 1, 1], [], []>} : vector<16x128xbf16>, vector<128x64xbf16>, vector<16x64xf32> -> vector<16x64xf32>
    %c0_143 = arith.constant 0 : index
    %c6528 = arith.constant 6528 : index
    %378 = vector.load %arg4[%c0_143, %c6528] : memref<1x7680xf32, #tpu.memory_space<vmem>>, vector<1x64xf32>
    %379 = vector.broadcast %378 : vector<1x64xf32> to vector<16x64xf32>
    %380 = arith.addf %377, %379 : vector<16x64xf32>
    %381 = arith.truncf %380 : vector<16x64xf32> to vector<16x64xbf16>
    %c0_144 = arith.constant 0 : index
    %c640_145 = arith.constant 640 : index
    %382 = vector.load %arg12[%c0_144, %c640_145] : memref<64x1280xbf16, #tpu.memory_space<vmem>>, vector<64x32xbf16>
    %cst_146 = arith.constant dense<0.000000e+00> : vector<16x32xf32>
    %383 = tpu.matmul %381, %382, %cst_146 {dimension_numbers = #tpu.dot_dimension_numbers<[1], [0], [0], [1], [0, 0, 1, 1], [], []>} : vector<16x64xbf16>, vector<64x32xbf16>, vector<16x32xf32> -> vector<16x32xf32>
    %c0_147 = arith.constant 0 : index
    %c6656 = arith.constant 6656 : index
    %384 = vector.load %arg4[%c0_147, %c6656] : memref<1x7680xf32, #tpu.memory_space<vmem>>, vector<1x32xf32>
    %385 = vector.broadcast %384 : vector<1x32xf32> to vector<16x32xf32>
    %386 = arith.addf %383, %385 : vector<16x32xf32>
    %387 = arith.truncf %386 : vector<16x32xf32> to vector<16x32xbf16>
    %c0_148 = arith.constant 0 : index
    %c128_149 = arith.constant 128 : index
    %388 = vector.load %arg13[%c0_148, %c128_149] : memref<32x256xbf16, #tpu.memory_space<vmem>>, vector<32x64xbf16>
    %cst_150 = arith.constant dense<0.000000e+00> : vector<16x64xf32>
    %389 = tpu.matmul %387, %388, %cst_150 {dimension_numbers = #tpu.dot_dimension_numbers<[1], [0], [0], [1], [0, 0, 1, 1], [], []>} : vector<16x32xbf16>, vector<32x64xbf16>, vector<16x64xf32> -> vector<16x64xf32>
    %c0_151 = arith.constant 0 : index
    %c6784 = arith.constant 6784 : index
    %390 = vector.load %arg4[%c0_151, %c6784] : memref<1x7680xf32, #tpu.memory_space<vmem>>, vector<1x64xf32>
    %391 = vector.broadcast %390 : vector<1x64xf32> to vector<16x64xf32>
    %392 = arith.addf %389, %391 : vector<16x64xf32>
    %393 = arith.addf %380, %392 : vector<16x64xf32>
    %394 = vector.broadcast %2 : vector<16x1xf32> to vector<16x64xf32>
    %395 = arith.mulf %393, %394 : vector<16x64xf32>
    %cst_152 = arith.constant dense<0.000000e+00> : vector<64xf32>
    %396 = vector.multi_reduction <add>, %395, %cst_152 [0] : vector<16x64xf32> to vector<64xf32>
    %397 = vector.shape_cast %396 : vector<64xf32> to vector<1x64xf32>
    %398 = vector.broadcast %1 : f32 to vector<1x64xf32>
    %399 = arith.mulf %397, %398 : vector<1x64xf32>
    %400 = vector.broadcast %399 : vector<1x64xf32> to vector<16x64xf32>
    %401 = arith.subf %393, %400 : vector<16x64xf32>
    %402 = vector.broadcast %2 : vector<16x1xf32> to vector<16x64xf32>
    %403 = arith.mulf %401, %402 : vector<16x64xf32>
    %404 = arith.mulf %403, %403 : vector<16x64xf32>
    %cst_153 = arith.constant dense<0.000000e+00> : vector<64xf32>
    %405 = vector.multi_reduction <add>, %404, %cst_153 [0] : vector<16x64xf32> to vector<64xf32>
    %406 = vector.shape_cast %405 : vector<64xf32> to vector<1x64xf32>
    %407 = vector.broadcast %1 : f32 to vector<1x64xf32>
    %408 = arith.mulf %406, %407 : vector<1x64xf32>
    %409 = vector.broadcast %399 : vector<1x64xf32> to vector<16x64xf32>
    %410 = arith.subf %393, %409 : vector<16x64xf32>
    %cst_154 = arith.constant 9.99999974E-6 : f32
    %411 = vector.broadcast %cst_154 : f32 to vector<1x64xf32>
    %412 = arith.addf %408, %411 : vector<1x64xf32>
    %413 = math.rsqrt %412 : vector<1x64xf32>
    %414 = vector.broadcast %413 : vector<1x64xf32> to vector<16x64xf32>
    %415 = arith.mulf %410, %414 : vector<16x64xf32>
    %c0_155 = arith.constant 0 : index
    %c0_156 = arith.constant 0 : index
    %c6 = arith.constant 6 : index
    %416 = vector.load %arg2[%c0_155, %c0_156, %c6] : memref<1x16x7xf32, #tpu.memory_space<vmem>>, vector<1x16x1xf32>
    %417 = vector.shape_cast %416 : vector<1x16x1xf32> to vector<16x1xf32>
    %c0_157 = arith.constant 0 : index
    %c6912 = arith.constant 6912 : index
    %418 = vector.load %arg4[%c0_157, %c6912] : memref<1x7680xf32, #tpu.memory_space<vmem>>, vector<1x64xf32>
    %419 = vector.broadcast %417 : vector<16x1xf32> to vector<16x64xf32>
    %420 = vector.broadcast %418 : vector<1x64xf32> to vector<16x64xf32>
    %421 = arith.addf %419, %420 : vector<16x64xf32>
    %422 = arith.mulf %421, %415 : vector<16x64xf32>
    %c0_158 = arith.constant 0 : index
    %c7040 = arith.constant 7040 : index
    %423 = vector.load %arg4[%c0_158, %c7040] : memref<1x7680xf32, #tpu.memory_space<vmem>>, vector<1x64xf32>
    %424 = vector.broadcast %417 : vector<16x1xf32> to vector<16x64xf32>
    %425 = vector.broadcast %423 : vector<1x64xf32> to vector<16x64xf32>
    %426 = arith.addf %424, %425 : vector<16x64xf32>
    %427 = arith.addf %422, %426 : vector<16x64xf32>
    %cst_159 = arith.constant 0.000000e+00 : f32
    %428 = vector.broadcast %cst_159 : f32 to vector<16x64xf32>
    %429 = arith.cmpf oge, %427, %428 : vector<16x64xf32>
    %cst_160 = arith.constant 2.000000e-01 : f32
    %430 = vector.broadcast %cst_160 : f32 to vector<16x64xf32>
    %431 = arith.mulf %430, %427 : vector<16x64xf32>
    %432 = arith.select %429, %427, %431 : vector<16x64xi1>, vector<16x64xf32>
    %433 = arith.truncf %432 : vector<16x64xf32> to vector<16x64xbf16>
    %c0_161 = arith.constant 0 : index
    %c768_162 = arith.constant 768 : index
    %434 = vector.load %arg12[%c0_161, %c768_162] : memref<64x1280xbf16, #tpu.memory_space<vmem>>, vector<64x64xbf16>
    %cst_163 = arith.constant dense<0.000000e+00> : vector<16x64xf32>
    %435 = tpu.matmul %433, %434, %cst_163 {dimension_numbers = #tpu.dot_dimension_numbers<[1], [0], [0], [1], [0, 0, 1, 1], [], []>} : vector<16x64xbf16>, vector<64x64xbf16>, vector<16x64xf32> -> vector<16x64xf32>
    %c0_164 = arith.constant 0 : index
    %c7168 = arith.constant 7168 : index
    %436 = vector.load %arg4[%c0_164, %c7168] : memref<1x7680xf32, #tpu.memory_space<vmem>>, vector<1x64xf32>
    %437 = vector.broadcast %436 : vector<1x64xf32> to vector<16x64xf32>
    %438 = arith.addf %435, %437 : vector<16x64xf32>
    %439 = arith.truncf %432 : vector<16x64xf32> to vector<16x64xbf16>
    %c0_165 = arith.constant 0 : index
    %c896_166 = arith.constant 896 : index
    %440 = vector.load %arg12[%c0_165, %c896_166] : memref<64x1280xbf16, #tpu.memory_space<vmem>>, vector<64x16xbf16>
    %cst_167 = arith.constant dense<0.000000e+00> : vector<16x16xf32>
    %441 = tpu.matmul %439, %440, %cst_167 {dimension_numbers = #tpu.dot_dimension_numbers<[1], [0], [0], [1], [0, 0, 1, 1], [], []>} : vector<16x64xbf16>, vector<64x16xbf16>, vector<16x16xf32> -> vector<16x16xf32>
    %c0_168 = arith.constant 0 : index
    %c7296 = arith.constant 7296 : index
    %442 = vector.load %arg4[%c0_168, %c7296] : memref<1x7680xf32, #tpu.memory_space<vmem>>, vector<1x16xf32>
    %443 = vector.broadcast %442 : vector<1x16xf32> to vector<16x16xf32>
    %444 = arith.addf %441, %443 : vector<16x16xf32>
    %445 = arith.truncf %432 : vector<16x64xf32> to vector<16x64xbf16>
    %c0_169 = arith.constant 0 : index
    %c1024_170 = arith.constant 1024 : index
    %446 = vector.load %arg12[%c0_169, %c1024_170] : memref<64x1280xbf16, #tpu.memory_space<vmem>>, vector<64x16xbf16>
    %cst_171 = arith.constant dense<0.000000e+00> : vector<16x16xf32>
    %447 = tpu.matmul %445, %446, %cst_171 {dimension_numbers = #tpu.dot_dimension_numbers<[1], [0], [0], [1], [0, 0, 1, 1], [], []>} : vector<16x64xbf16>, vector<64x16xbf16>, vector<16x16xf32> -> vector<16x16xf32>
    %c0_172 = arith.constant 0 : index
    %c7424 = arith.constant 7424 : index
    %448 = vector.load %arg4[%c0_172, %c7424] : memref<1x7680xf32, #tpu.memory_space<vmem>>, vector<1x16xf32>
    %449 = vector.broadcast %448 : vector<1x16xf32> to vector<16x16xf32>
    %450 = arith.addf %447, %449 : vector<16x16xf32>
    %451 = vector.shape_cast %444 : vector<16x16xf32> to vector<16x16x1xf32>
    %452 = vector.shape_cast %438 : vector<16x64xf32> to vector<16x1x64xf32>
    %453 = vector.broadcast %451 : vector<16x16x1xf32> to vector<16x16x64xf32>
    %454 = vector.broadcast %452 : vector<16x1x64xf32> to vector<16x16x64xf32>
    %455 = arith.mulf %453, %454 : vector<16x16x64xf32>
    %cst_173 = arith.constant dense<0xFF800000> : vector<16x64xf32>
    %456 = vector.multi_reduction <maximumf>, %455, %cst_173 [1] : vector<16x16x64xf32> to vector<16x64xf32>
    %457 = vector.shape_cast %456 : vector<16x64xf32> to vector<16x1x64xf32>
    %458 = vector.broadcast %457 : vector<16x1x64xf32> to vector<16x16x64xf32>
    %459 = arith.subf %455, %458 : vector<16x16x64xf32>
    %460 = math.exp %459 : vector<16x16x64xf32>
    %cst_174 = arith.constant dense<0.000000e+00> : vector<16x64xf32>
    %461 = vector.multi_reduction <add>, %460, %cst_174 [1] : vector<16x16x64xf32> to vector<16x64xf32>
    %462 = vector.shape_cast %461 : vector<16x64xf32> to vector<16x1x64xf32>
    %463 = tpu.reciprocal %462 {approx = true} : vector<16x1x64xf32> -> vector<16x1x64xf32>
    %464 = vector.broadcast %463 : vector<16x1x64xf32> to vector<16x16x64xf32>
    %465 = arith.mulf %460, %464 : vector<16x16x64xf32>
    %466 = vector.shape_cast %450 : vector<16x16xf32> to vector<16x16x1xf32>
    %467 = vector.broadcast %466 : vector<16x16x1xf32> to vector<16x16x64xf32>
    %468 = arith.mulf %465, %467 : vector<16x16x64xf32>
    %cst_175 = arith.constant dense<0.000000e+00> : vector<16x64xf32>
    %469 = vector.multi_reduction <add>, %468, %cst_175 [1] : vector<16x16x64xf32> to vector<16x64xf32>
    %470 = vector.broadcast %0 : f32 to vector<16x64xf32>
    %471 = arith.mulf %470, %469 : vector<16x64xf32>
    %472 = arith.addf %471, %432 : vector<16x64xf32>
    %473 = arith.addf %76, %472 : vector<16x64xf32>
    %474 = arith.truncf %473 : vector<16x64xf32> to vector<16x64xbf16>
    %c0_176 = arith.constant 0 : index
    %c1152_177 = arith.constant 1152 : index
    %475 = vector.load %arg12[%c0_176, %c1152_177] : memref<64x1280xbf16, #tpu.memory_space<vmem>>, vector<64x32xbf16>
    %cst_178 = arith.constant dense<0.000000e+00> : vector<16x32xf32>
    %476 = tpu.matmul %474, %475, %cst_178 {dimension_numbers = #tpu.dot_dimension_numbers<[1], [0], [0], [1], [0, 0, 1, 1], [], []>} : vector<16x64xbf16>, vector<64x32xbf16>, vector<16x32xf32> -> vector<16x32xf32>
    %c0_179 = arith.constant 0 : index
    %c7552 = arith.constant 7552 : index
    %477 = vector.load %arg4[%c0_179, %c7552] : memref<1x7680xf32, #tpu.memory_space<vmem>>, vector<1x32xf32>
    %478 = vector.broadcast %477 : vector<1x32xf32> to vector<16x32xf32>
    %479 = arith.addf %476, %478 : vector<16x32xf32>
    %c0_180 = arith.constant 0 : index
    %c0_181 = arith.constant 0 : index
    %c0_182 = arith.constant 0 : index
    %480 = vector.load %arg11[%c0_180, %c0_181, %c0_182] : memref<1x16x32xf32, #tpu.memory_space<vmem>>, vector<1x16x32xf32>
    %481 = vector.shape_cast %480 : vector<1x16x32xf32> to vector<16x32xf32>
    %482 = vector.shape_cast %479 : vector<16x32xf32> to vector<1x16x32xf32>
    tpu.vector_store %arg11[%c0_180, %c0_181, %c0_182], %482 {strides = array<i32>} : memref<1x16x32xf32, #tpu.memory_space<vmem>>, vector<1x16x32xf32>,
    return
  }
  func.func @transform_0(%arg0: i32) -> (i32, i32, i32) {
    %c0_i32 = arith.constant 0 : i32
    %c0_i32_0 = arith.constant 0 : i32
    %c0_i32_1 = arith.constant 0 : i32
    return %arg0, %c0_i32, %c0_i32_0 : i32, i32, i32
  }
  func.func @transform_1(%arg0: i32) -> (i32, i32, i32) {
    %c0_i32 = arith.constant 0 : i32
    %c0_i32_0 = arith.constant 0 : i32
    %c0_i32_1 = arith.constant 0 : i32
    return %arg0, %c0_i32, %c0_i32_0 : i32, i32, i32
  }
  func.func @transform_2(%arg0: i32) -> (i32, i32) {
    %c0_i32 = arith.constant 0 : i32
    %c0_i32_0 = arith.constant 0 : i32
    %c0_i32_1 = arith.constant 0 : i32
    return %c0_i32, %c0_i32_0 : i32, i32
  }
  func.func @transform_3(%arg0: i32) -> (i32, i32) {
    %c0_i32 = arith.constant 0 : i32
    %c0_i32_0 = arith.constant 0 : i32
    %c0_i32_1 = arith.constant 0 : i32
    return %c0_i32, %c0_i32_0 : i32, i32
  }
  func.func @transform_4(%arg0: i32) -> (i32, i32) {
    %c0_i32 = arith.constant 0 : i32
    %c0_i32_0 = arith.constant 0 : i32
    %c0_i32_1 = arith.constant 0 : i32
    return %c0_i32, %c0_i32_0 : i32, i32
  }
  func.func @transform_10(%arg0: i32) -> (i32, i32, i32) {
    %c0_i32 = arith.constant 0 : i32
    %c0_i32_0 = arith.constant 0 : i32
    %c0_i32_1 = arith.constant 0 : i32
    return %arg0, %c0_i32, %c0_i32_0 : i32, i32, i32
  }
}

</mosaic_0001>

<llo_original>
// kernel: generator_forward.1
$region0: #{generator_forward.1}
  #allocation0 [shape = 'u32[]', space=smem, size = 0x4, offset = 0x4, fixed_abs, tag = 'smem constant byte address 0x4 - core index']
  #allocation1 [shape = 'u32[72,128]{1,0:T(1,128)}', space=vmem, size = 0x9000, scoped, tag = 'internal scratch']
  #allocation2 [shape = 'bf16[64,1280]{1,0:T(8,128)(2,1)}', space=vmem, size = 0x28000, scoped, tag = 'scratch operand']
  #allocation3 [shape = 'bf16[32,256]{1,0:T(8,128)(2,1)}', space=vmem, size = 0x4000, scoped, tag = 'scratch operand']
  #allocation4 [shape = 'bf16[128,1152]{1,0:T(8,128)(2,1)}', space=vmem, size = 0x48000, scoped, tag = 'scratch operand']
  #allocation5 [shape = 'bf16[256,1408]{1,0:T(8,128)(2,1)}', space=vmem, size = 0xb0000, scoped, tag = 'scratch operand']
  #allocation6 [shape = 'bf16[512,512]{1,0:T(8,128)(2,1)}', space=vmem, size = 0x80000, scoped, tag = 'scratch operand']
  #allocation7 [shape = 's32[5]{0}', space=sflag, size = 0x14, scoped, tag = 'scratch operand']
  #allocation10 [shape = 's32[]', space=sflag, size = 0x4, offset = 0, fixed_abs, tag = 'sflag constant byte address 0x0 - dummy sync flag']
  #allocation11 [shape = 's32[]', space=sflag, size = 0x4, offset = 0, fixed_abs, tag = 'sflag constant byte address 0x0 - dummy sync flag']
  #allocation12 [shape = 'u32[]', space=smem, size = 0x4, offset = 0x44, fixed_abs, tag = 'smem constant byte address 0x44 - assertion arg 0']
  #allocation13 [shape = 'u32[]', space=smem, size = 0x4, offset = 0x48, fixed_abs, tag = 'smem constant byte address 0x48 - assertion arg 1']
  #allocation14 [shape = 's32[]', space=sflag, size = 0x4, offset = 0, fixed_abs, tag = 'sflag constant byte address 0x0 - dummy sync flag']
  #allocation15 [shape = 's32[]', space=sflag, size = 0x4, offset = 0, fixed_abs, tag = 'sflag constant byte address 0x0 - dummy sync flag']
  #allocation16 [shape = 's32[]', space=sflag, size = 0x4, offset = 0, fixed_abs, tag = 'sflag constant byte address 0x0 - dummy sync flag']
  #allocation17 [shape = 's32[]', space=sflag, size = 0x4, offset = 0, fixed_abs, tag = 'sflag constant byte address 0x0 - dummy sync flag']
  #allocation18 [shape = 's32[]', space=sflag, size = 0x4, offset = 0, fixed_abs, tag = 'sflag constant byte address 0x0 - dummy sync flag']
  #allocation19 [shape = 's32[]', space=sflag, size = 0x4, offset = 0, fixed_abs, tag = 'sflag constant byte address 0x0 - dummy sync flag']
  #allocation20 [shape = 's32[]', space=sflag, size = 0x4, offset = 0, fixed_abs, tag = 'sflag constant byte address 0x0 - dummy sync flag']
  %s0 = inlined_call_operand.vmem [shape: f32[1,16,64], index: 0, kind: input, shape index: {}]
  %s1 = inlined_call_operand.vmem [shape: f32[1,16,7], index: 1, kind: input, shape index: {}]
  %s2 = inlined_call_operand.vmem [shape: f32[16,1], index: 2, kind: input, shape index: {}]
  %s3 = inlined_call_operand.vmem [shape: f32[1,7680], index: 3, kind: input, shape index: {}]
  %s4 = inlined_call_operand.vmem [shape: f32[1,2], index: 4, kind: input, shape index: {}]
  %s5 = inlined_call_operand.hbm [shape: bf16[64,1280], index: 5, kind: input, shape index: {}]
  %s6 = inlined_call_operand.vmem [shape: bf16[32,256], index: 6, kind: input, shape index: {}]
  %s7 = inlined_call_operand.hbm [shape: bf16[128,1152], index: 7, kind: input, shape index: {}]
  %s8 = inlined_call_operand.hbm [shape: bf16[256,1408], index: 8, kind: input, shape index: {}]
  %s9 = inlined_call_operand.hbm [shape: bf16[512,512], index: 9, kind: input, shape index: {}]
  %s10 = inlined_call_operand.vmem [shape: f32[1,16,32], index: 10, kind: output, shape index: {}]
  %s11 = sld [smem:[#allocation0]]
  $region69: #{generator_forward.1} parent=0
    _
  %s13 = ssub.s32 1, %s11
  %s14 = scalar_select 0, %s13, %s11
  $region1: #{generator_forward.1} parent=0
    #allocation8 [shape = 'u8[512]{0}', space=smem, size = 0x200, scoped, tag = 'input window, operand 4, single buffered']
    #allocation9 [shape = 's32[1]{0}', space=sflag, size = 0x4, scoped, tag = 'scoped memory for generator_forward.1']
    %15 = vsyncpa [#allocation9], 0
    // Predicated region
    $region2: #{generator_forward.1} parent=1 // pred_check
      _
    $region3: #{generator_forward.1} parent=1 // pred_check_branch
      %17 = sbr.rel (0) target = $region5
    $region4: #{generator_forward.1} parent=1 // pred_region
      _
    $region5: #{generator_forward.1} parent=1 // pred_fallthru
      _
    // Predicated region
    $region6: #{generator_forward.1} parent=1 // pred_check
      _
    $region7: #{generator_forward.1} parent=1 // pred_check_branch
      %19 = sbr.rel (0) target = $region9
    $region8: #{generator_forward.1} parent=1 // pred_region
      _
    $region9: #{generator_forward.1} parent=1 // pred_fallthru
      _
    // Predicated region
    $region10: #{generator_forward.1} parent=1 // pred_check
      _
    $region11: #{generator_forward.1} parent=1 // pred_check_branch
      %21 = sbr.rel (0) target = $region13
    $region12: #{generator_forward.1} parent=1 // pred_region
      _
    $region13: #{generator_forward.1} parent=1 // pred_fallthru
      _
    // Predicated region
    $region14: #{generator_forward.1} parent=1 // pred_check
      _
    $region15: #{generator_forward.1} parent=1 // pred_check_branch
      %23 = sbr.rel (0) target = $region17
    $region16: #{generator_forward.1} parent=1 // pred_region
      _
    $region17: #{generator_forward.1} parent=1 // pred_fallthru
      _
    // Predicated region
    $region18: #{generator_forward.1} parent=1 // pred_check
      _
    $region19: #{generator_forward.1} parent=1 // pred_check_branch
      %25 = sbr.rel (0) target = $region21
    $region20: #{generator_forward.1} parent=1 // pred_region
      %27 = vsyncadd [#allocation9], 0
      %s29 = sshll.u32 %s4, 4
      %s30 = int_to_ptr.vmem [resolvable:$true] %s29
      %32 = dma.vmem_to_smem %s30, 16, [#allocation8], [#allocation9]
    $region21: #{generator_forward.1} parent=1 // pred_fallthru
      _
    // Predicated region
    $region22: #{generator_forward.1} parent=1 // pred_check
      _
    $region23: #{generator_forward.1} parent=1 // pred_check_branch
      %34 = sbr.rel (0) target = $region25
    $region24: #{generator_forward.1} parent=1 // pred_region
      %36 = dma.done [#allocation9], 16
    $region25: #{generator_forward.1} parent=1 // pred_fallthru
      _
    %37 = sfence
    %s39 = sld [smem:[#allocation8]]
    %s40 = sld [smem:[#allocation8 + $0x1]]
    %v41 = vld [vmem:[%s2] sm:$0xff]
    %v42 = vld [vmem:[%s2 + $0x8] sm:$0xff]
    // Predicated region
    $region26: #{generator_forward.1} parent=1 // pred_check
      _
    $region27: #{generator_forward.1} parent=1 // pred_check_branch
      %44 = sbr.rel target = $region29
    $region28: #{generator_forward.1} parent=1 // pred_region
      %45 = sst [smem:[#allocation12]] [#allocation11]
      %46 = sst [smem:[#allocation13]] [#allocation10]
    $region29: #{generator_forward.1} parent=1 // pred_fallthru
      _
    %48 = shalt.err (0)
    %s50 = sshll.u32 %s5, 4
    %s51 = int_to_ptr.hbm [resolvable:$true] %s50
    %s52 = sshll.u32 [#allocation2], 4
    %s53 = int_to_ptr.vmem [resolvable:$true] %s52
    %55 = dma.hbm_to_vmem [thread:$0]  %s51, 5120, %s53, [#allocation7]
    %s56 = scalar_lea.sflag [#allocation7], 1
    // Predicated region
    $region30: #{generator_forward.1} parent=1 // pred_check
      _
    $region31: #{generator_forward.1} parent=1 // pred_check_branch
      %58 = sbr.rel (0) target = $region33
    $region32: #{generator_forward.1} parent=1 // pred_region
      loop: start=0, step=1, limit=1
      $region34: #{generator_forward.1} parent=32 // loop_pre_header
        _
      $region35: #{generator_forward.1} parent=32 // loop_header
        %s60 = sphi 0, %s64
        %p61 = scmp.ge.s32.totalorder %s60, 1
        %s65 = sphi %s6, %s6
        %s66 = sphi [#allocation3], [#allocation3]
      $region36: #{generator_forward.1} parent=32 // loop_header_branch
        %63 = sbr.rel (%p61) target = $region40
      $region37: #{generator_forward.1} parent=32 // loop_body
        %v67 = vld [vmem:[%s65] sm:$0xff]
        %68 = vst [vmem:[%s66] sm:$0xff] %v67
        %v69 = vld [vmem:[%s65 + $0x8] sm:$0xff]
        %70 = vst [vmem:[%s66 + $0x8] sm:$0xff] %v69
        %v71 = vld [vmem:[%s65 + $0x10] sm:$0xff]
        %72 = vst [vmem:[%s66 + $0x10] sm:$0xff] %v71
        %v73 = vld [vmem:[%s65 + $0x18] sm:$0xff]
        %74 = vst [vmem:[%s66 + $0x18] sm:$0xff] %v73
      $region38: #{generator_forward.1} parent=32 // loop_footer
        %s64 = sadd.s32 1, %s60
      $region39: #{generator_forward.1} parent=32 // loop_footer_branch
        %59 = sbr.rel target = $region35
      $region40: #{generator_forward.1} parent=32 // loop_exit
        _
    $region33: #{generator_forward.1} parent=1 // pred_fallthru
      _
    // Predicated region
    $region41: #{generator_forward.1} parent=1 // pred_check
      _
    $region42: #{generator_forward.1} parent=1 // pred_check_branch
      %76 = sbr.rel target = $region44
    $region43: #{generator_forward.1} parent=1 // pred_region
      _
    $region44: #{generator_forward.1} parent=1 // pred_fallthru
      _
    // Predicated region
    $region45: #{generator_forward.1} parent=1 // pred_check
      _
    $region46: #{generator_forward.1} parent=1 // pred_check_branch
      %79 = sbr.rel (0) target = $region48
    $region47: #{generator_forward.1} parent=1 // pred_region
      %80 = vsyncadd %s56, 512
    $region48: #{generator_forward.1} parent=1 // pred_fallthru
      _
    %s81 = scalar_lea.sflag [#allocation7], 2
    // Predicated region
    $region49: #{generator_forward.1} parent=1 // pred_check
      _
    $region50: #{generator_forward.1} parent=1 // pred_check_branch
      %83 = sbr.rel target = $region52
    $region51: #{generator_forward.1} parent=1 // pred_region
      %84 = sst [smem:[#allocation12]] [#allocation16]
      %85 = sst [smem:[#allocation13]] [#allocation15]
    $region52: #{generator_forward.1} parent=1 // pred_fallthru
      _
    %87 = shalt.err (0)
    %s89 = sshll.u32 %s7, 4
    %s90 = int_to_ptr.hbm [resolvable:$true] %s89
    %s91 = sshll.u32 [#allocation4], 4
    %s92 = int_to_ptr.vmem [resolvable:$true] %s91
    %94 = dma.hbm_to_vmem [thread:$0]  %s90, 9216, %s92, %s81
    %s95 = scalar_lea.sflag [#allocation7], 3
    // Predicated region
    $region53: #{generator_forward.1} parent=1 // pred_check
      _
    $region54: #{generator_forward.1} parent=1 // pred_check_branch
      %97 = sbr.rel target = $region56
    $region55: #{generator_forward.1} parent=1 // pred_region
      %98 = sst [smem:[#allocation12]] [#allocation18]
      %99 = sst [smem:[#allocation13]] [#allocation17]
    $region56: #{generator_forward.1} parent=1 // pred_fallthru
      _
    %101 = shalt.err (0)
    %s103 = sshll.u32 %s8, 4
    %s104 = int_to_ptr.hbm [resolvable:$true] %s103
    %s105 = sshll.u32 [#allocation5], 4
    %s106 = int_to_ptr.vmem [resolvable:$true] %s105
    %108 = dma.hbm_to_vmem [thread:$0]  %s104, 22528, %s106, %s95
    %s109 = scalar_lea.sflag [#allocation7], 4
    // Predicated region
    $region57: #{generator_forward.1} parent=1 // pred_check
      _
    $region58: #{generator_forward.1} parent=1 // pred_check_branch
      %111 = sbr.rel target = $region60
    $region59: #{generator_forward.1} parent=1 // pred_region
      %112 = sst [smem:[#allocation12]] [#allocation20]
      %113 = sst [smem:[#allocation13]] [#allocation19]
    $region60: #{generator_forward.1} parent=1 // pred_fallthru
      _
    %115 = shalt.err (0)
    %s117 = sshll.u32 %s9, 4
    %s118 = int_to_ptr.hbm [resolvable:$true] %s117
    %s119 = sshll.u32 [#allocation6], 4
    %s120 = int_to_ptr.vmem [resolvable:$true] %s119
    %122 = dma.hbm_to_vmem [thread:$0]  %s118, 16384, %s120, %s109
    %v123 = vld [vmem:[%s0] sm:$0xff]
    %v124 = vld [vmem:[%s0 + $0x8] sm:$0xff]
    %v125 = vpack.c.bf16 %v124, %v123
    %s126 = smul.u32 4, 8
    %s127 = smul.u32 %s126, 10
    %s128 = sshll.u32 %s127, 4
    %129 = dma.done [#allocation7], %s128
    %v130 = vld [vmem:[#allocation2] sm:$0xf]
    %v131 = vld [vmem:[#allocation2 + $0x28] sm:$0xf]
    %v132 = vld [vmem:[#allocation2 + $0x50] sm:$0xf]
    %v133 = vld [vmem:[#allocation2 + $0x78] sm:$0xf]
    %v134 = vld [vmem:[#allocation2 + $0xa0] sm:$0xf]
    %v135 = vld [vmem:[#allocation2 + $0xc8] sm:$0xf]
    %v136 = vld [vmem:[#allocation2 + $0xf0] sm:$0xf]
    %v137 = vld [vmem:[#allocation2 + $0x118] sm:$0xf]
    %v138 = vld [vmem:[%s3] sm:$0x1]
    %v140 = vperm.slane %v138, 0
    %v150 = vunpack.c.l.b16 %v130
    %v151 = vunpack.c.l.b16 %v131
    %v152 = vunpack.c.l.b16 %v132
    %v153 = vunpack.c.l.b16 %v133
    %v154 = vunpack.c.l.b16 %v134
    %v155 = vunpack.c.l.b16 %v135
    %v156 = vunpack.c.l.b16 %v136
    %v157 = vunpack.c.l.b16 %v137
    %v158 = vpack.c.b16 %v151, %v150
    %v159 = vpack.c.b16 %v153, %v152
    %v160 = vpack.c.b16 %v155, %v154
    %v161 = vpack.c.b16 %v157, %v156
    %vm166 = vcmask 523264
    %v168 = vsel %vm166, %v125, 0
    %170 = vmatpush.bf16.msra.mxu0 0
    %171 = vmatpush.bf16.msra.mxu0 0
    %172 = vmatpush.bf16.msra.mxu0 0
    %173 = vmatpush.bf16.msra.mxu0 0
    %174 = vmatpush.bf16.msra.mxu0 %v161
    %175 = vmatpush.bf16.msra.mxu0 %v160
    %176 = vmatpush.bf16.msra.mxu0 %v159
    %177 = vmatpush.bf16.msra.mxu0 %v158
    %178 = vmatmul.bf16.gmra.mxu0 %v168
    %v179 = vpop.f32.mrf.mxu0
    %v180 = vadd.f32 %v140, %v179
    %v181 = vpop.f32.mrf.mxu0
    %v182 = vadd.f32 %v140, %v181
    %183 = vdwg.mxu0
    %v184 = vpack.c.bf16 %v182, %v180
    %v185 = vld [vmem:[#allocation2 + $0x4] sm:$0xf]
    %v186 = vld [vmem:[#allocation2 + $0x2c] sm:$0xf]
    %v187 = vld [vmem:[#allocation2 + $0x54] sm:$0xf]
    %v188 = vld [vmem:[#allocation2 + $0x7c] sm:$0xf]
    %v189 = vld [vmem:[#allocation2 + $0xa4] sm:$0xf]
    %v190 = vld [vmem:[#allocation2 + $0xcc] sm:$0xf]
    %v191 = vld [vmem:[#allocation2 + $0xf4] sm:$0xf]
    %v192 = vld [vmem:[#allocation2 + $0x11c] sm:$0xf]
    %v193 = vld [vmem:[%s3 + $0x1] sm:$0x1]
    %v195 = vperm.slane %v193, 0
    %v205 = vunpack.c.l.b16 %v185
    %v206 = vunpack.c.l.b16 %v186
    %v207 = vunpack.c.l.b16 %v187
    %v208 = vunpack.c.l.b16 %v188
    %v209 = vunpack.c.l.b16 %v189
    %v210 = vunpack.c.l.b16 %v190
    %v211 = vunpack.c.l.b16 %v191
    %v212 = vunpack.c.l.b16 %v192
    %v213 = vpack.c.b16 %v206, %v205
    %v214 = vpack.c.b16 %v208, %v207
    %v215 = vpack.c.b16 %v210, %v209
    %v216 = vpack.c.b16 %v212, %v211
    %v222 = vsel %vm166, %v184, 0
    %224 = vmatpush.bf16.msra.mxu0 0
    %225 = vmatpush.bf16.msra.mxu0 0
    %226 = vmatpush.bf16.msra.mxu0 0
    %227 = vmatpush.bf16.msra.mxu0 0
    %228 = vmatpush.bf16.msra.mxu0 %v216
    %229 = vmatpush.bf16.msra.mxu0 %v215
    %230 = vmatpush.bf16.msra.mxu0 %v214
    %231 = vmatpush.bf16.msra.mxu0 %v213
    %232 = vmatmul.bf16.gmra.mxu0 %v222
    %v233 = vpop.f32.mrf.mxu0
    %v234 = vadd.f32 %v195, %v233
    %v235 = vpop.f32.mrf.mxu0
    %v236 = vadd.f32 %v195, %v235
    %237 = vdwg.mxu0
    %v238 = vpack.c.bf16 %v236, %v234
    %s239 = smul.u32 4, 4
    %s240 = smul.u32 %s239, 2
    %s241 = sshll.u32 %s240, 4
    %242 = dma.done %s56, %s241
    %v243 = vld [vmem:[#allocation3] sm:$0xf]
    %v244 = vld [vmem:[#allocation3 + $0x8] sm:$0xf]
    %v245 = vld [vmem:[#allocation3 + $0x10] sm:$0xf]
    %v246 = vld [vmem:[#allocation3 + $0x18] sm:$0xf]
    %v247 = vld [vmem:[%s3 + $0x2] sm:$0x1]
    %v249 = vperm.slane %v247, 0
    %v255 = vunpack.c.l.b16 %v243
    %v256 = vunpack.c.l.b16 %v244
    %v257 = vunpack.c.l.b16 %v245
    %v258 = vunpack.c.l.b16 %v246
    %v259 = vpack.c.b16 %v256, %v255
    %v260 = vpack.c.b16 %v258, %v257
    %vm263 = vcmask 261120
    %v265 = vsel %vm263, %v238, 0
    %267 = vmatpush.bf16.msra.mxu0 0
    %268 = vmatpush.bf16.msra.mxu0 0
    %269 = vmatpush.bf16.msra.mxu0 0
    %270 = vmatpush.bf16.msra.mxu0 0
    %271 = vmatpush.bf16.msra.mxu0 0
    %272 = vmatpush.bf16.msra.mxu0 0
    %273 = vmatpush.bf16.msra.mxu0 %v260
    %274 = vmatpush.bf16.msra.mxu0 %v259
    %275 = vmatmul.bf16.gmra.mxu0 %v265
    %v276 = vpop.f32.mrf.mxu0
    %v277 = vadd.f32 %v249, %v276
    %v278 = vpop.f32.mrf.mxu0
    %v279 = vadd.f32 %v249, %v278
    %280 = vdwg.mxu0
    %v281 = vadd.f32 %v180, %v277
    %v282 = vadd.f32 %v182, %v279
    %284 = vset.pattern.permute.xlu0 0
    %285 = vperm.xlu0 %284, %v41
    %v286 = vpop.permute.xlu0 %285
    %289 = vset.pattern.permute.xlu0 0
    %290 = vperm.xlu0 %289, %v42
    %v291 = vpop.permute.xlu0 %290
    %v293 = vmul.f32 %v281, %v286
    %v294 = vmul.f32 %v282, %v291
    %v295 = vsel %vm166, %v293, 0.0
    %v296 = vsel %vm166, %v294, 0.0
    %v297 = vadd.f32 %v295, %v296
    %v298 = vrot.slane %v297, 4
    %v299 = vadd.f32 %v297, %v298
    %v300 = vrot.slane %v299, 2
    %v301 = vadd.f32 %v299, %v300
    %v302 = vrot.slane %v301, 1
    %v303 = vadd.f32 %v301, %v302
    %v304 = vstv %s40
    %v305 = vmul.f32 %v303, %v304
    %v306 = vsub.f32 %v281, %v305
    %v307 = vsub.f32 %v282, %v305
    %v308 = vmul.f32 %v306, %v286
    %v309 = vmul.f32 %v307, %v291
    %v310 = vmul.f32 %v308, %v308
    %v311 = vmul.f32 %v309, %v309
    %v312 = vsel %vm166, %v310, 0.0
    %v313 = vsel %vm166, %v311, 0.0
    %v314 = vadd.f32 %v312, %v313
    %v315 = vrot.slane %v314, 4
    %v316 = vadd.f32 %v314, %v315
    %v317 = vrot.slane %v316, 2
    %v318 = vadd.f32 %v316, %v317
    %v319 = vrot.slane %v318, 1
    %v320 = vadd.f32 %v318, %v319
    %v321 = vmul.f32 %v320, %v304
    %v322 = vadd.f32 %v321, 1e-05
    %v323 = vrsqrt.pop %v322
    %v324 = vmul.f32 %v323, %v322
    %v325 = vmul.f32 %v324, %v323
    %v326 = vmul.f32 0.5, %v325
    %v327 = vsub.f32 1.5, %v326
    %v328 = vmul.f32 %v323, %v327
    %vm329 = vweird.f32 %v322
    %vm330 = vweird.f32 %v323
    %vm331 = vmor %vm329, %vm330
    %v332 = vsel %vm331, %v323, %v328
    %v333 = vmul.f32 %v306, %v332
    %v334 = vmul.f32 %v307, %v332
    %v335 = vld [vmem:[%s1] sm:$0xff]
    %v336 = vld [vmem:[%s1 + $0x8] sm:$0xff]
    %v337 = vld [vmem:[%s3 + $0x3] sm:$0x1]
    %339 = vset.pattern.permute.xlu0 0
    %340 = vperm.xlu0 %339, %v335
    %v341 = vpop.permute.xlu0 %340
    %344 = vset.pattern.permute.xlu0 0
    %345 = vperm.xlu0 %344, %v336
    %v346 = vpop.permute.xlu0 %345
    %v349 = vperm.slane %v337, 0
    %v351 = vadd.f32 %v341, %v349
    %v352 = vadd.f32 %v346, %v349
    %v353 = vmul.f32 %v351, %v333
    %v354 = vmul.f32 %v352, %v334
    %v355 = vld [vmem:[%s3 + $0x4] sm:$0x1]
    %v357 = vperm.slane %v355, 0
    %v359 = vadd.f32 %v341, %v357
    %v360 = vadd.f32 %v346, %v357
    %v361 = vadd.f32 %v353, %v359
    %v362 = vadd.f32 %v354, %v360
    %vm363 = vcmp.ge.f32.partialorder %v361, 0.0
    %vm364 = vcmp.ge.f32.partialorder %v362, 0.0
    %v365 = vmul.f32 %v361, 0.2
    %v366 = vmul.f32 %v362, 0.2
    %v367 = vsel %vm363, %v361, %v365
    %v368 = vsel %vm364, %v362, %v366
    %v369 = vpack.c.bf16 %v368, %v367
    %v370 = vld [vmem:[#allocation2 + $0x8] sm:$0xf]
    %v371 = vld [vmem:[#allocation2 + $0x30] sm:$0xf]
    %v372 = vld [vmem:[#allocation2 + $0x58] sm:$0xf]
    %v373 = vld [vmem:[#allocation2 + $0x80] sm:$0xf]
    %v374 = vld [vmem:[#allocation2 + $0xa8] sm:$0xf]
    %v375 = vld [vmem:[#allocation2 + $0xd0] sm:$0xf]
    %v376 = vld [vmem:[#allocation2 + $0xf8] sm:$0xf]
    %v377 = vld [vmem:[#allocation2 + $0x120] sm:$0xf]
    %v378 = vld [vmem:[%s3 + $0x5] sm:$0x1]
    %v380 = vperm.slane %v378, 0
    %v390 = vunpack.c.l.b16 %v370
    %v391 = vunpack.c.l.b16 %v371
    %v392 = vunpack.c.l.b16 %v372
    %v393 = vunpack.c.l.b16 %v373
    %v394 = vunpack.c.l.b16 %v374
    %v395 = vunpack.c.l.b16 %v375
    %v396 = vunpack.c.l.b16 %v376
    %v397 = vunpack.c.l.b16 %v377
    %v398 = vpack.c.b16 %v391, %v390
    %v399 = vpack.c.b16 %v393, %v392
    %v400 = vpack.c.b16 %v395, %v394
    %v401 = vpack.c.b16 %v397, %v396
    %v407 = vsel %vm166, %v369, 0
    %409 = vmatpush.bf16.msra.mxu0 0
    %410 = vmatpush.bf16.msra.mxu0 0
    %411 = vmatpush.bf16.msra.mxu0 0
    %412 = vmatpush.bf16.msra.mxu0 0
    %413 = vmatpush.bf16.msra.mxu0 %v401
    %414 = vmatpush.bf16.msra.mxu0 %v400
    %415 = vmatpush.bf16.msra.mxu0 %v399
    %416 = vmatpush.bf16.msra.mxu0 %v398
    %417 = vmatmul.bf16.gmra.mxu0 %v407
    %v418 = vpop.f32.mrf.mxu0
    %v419 = vadd.f32 %v380, %v418
    %v420 = vpop.f32.mrf.mxu0
    %v421 = vadd.f32 %v380, %v420
    %422 = vdwg.mxu0
    %v423 = vpack.c.bf16 %v421, %v419
    %s424 = smul.u32 4, 16
    %s425 = smul.u32 %s424, 9
    %s426 = sshll.u32 %s425, 4
    %427 = dma.done %s81, %s426
    %v428 = vld [vmem:[#allocation4] sm:$0xf]
    %v429 = vld [vmem:[#allocation4 + $0x24] sm:$0xf]
    %v430 = vld [vmem:[#allocation4 + $0x48] sm:$0xf]
    %v431 = vld [vmem:[#allocation4 + $0x6c] sm:$0xf]
    %v432 = vld [vmem:[#allocation4 + $0x90] sm:$0xf]
    %v433 = vld [vmem:[#allocation4 + $0xb4] sm:$0xf]
    %v434 = vld [vmem:[#allocation4 + $0xd8] sm:$0xf]
    %v435 = vld [vmem:[#allocation4 + $0xfc] sm:$0xf]
    %v436 = vld [vmem:[#allocation4 + $0x120] sm:$0xf]
    %v437 = vld [vmem:[#allocation4 + $0x144] sm:$0xf]
    %v438 = vld [vmem:[#allocation4 + $0x168] sm:$0xf]
    %v439 = vld [vmem:[#allocation4 + $0x18c] sm:$0xf]
    %v440 = vld [vmem:[#allocation4 + $0x1b0] sm:$0xf]
    %v441 = vld [vmem:[#allocation4 + $0x1d4] sm:$0xf]
    %v442 = vld [vmem:[#allocation4 + $0x1f8] sm:$0xf]
    %v443 = vld [vmem:[#allocation4 + $0x21c] sm:$0xf]
    %v444 = vld [vmem:[%s3 + $0x6] sm:$0x1]
    %v446 = vperm.slane %v444, 0
    %v464 = vunpack.c.l.b16 %v428
    %v465 = vunpack.c.l.b16 %v429
    %v466 = vunpack.c.l.b16 %v430
    %v467 = vunpack.c.l.b16 %v431
    %v468 = vunpack.c.l.b16 %v432
    %v469 = vunpack.c.l.b16 %v433
    %v470 = vunpack.c.l.b16 %v434
    %v471 = vunpack.c.l.b16 %v435
    %v472 = vunpack.c.l.b16 %v436
    %v473 = vunpack.c.l.b16 %v437
    %v474 = vunpack.c.l.b16 %v438
    %v475 = vunpack.c.l.b16 %v439
    %v476 = vunpack.c.l.b16 %v440
    %v477 = vunpack.c.l.b16 %v441
    %v478 = vunpack.c.l.b16 %v442
    %v479 = vunpack.c.l.b16 %v443
    %v480 = vpack.c.b16 %v465, %v464
    %v481 = vpack.c.b16 %v467, %v466
    %v482 = vpack.c.b16 %v469, %v468
    %v483 = vpack.c.b16 %v471, %v470
    %v484 = vpack.c.b16 %v473, %v472
    %v485 = vpack.c.b16 %v475, %v474
    %v486 = vpack.c.b16 %v477, %v476
    %v487 = vpack.c.b16 %v479, %v478
    %496 = vmatpush.bf16.msra.mxu0 %v487
    %497 = vmatpush.bf16.msra.mxu0 %v486
    %498 = vmatpush.bf16.msra.mxu0 %v485
    %499 = vmatpush.bf16.msra.mxu0 %v484
    %500 = vmatpush.bf16.msra.mxu0 %v483
    %501 = vmatpush.bf16.msra.mxu0 %v482
    %502 = vmatpush.bf16.msra.mxu0 %v481
    %503 = vmatpush.bf16.msra.mxu0 %v480
    %504 = vmatmul.bf16.gmra.mxu0 %v423
    %v505 = vpop.f32.mrf.mxu0
    %v506 = vadd.f32 %v446, %v505
    %v507 = vpop.f32.mrf.mxu0
    %v508 = vadd.f32 %v446, %v507
    %509 = vdwg.mxu0
    %v510 = vpack.c.bf16 %v508, %v506
    %v511 = vld [vmem:[#allocation2 + $0xc] sm:$0xf]
    %v512 = vld [vmem:[#allocation2 + $0x34] sm:$0xf]
    %v513 = vld [vmem:[#allocation2 + $0x5c] sm:$0xf]
    %v514 = vld [vmem:[#allocation2 + $0x84] sm:$0xf]
    %v515 = vld [vmem:[#allocation2 + $0xac] sm:$0xf]
    %v516 = vld [vmem:[#allocation2 + $0xd4] sm:$0xf]
    %v517 = vld [vmem:[#allocation2 + $0xfc] sm:$0xf]
    %v518 = vld [vmem:[#allocation2 + $0x124] sm:$0xf]
    %v519 = vld [vmem:[%s3 + $0x7] sm:$0x1]
    %v521 = vperm.slane %v519, 0
    %v531 = vunpack.c.l.b16 %v511
    %v532 = vunpack.c.l.b16 %v512
    %v533 = vunpack.c.l.b16 %v513
    %v534 = vunpack.c.l.b16 %v514
    %v535 = vunpack.c.l.b16 %v515
    %v536 = vunpack.c.l.b16 %v516
    %v537 = vunpack.c.l.b16 %v517
    %v538 = vunpack.c.l.b16 %v518
    %v539 = vpack.c.b16 %v532, %v531
    %v540 = vpack.c.b16 %v534, %v533
    %v541 = vpack.c.b16 %v536, %v535
    %v542 = vpack.c.b16 %v538, %v537
    %v548 = vsel %vm166, %v510, 0
    %550 = vmatpush.bf16.msra.mxu0 0
    %551 = vmatpush.bf16.msra.mxu0 0
    %552 = vmatpush.bf16.msra.mxu0 0
    %553 = vmatpush.bf16.msra.mxu0 0
    %554 = vmatpush.bf16.msra.mxu0 %v542
    %555 = vmatpush.bf16.msra.mxu0 %v541
    %556 = vmatpush.bf16.msra.mxu0 %v540
    %557 = vmatpush.bf16.msra.mxu0 %v539
    %558 = vmatmul.bf16.gmra.mxu0 %v548
    %v559 = vpop.f32.mrf.mxu0
    %v560 = vadd.f32 %v521, %v559
    %v561 = vpop.f32.mrf.mxu0
    %v562 = vadd.f32 %v521, %v561
    %563 = vdwg.mxu0
    %v564 = vadd.f32 %v419, %v560
    %v565 = vadd.f32 %v421, %v562
    %v566 = vmul.f32 %v564, %v286
    %v567 = vmul.f32 %v565, %v291
    %v568 = vadd.f32 %v566, %v567
    %v569 = vrot.slane %v568, 4
    %v570 = vadd.f32 %v568, %v569
    %v571 = vrot.slane %v570, 2
    %v572 = vadd.f32 %v570, %v571
    %v573 = vrot.slane %v572, 1
    %v574 = vadd.f32 %v572, %v573
    %v575 = vmul.f32 %v574, %v304
    %v576 = vsub.f32 %v564, %v575
    %v577 = vsub.f32 %v565, %v575
    %v578 = vmul.f32 %v576, %v286
    %v579 = vmul.f32 %v577, %v291
    %v580 = vmul.f32 %v578, %v578
    %v581 = vmul.f32 %v579, %v579
    %v582 = vadd.f32 %v580, %v581
    %v583 = vrot.slane %v582, 4
    %v584 = vadd.f32 %v582, %v583
    %v585 = vrot.slane %v584, 2
    %v586 = vadd.f32 %v584, %v585
    %v587 = vrot.slane %v586, 1
    %v588 = vadd.f32 %v586, %v587
    %v589 = vmul.f32 %v588, %v304
    %v590 = vadd.f32 %v589, 1e-05
    %v591 = vrsqrt.pop %v590
    %v592 = vmul.f32 %v591, %v590
    %v593 = vmul.f32 %v592, %v591
    %v594 = vmul.f32 0.5, %v593
    %v595 = vsub.f32 1.5, %v594
    %v596 = vmul.f32 %v591, %v595
    %vm597 = vweird.f32 %v590
    %vm598 = vweird.f32 %v591
    %vm599 = vmor %vm597, %vm598
    %v600 = vsel %vm599, %v591, %v596
    %v601 = vmul.f32 %v576, %v600
    %v602 = vmul.f32 %v577, %v600
    %v603 = vld [vmem:[%s1] sm:$0xff]
    %v604 = vld [vmem:[%s1 + $0x8] sm:$0xff]
    %v605 = vld [vmem:[%s3 + $0x8] sm:$0x1]
    %607 = vset.pattern.permute.xlu0 1
    %608 = vperm.xlu0 %607, %v603
    %v609 = vpop.permute.xlu0 %608
    %612 = vset.pattern.permute.xlu0 1
    %613 = vperm.xlu0 %612, %v604
    %v614 = vpop.permute.xlu0 %613
    %v617 = vperm.slane %v605, 0
    %v619 = vadd.f32 %v609, %v617
    %v620 = vadd.f32 %v614, %v617
    %v621 = vmul.f32 %v619, %v601
    %v622 = vmul.f32 %v620, %v602
    %v623 = vld [vmem:[%s3 + $0x9] sm:$0x1]
    %v625 = vperm.slane %v623, 0
    %v627 = vadd.f32 %v609, %v625
    %v628 = vadd.f32 %v614, %v625
    %v629 = vadd.f32 %v621, %v627
    %v630 = vadd.f32 %v622, %v628
    %vm631 = vcmp.ge.f32.partialorder %v629, 0.0
    %vm632 = vcmp.ge.f32.partialorder %v630, 0.0
    %v633 = vmul.f32 %v629, 0.2
    %v634 = vmul.f32 %v630, 0.2
    %v635 = vsel %vm631, %v629, %v633
    %v636 = vsel %vm632, %v630, %v634
    %v637 = vpack.c.bf16 %v636, %v635
    %v638 = vld [vmem:[#allocation4 + $0x4] sm:$0xff]
    %v639 = vld [vmem:[#allocation4 + $0x28] sm:$0xff]
    %v640 = vld [vmem:[#allocation4 + $0x4c] sm:$0xff]
    %v641 = vld [vmem:[#allocation4 + $0x70] sm:$0xff]
    %v642 = vld [vmem:[#allocation4 + $0x94] sm:$0xff]
    %v643 = vld [vmem:[#allocation4 + $0xb8] sm:$0xff]
    %v644 = vld [vmem:[#allocation4 + $0xdc] sm:$0xff]
    %v645 = vld [vmem:[#allocation4 + $0x100] sm:$0xff]
    %v646 = vld [vmem:[#allocation4 + $0x124] sm:$0xff]
    %v647 = vld [vmem:[#allocation4 + $0x148] sm:$0xff]
    %v648 = vld [vmem:[#allocation4 + $0x16c] sm:$0xff]
    %v649 = vld [vmem:[#allocation4 + $0x190] sm:$0xff]
    %v650 = vld [vmem:[#allocation4 + $0x1b4] sm:$0xff]
    %v651 = vld [vmem:[#allocation4 + $0x1d8] sm:$0xff]
    %v652 = vld [vmem:[#allocation4 + $0x1fc] sm:$0xff]
    %v653 = vld [vmem:[#allocation4 + $0x220] sm:$0xff]
    %v654 = vld [vmem:[%s3 + $0xa] sm:$0x3]
    %v656 = vperm.slane %v654, 0
    %v657 = vperm.slane %v654, 1
    %v676 = vunpack.c.l.b16 %v638
    %v677 = vunpack.c.h.b16 %v638
    %v678 = vunpack.c.l.b16 %v639
    %v679 = vunpack.c.h.b16 %v639
    %v680 = vunpack.c.l.b16 %v640
    %v681 = vunpack.c.h.b16 %v640
    %v682 = vunpack.c.l.b16 %v641
    %v683 = vunpack.c.h.b16 %v641
    %v684 = vunpack.c.l.b16 %v642
    %v685 = vunpack.c.h.b16 %v642
    %v686 = vunpack.c.l.b16 %v643
    %v687 = vunpack.c.h.b16 %v643
    %v688 = vunpack.c.l.b16 %v644
    %v689 = vunpack.c.h.b16 %v644
    %v690 = vunpack.c.l.b16 %v645
    %v691 = vunpack.c.h.b16 %v645
    %v692 = vunpack.c.l.b16 %v646
    %v693 = vunpack.c.h.b16 %v646
    %v694 = vunpack.c.l.b16 %v647
    %v695 = vunpack.c.h.b16 %v647
    %v696 = vunpack.c.l.b16 %v648
    %v697 = vunpack.c.h.b16 %v648
    %v698 = vunpack.c.l.b16 %v649
    %v699 = vunpack.c.h.b16 %v649
    %v700 = vunpack.c.l.b16 %v650
    %v701 = vunpack.c.h.b16 %v650
    %v702 = vunpack.c.l.b16 %v651
    %v703 = vunpack.c.h.b16 %v651
    %v704 = vunpack.c.l.b16 %v652
    %v705 = vunpack.c.h.b16 %v652
    %v706 = vunpack.c.l.b16 %v653
    %v707 = vunpack.c.h.b16 %v653
    %v708 = vpack.c.b16 %v678, %v676
    %v709 = vpack.c.b16 %v679, %v677
    %v710 = vpack.c.b16 %v682, %v680
    %v711 = vpack.c.b16 %v683, %v681
    %v712 = vpack.c.b16 %v686, %v684
    %v713 = vpack.c.b16 %v687, %v685
    %v714 = vpack.c.b16 %v690, %v688
    %v715 = vpack.c.b16 %v691, %v689
    %v716 = vpack.c.b16 %v694, %v692
    %v717 = vpack.c.b16 %v695, %v693
    %v718 = vpack.c.b16 %v698, %v696
    %v719 = vpack.c.b16 %v699, %v697
    %v720 = vpack.c.b16 %v702, %v700
    %v721 = vpack.c.b16 %v703, %v701
    %v722 = vpack.c.b16 %v706, %v704
    %v723 = vpack.c.b16 %v707, %v705
    %740 = vmatpush.bf16.msra.mxu0 %v722
    %741 = vmatpush.bf16.msra.mxu0 %v720
    %742 = vmatpush.bf16.msra.mxu0 %v718
    %743 = vmatpush.bf16.msra.mxu0 %v716
    %744 = vmatpush.bf16.msra.mxu0 %v714
    %745 = vmatpush.bf16.msra.mxu0 %v712
    %746 = vmatpush.bf16.msra.mxu0 %v710
    %747 = vmatpush.bf16.msra.mxu0 %v708
    %748 = vmatmul.bf16.gmra.mxu0 %v637
    %v749 = vpop.f32.mrf.mxu0
    %v750 = vadd.f32 %v656, %v749
    %v751 = vpop.f32.mrf.mxu0
    %v752 = vadd.f32 %v656, %v751
    %753 = vdwg.mxu0
    %754 = vmatpush.bf16.msra.mxu0 %v723
    %755 = vmatpush.bf16.msra.mxu0 %v721
    %756 = vmatpush.bf16.msra.mxu0 %v719
    %757 = vmatpush.bf16.msra.mxu0 %v717
    %758 = vmatpush.bf16.msra.mxu0 %v715
    %759 = vmatpush.bf16.msra.mxu0 %v713
    %760 = vmatpush.bf16.msra.mxu0 %v711
    %761 = vmatpush.bf16.msra.mxu0 %v709
    %762 = vmatmul.bf16.gmra.mxu0 %v637
    %v763 = vpop.f32.mrf.mxu0
    %v764 = vadd.f32 %v657, %v763
    %v765 = vpop.f32.mrf.mxu0
    %v766 = vadd.f32 %v657, %v765
    %767 = vdwg.mxu0
    %v768 = vpack.c.bf16 %v752, %v750
    %v769 = vpack.c.bf16 %v766, %v764
    %s770 = smul.u32 4, 32
    %s771 = smul.u32 %s770, 11
    %s772 = sshll.u32 %s771, 4
    %773 = dma.done %s95, %s772
    %v774 = vld [vmem:[#allocation5] sm:$0xf]
    %v775 = vld [vmem:[#allocation5 + $0x2c] sm:$0xf]
    %v776 = vld [vmem:[#allocation5 + $0x58] sm:$0xf]
    %v777 = vld [vmem:[#allocation5 + $0x84] sm:$0xf]
    %v778 = vld [vmem:[#allocation5 + $0xb0] sm:$0xf]
    %v779 = vld [vmem:[#allocation5 + $0xdc] sm:$0xf]
    %v780 = vld [vmem:[#allocation5 + $0x108] sm:$0xf]
    %v781 = vld [vmem:[#allocation5 + $0x134] sm:$0xf]
    %v782 = vld [vmem:[#allocation5 + $0x160] sm:$0xf]
    %v783 = vld [vmem:[#allocation5 + $0x18c] sm:$0xf]
    %v784 = vld [vmem:[#allocation5 + $0x1b8] sm:$0xf]
    %v785 = vld [vmem:[#allocation5 + $0x1e4] sm:$0xf]
    %v786 = vld [vmem:[#allocation5 + $0x210] sm:$0xf]
    %v787 = vld [vmem:[#allocation5 + $0x23c] sm:$0xf]
    %v788 = vld [vmem:[#allocation5 + $0x268] sm:$0xf]
    %v789 = vld [vmem:[#allocation5 + $0x294] sm:$0xf]
    %v790 = vld [vmem:[#allocation5 + $0x2c0] sm:$0xf]
    %v791 = vld [vmem:[#allocation5 + $0x2ec] sm:$0xf]
    %v792 = vld [vmem:[#allocation5 + $0x318] sm:$0xf]
    %v793 = vld [vmem:[#allocation5 + $0x344] sm:$0xf]
    %v794 = vld [vmem:[#allocation5 + $0x370] sm:$0xf]
    %v795 = vld [vmem:[#allocation5 + $0x39c] sm:$0xf]
    %v796 = vld [vmem:[#allocation5 + $0x3c8] sm:$0xf]
    %v797 = vld [vmem:[#allocation5 + $0x3f4] sm:$0xf]
    %v798 = vld [vmem:[#allocation5 + $0x420] sm:$0xf]
    %v799 = vld [vmem:[#allocation5 + $0x44c] sm:$0xf]
    %v800 = vld [vmem:[#allocation5 + $0x478] sm:$0xf]
    %v801 = vld [vmem:[#allocation5 + $0x4a4] sm:$0xf]
    %v802 = vld [vmem:[#allocation5 + $0x4d0] sm:$0xf]
    %v803 = vld [vmem:[#allocation5 + $0x4fc] sm:$0xf]
    %v804 = vld [vmem:[#allocation5 + $0x528] sm:$0xf]
    %v805 = vld [vmem:[#allocation5 + $0x554] sm:$0xf]
    %v806 = vld [vmem:[%s3 + $0xc] sm:$0x1]
    %v808 = vperm.slane %v806, 0
    %v842 = vunpack.c.l.b16 %v774
    %v843 = vunpack.c.l.b16 %v775
    %v844 = vunpack.c.l.b16 %v776
    %v845 = vunpack.c.l.b16 %v777
    %v846 = vunpack.c.l.b16 %v778
    %v847 = vunpack.c.l.b16 %v779
    %v848 = vunpack.c.l.b16 %v780
    %v849 = vunpack.c.l.b16 %v781
    %v850 = vunpack.c.l.b16 %v782
    %v851 = vunpack.c.l.b16 %v783
    %v852 = vunpack.c.l.b16 %v784
    %v853 = vunpack.c.l.b16 %v785
    %v854 = vunpack.c.l.b16 %v786
    %v855 = vunpack.c.l.b16 %v787
    %v856 = vunpack.c.l.b16 %v788
    %v857 = vunpack.c.l.b16 %v789
    %v858 = vunpack.c.l.b16 %v790
    %v859 = vunpack.c.l.b16 %v791
    %v860 = vunpack.c.l.b16 %v792
    %v861 = vunpack.c.l.b16 %v793
    %v862 = vunpack.c.l.b16 %v794
    %v863 = vunpack.c.l.b16 %v795
    %v864 = vunpack.c.l.b16 %v796
    %v865 = vunpack.c.l.b16 %v797
    %v866 = vunpack.c.l.b16 %v798
    %v867 = vunpack.c.l.b16 %v799
    %v868 = vunpack.c.l.b16 %v800
    %v869 = vunpack.c.l.b16 %v801
    %v870 = vunpack.c.l.b16 %v802
    %v871 = vunpack.c.l.b16 %v803
    %v872 = vunpack.c.l.b16 %v804
    %v873 = vunpack.c.l.b16 %v805
    %v874 = vpack.c.b16 %v843, %v842
    %v875 = vpack.c.b16 %v845, %v844
    %v876 = vpack.c.b16 %v847, %v846
    %v877 = vpack.c.b16 %v849, %v848
    %v878 = vpack.c.b16 %v851, %v850
    %v879 = vpack.c.b16 %v853, %v852
    %v880 = vpack.c.b16 %v855, %v854
    %v881 = vpack.c.b16 %v857, %v856
    %v882 = vpack.c.b16 %v859, %v858
    %v883 = vpack.c.b16 %v861, %v860
    %v884 = vpack.c.b16 %v863, %v862
    %v885 = vpack.c.b16 %v865, %v864
    %v886 = vpack.c.b16 %v867, %v866
    %v887 = vpack.c.b16 %v869, %v868
    %v888 = vpack.c.b16 %v871, %v870
    %v889 = vpack.c.b16 %v873, %v872
    %906 = vmatpush.bf16.msra.mxu0 %v881
    %907 = vmatpush.bf16.msra.mxu0 %v880
    %908 = vmatpush.bf16.msra.mxu0 %v879
    %909 = vmatpush.bf16.msra.mxu0 %v878
    %910 = vmatpush.bf16.msra.mxu0 %v877
    %911 = vmatpush.bf16.msra.mxu0 %v876
    %912 = vmatpush.bf16.msra.mxu0 %v875
    %913 = vmatpush.bf16.msra.mxu0 %v874
    %914 = vmatmul.bf16.gmra.mxu0 %v768
    %v915 = vpop.f32.mrf.mxu0
    %v916 = vadd.f32 %v808, %v915
    %v917 = vpop.f32.mrf.mxu0
    %v918 = vadd.f32 %v808, %v917
    %919 = vdwg.mxu0
    %920 = vmatpush.bf16.msra.mxu0 %v889
    %921 = vmatpush.bf16.msra.mxu0 %v888
    %922 = vmatpush.bf16.msra.mxu0 %v887
    %923 = vmatpush.bf16.msra.mxu0 %v886
    %924 = vmatpush.bf16.msra.mxu0 %v885
    %925 = vmatpush.bf16.msra.mxu0 %v884
    %926 = vmatpush.bf16.msra.mxu0 %v883
    %927 = vmatpush.bf16.msra.mxu0 %v882
    %928 = vmatmul.bf16.gmra.mxu0 %v769
    %v929 = vpop.f32.mrf.mxu0
    %v930 = vadd.f32 %v916, %v929
    %v931 = vpop.f32.mrf.mxu0
    %v932 = vadd.f32 %v918, %v931
    %933 = vdwg.mxu0
    %v934 = vpack.c.bf16 %v932, %v930
    %v935 = vld [vmem:[#allocation4 + $0xc] sm:$0xff]
    %v936 = vld [vmem:[#allocation4 + $0x30] sm:$0xff]
    %v937 = vld [vmem:[#allocation4 + $0x54] sm:$0xff]
    %v938 = vld [vmem:[#allocation4 + $0x78] sm:$0xff]
    %v939 = vld [vmem:[#allocation4 + $0x9c] sm:$0xff]
    %v940 = vld [vmem:[#allocation4 + $0xc0] sm:$0xff]
    %v941 = vld [vmem:[#allocation4 + $0xe4] sm:$0xff]
    %v942 = vld [vmem:[#allocation4 + $0x108] sm:$0xff]
    %v943 = vld [vmem:[#allocation4 + $0x12c] sm:$0xff]
    %v944 = vld [vmem:[#allocation4 + $0x150] sm:$0xff]
    %v945 = vld [vmem:[#allocation4 + $0x174] sm:$0xff]
    %v946 = vld [vmem:[#allocation4 + $0x198] sm:$0xff]
    %v947 = vld [vmem:[#allocation4 + $0x1bc] sm:$0xff]
    %v948 = vld [vmem:[#allocation4 + $0x1e0] sm:$0xff]
    %v949 = vld [vmem:[#allocation4 + $0x204] sm:$0xff]
    %v950 = vld [vmem:[#allocation4 + $0x228] sm:$0xff]
    %v951 = vld [vmem:[%s3 + $0xd] sm:$0x3]
    %v953 = vperm.slane %v951, 0
    %v954 = vperm.slane %v951, 1
    %v973 = vunpack.c.l.b16 %v935
    %v974 = vunpack.c.h.b16 %v935
    %v975 = vunpack.c.l.b16 %v936
    %v976 = vunpack.c.h.b16 %v936
    %v977 = vunpack.c.l.b16 %v937
    %v978 = vunpack.c.h.b16 %v937
    %v979 = vunpack.c.l.b16 %v938
    %v980 = vunpack.c.h.b16 %v938
    %v981 = vunpack.c.l.b16 %v939
    %v982 = vunpack.c.h.b16 %v939
    %v983 = vunpack.c.l.b16 %v940
    %v984 = vunpack.c.h.b16 %v940
    %v985 = vunpack.c.l.b16 %v941
    %v986 = vunpack.c.h.b16 %v941
    %v987 = vunpack.c.l.b16 %v942
    %v988 = vunpack.c.h.b16 %v942
    %v989 = vunpack.c.l.b16 %v943
    %v990 = vunpack.c.h.b16 %v943
    %v991 = vunpack.c.l.b16 %v944
    %v992 = vunpack.c.h.b16 %v944
    %v993 = vunpack.c.l.b16 %v945
    %v994 = vunpack.c.h.b16 %v945
    %v995 = vunpack.c.l.b16 %v946
    %v996 = vunpack.c.h.b16 %v946
    %v997 = vunpack.c.l.b16 %v947
    %v998 = vunpack.c.h.b16 %v947
    %v999 = vunpack.c.l.b16 %v948
    %v1000 = vunpack.c.h.b16 %v948
    %v1001 = vunpack.c.l.b16 %v949
    %v1002 = vunpack.c.h.b16 %v949
    %v1003 = vunpack.c.l.b16 %v950
    %v1004 = vunpack.c.h.b16 %v950
    %v1005 = vpack.c.b16 %v975, %v973
    %v1006 = vpack.c.b16 %v976, %v974
    %v1007 = vpack.c.b16 %v979, %v977
    %v1008 = vpack.c.b16 %v980, %v978
    %v1009 = vpack.c.b16 %v983, %v981
    %v1010 = vpack.c.b16 %v984, %v982
    %v1011 = vpack.c.b16 %v987, %v985
    %v1012 = vpack.c.b16 %v988, %v986
    %v1013 = vpack.c.b16 %v991, %v989
    %v1014 = vpack.c.b16 %v992, %v990
    %v1015 = vpack.c.b16 %v995, %v993
    %v1016 = vpack.c.b16 %v996, %v994
    %v1017 = vpack.c.b16 %v999, %v997
    %v1018 = vpack.c.b16 %v1000, %v998
    %v1019 = vpack.c.b16 %v1003, %v1001
    %v1020 = vpack.c.b16 %v1004, %v1002
    %1037 = vmatpush.bf16.msra.mxu0 %v1019
    %1038 = vmatpush.bf16.msra.mxu0 %v1017
    %1039 = vmatpush.bf16.msra.mxu0 %v1015
    %1040 = vmatpush.bf16.msra.mxu0 %v1013
    %1041 = vmatpush.bf16.msra.mxu0 %v1011
    %1042 = vmatpush.bf16.msra.mxu0 %v1009
    %1043 = vmatpush.bf16.msra.mxu0 %v1007
    %1044 = vmatpush.bf16.msra.mxu0 %v1005
    %1045 = vmatmul.bf16.gmra.mxu0 %v934
    %v1046 = vpop.f32.mrf.mxu0
    %v1047 = vadd.f32 %v953, %v1046
    %v1048 = vpop.f32.mrf.mxu0
    %v1049 = vadd.f32 %v953, %v1048
    %1050 = vdwg.mxu0
    %1051 = vmatpush.bf16.msra.mxu0 %v1020
    %1052 = vmatpush.bf16.msra.mxu0 %v1018
    %1053 = vmatpush.bf16.msra.mxu0 %v1016
    %1054 = vmatpush.bf16.msra.mxu0 %v1014
    %1055 = vmatpush.bf16.msra.mxu0 %v1012
    %1056 = vmatpush.bf16.msra.mxu0 %v1010
    %1057 = vmatpush.bf16.msra.mxu0 %v1008
    %1058 = vmatpush.bf16.msra.mxu0 %v1006
    %1059 = vmatmul.bf16.gmra.mxu0 %v934
    %v1060 = vpop.f32.mrf.mxu0
    %v1061 = vadd.f32 %v954, %v1060
    %v1062 = vpop.f32.mrf.mxu0
    %v1063 = vadd.f32 %v954, %v1062
    %1064 = vdwg.mxu0
    %v1065 = vadd.f32 %v750, %v1047
    %v1066 = vadd.f32 %v764, %v1061
    %v1067 = vadd.f32 %v752, %v1049
    %v1068 = vadd.f32 %v766, %v1063
    %v1069 = vmul.f32 %v1065, %v286
    %v1070 = vmul.f32 %v1066, %v286
    %v1071 = vmul.f32 %v1067, %v291
    %v1072 = vmul.f32 %v1068, %v291
    %v1073 = vadd.f32 %v1069, %v1071
    %v1074 = vrot.slane %v1073, 4
    %v1075 = vadd.f32 %v1073, %v1074
    %v1076 = vrot.slane %v1075, 2
    %v1077 = vadd.f32 %v1075, %v1076
    %v1078 = vrot.slane %v1077, 1
    %v1079 = vadd.f32 %v1077, %v1078
    %v1080 = vadd.f32 %v1070, %v1072
    %v1081 = vrot.slane %v1080, 4
    %v1082 = vadd.f32 %v1080, %v1081
    %v1083 = vrot.slane %v1082, 2
    %v1084 = vadd.f32 %v1082, %v1083
    %v1085 = vrot.slane %v1084, 1
    %v1086 = vadd.f32 %v1084, %v1085
    %v1087 = vmul.f32 %v1079, %v304
    %v1088 = vmul.f32 %v1086, %v304
    %v1089 = vsub.f32 %v1065, %v1087
    %v1090 = vsub.f32 %v1066, %v1088
    %v1091 = vsub.f32 %v1067, %v1087
    %v1092 = vsub.f32 %v1068, %v1088
    %v1093 = vmul.f32 %v1089, %v286
    %v1094 = vmul.f32 %v1090, %v286
    %v1095 = vmul.f32 %v1091, %v291
    %v1096 = vmul.f32 %v1092, %v291
    %v1097 = vmul.f32 %v1093, %v1093
    %v1098 = vmul.f32 %v1094, %v1094
    %v1099 = vmul.f32 %v1095, %v1095
    %v1100 = vmul.f32 %v1096, %v1096
    %v1101 = vadd.f32 %v1097, %v1099
    %v1102 = vrot.slane %v1101, 4
    %v1103 = vadd.f32 %v1101, %v1102
    %v1104 = vrot.slane %v1103, 2
    %v1105 = vadd.f32 %v1103, %v1104
    %v1106 = vrot.slane %v1105, 1
    %v1107 = vadd.f32 %v1105, %v1106
    %v1108 = vadd.f32 %v1098, %v1100
    %v1109 = vrot.slane %v1108, 4
    %v1110 = vadd.f32 %v1108, %v1109
    %v1111 = vrot.slane %v1110, 2
    %v1112 = vadd.f32 %v1110, %v1111
    %v1113 = vrot.slane %v1112, 1
    %v1114 = vadd.f32 %v1112, %v1113
    %v1115 = vmul.f32 %v1107, %v304
    %v1116 = vmul.f32 %v1114, %v304
    %v1117 = vadd.f32 %v1115, 1e-05
    %v1118 = vadd.f32 %v1116, 1e-05
    %v1119 = vrsqrt.pop %v1117
    %v1120 = vmul.f32 %v1119, %v1117
    %v1121 = vmul.f32 %v1120, %v1119
    %v1122 = vmul.f32 0.5, %v1121
    %v1123 = vsub.f32 1.5, %v1122
    %v1124 = vmul.f32 %v1119, %v1123
    %vm1125 = vweird.f32 %v1117
    %vm1126 = vweird.f32 %v1119
    %vm1127 = vmor %vm1125, %vm1126
    %v1128 = vsel %vm1127, %v1119, %v1124
    %v1129 = vrsqrt.pop %v1118
    %v1130 = vmul.f32 %v1129, %v1118
    %v1131 = vmul.f32 %v1130, %v1129
    %v1132 = vmul.f32 0.5, %v1131
    %v1133 = vsub.f32 1.5, %v1132
    %v1134 = vmul.f32 %v1129, %v1133
    %vm1135 = vweird.f32 %v1118
    %vm1136 = vweird.f32 %v1129
    %vm1137 = vmor %vm1135, %vm1136
    %v1138 = vsel %vm1137, %v1129, %v1134
    %v1139 = vmul.f32 %v1089, %v1128
    %v1140 = vmul.f32 %v1090, %v1138
    %v1141 = vmul.f32 %v1091, %v1128
    %v1142 = vmul.f32 %v1092, %v1138
    %v1143 = vld [vmem:[%s1] sm:$0xff]
    %v1144 = vld [vmem:[%s1 + $0x8] sm:$0xff]
    %v1145 = vld [vmem:[%s3 + $0xf] sm:$0x3]
    %1147 = vset.pattern.permute.xlu0 2
    %1148 = vperm.xlu0 %1147, %v1143
    %v1149 = vpop.permute.xlu0 %1148
    %1152 = vset.pattern.permute.xlu0 2
    %1153 = vperm.xlu0 %1152, %v1144
    %v1154 = vpop.permute.xlu0 %1153
    %v1157 = vperm.slane %v1145, 0
    %v1158 = vperm.slane %v1145, 1
    %v1161 = vadd.f32 %v1149, %v1157
    %v1162 = vadd.f32 %v1149, %v1158
    %v1163 = vadd.f32 %v1154, %v1157
    %v1164 = vadd.f32 %v1154, %v1158
    %v1165 = vmul.f32 %v1161, %v1139
    %v1166 = vmul.f32 %v1162, %v1140
    %v1167 = vmul.f32 %v1163, %v1141
    %v1168 = vmul.f32 %v1164, %v1142
    %v1169 = vld [vmem:[%s3 + $0x11] sm:$0x3]
    %v1171 = vperm.slane %v1169, 0
    %v1172 = vperm.slane %v1169, 1
    %v1175 = vadd.f32 %v1149, %v1171
    %v1176 = vadd.f32 %v1149, %v1172
    %v1177 = vadd.f32 %v1154, %v1171
    %v1178 = vadd.f32 %v1154, %v1172
    %v1179 = vadd.f32 %v1165, %v1175
    %v1180 = vadd.f32 %v1166, %v1176
    %v1181 = vadd.f32 %v1167, %v1177
    %v1182 = vadd.f32 %v1168, %v1178
    %vm1183 = vcmp.ge.f32.partialorder %v1179, 0.0
    %vm1184 = vcmp.ge.f32.partialorder %v1180, 0.0
    %vm1185 = vcmp.ge.f32.partialorder %v1181, 0.0
    %vm1186 = vcmp.ge.f32.partialorder %v1182, 0.0
    %v1187 = vmul.f32 %v1179, 0.2
    %v1188 = vmul.f32 %v1180, 0.2
    %v1189 = vmul.f32 %v1181, 0.2
    %v1190 = vmul.f32 %v1182, 0.2
    %v1191 = vsel %vm1183, %v1179, %v1187
    %v1192 = vsel %vm1184, %v1180, %v1188
    %v1193 = vsel %vm1185, %v1181, %v1189
    %v1194 = vsel %vm1186, %v1182, %v1190
    %v1195 = vpack.c.bf16 %v1193, %v1191
    %v1196 = vpack.c.bf16 %v1194, %v1192
    %v1197 = vld [vmem:[#allocation5 + $0x4] sm:$0xff]
    %v1198 = vld [vmem:[#allocation5 + $0xc] sm:$0xff]
    %v1199 = vld [vmem:[#allocation5 + $0x30] sm:$0xff]
    %v1200 = vld [vmem:[#allocation5 + $0x38] sm:$0xff]
    %v1201 = vld [vmem:[#allocation5 + $0x5c] sm:$0xff]
    %v1202 = vld [vmem:[#allocation5 + $0x64] sm:$0xff]
    %v1203 = vld [vmem:[#allocation5 + $0x88] sm:$0xff]
    %v1204 = vld [vmem:[#allocation5 + $0x90] sm:$0xff]
    %v1205 = vld [vmem:[#allocation5 + $0xb4] sm:$0xff]
    %v1206 = vld [vmem:[#allocation5 + $0xbc] sm:$0xff]
    %v1207 = vld [vmem:[#allocation5 + $0xe0] sm:$0xff]
    %v1208 = vld [vmem:[#allocation5 + $0xe8] sm:$0xff]
    %v1209 = vld [vmem:[#allocation5 + $0x10c] sm:$0xff]
    %v1210 = vld [vmem:[#allocation5 + $0x114] sm:$0xff]
    %v1211 = vld [vmem:[#allocation5 + $0x138] sm:$0xff]
    %v1212 = vld [vmem:[#allocation5 + $0x140] sm:$0xff]
    %v1213 = vld [vmem:[#allocation5 + $0x164] sm:$0xff]
    %v1214 = vld [vmem:[#allocation5 + $0x16c] sm:$0xff]
    %v1215 = vld [vmem:[#allocation5 + $0x190] sm:$0xff]
    %v1216 = vld [vmem:[#allocation5 + $0x198] sm:$0xff]
    %v1217 = vld [vmem:[#allocation5 + $0x1bc] sm:$0xff]
    %v1218 = vld [vmem:[#allocation5 + $0x1c4] sm:$0xff]
    %v1219 = vld [vmem:[#allocation5 + $0x1e8] sm:$0xff]
    %v1220 = vld [vmem:[#allocation5 + $0x1f0] sm:$0xff]
    %v1221 = vld [vmem:[#allocation5 + $0x214] sm:$0xff]
    %v1222 = vld [vmem:[#allocation5 + $0x21c] sm:$0xff]
    %v1223 = vld [vmem:[#allocation5 + $0x240] sm:$0xff]
    %v1224 = vld [vmem:[#allocation5 + $0x248] sm:$0xff]
    %v1225 = vld [vmem:[#allocation5 + $0x26c] sm:$0xff]
    %v1226 = vld [vmem:[#allocation5 + $0x274] sm:$0xff]
    %v1227 = vld [vmem:[#allocation5 + $0x298] sm:$0xff]
    %v1228 = vld [vmem:[#allocation5 + $0x2a0] sm:$0xff]
    %v1229 = vld [vmem:[#allocation5 + $0x2c4] sm:$0xff]
    %v1230 = vld [vmem:[#allocation5 + $0x2cc] sm:$0xff]
    %v1231 = vld [vmem:[#allocation5 + $0x2f0] sm:$0xff]
    %v1232 = vld [vmem:[#allocation5 + $0x2f8] sm:$0xff]
    %v1233 = vld [vmem:[#allocation5 + $0x31c] sm:$0xff]
    %v1234 = vld [vmem:[#allocation5 + $0x324] sm:$0xff]
    %v1235 = vld [vmem:[#allocation5 + $0x348] sm:$0xff]
    %v1236 = vld [vmem:[#allocation5 + $0x350] sm:$0xff]
    %v1237 = vld [vmem:[#allocation5 + $0x374] sm:$0xff]
    %v1238 = vld [vmem:[#allocation5 + $0x37c] sm:$0xff]
    %v1239 = vld [vmem:[#allocation5 + $0x3a0] sm:$0xff]
    %v1240 = vld [vmem:[#allocation5 + $0x3a8] sm:$0xff]
    %v1241 = vld [vmem:[#allocation5 + $0x3cc] sm:$0xff]
    %v1242 = vld [vmem:[#allocation5 + $0x3d4] sm:$0xff]
    %v1243 = vld [vmem:[#allocation5 + $0x3f8] sm:$0xff]
    %v1244 = vld [vmem:[#allocation5 + $0x400] sm:$0xff]
    %v1245 = vld [vmem:[#allocation5 + $0x424] sm:$0xff]
    %v1246 = vld [vmem:[#allocation5 + $0x42c] sm:$0xff]
    %v1247 = vld [vmem:[#allocation5 + $0x450] sm:$0xff]
    %v1248 = vld [vmem:[#allocation5 + $0x458] sm:$0xff]
    %v1249 = vld [vmem:[#allocation5 + $0x47c] sm:$0xff]
    %v1250 = vld [vmem:[#allocation5 + $0x484] sm:$0xff]
    %v1251 = vld [vmem:[#allocation5 + $0x4a8] sm:$0xff]
    %v1252 = vld [vmem:[#allocation5 + $0x4b0] sm:$0xff]
    %v1253 = vld [vmem:[#allocation5 + $0x4d4] sm:$0xff]
    %v1254 = vld [vmem:[#allocation5 + $0x4dc] sm:$0xff]
    %v1255 = vld [vmem:[#allocation5 + $0x500] sm:$0xff]
    %v1256 = vld [vmem:[#allocation5 + $0x508] sm:$0xff]
    %v1257 = vld [vmem:[#allocation5 + $0x52c] sm:$0xff]
    %v1258 = vld [vmem:[#allocation5 + $0x534] sm:$0xff]
    %v1259 = vld [vmem:[#allocation5 + $0x558] sm:$0xff]
    %v1260 = vld [vmem:[#allocation5 + $0x560] sm:$0xff]
    %v1261 = vld [vmem:[%s3 + $0x13] sm:$0xf]
    %v1263 = vperm.slane %v1261, 0
    %v1264 = vperm.slane %v1261, 1
    %v1265 = vperm.slane %v1261, 2
    %v1266 = vperm.slane %v1261, 3
    %v1335 = vunpack.c.l.b16 %v1197
    %v1336 = vunpack.c.h.b16 %v1197
    %v1337 = vunpack.c.l.b16 %v1198
    %v1338 = vunpack.c.h.b16 %v1198
    %v1339 = vunpack.c.l.b16 %v1199
    %v1340 = vunpack.c.h.b16 %v1199
    %v1341 = vunpack.c.l.b16 %v1200
    %v1342 = vunpack.c.h.b16 %v1200
    %v1343 = vunpack.c.l.b16 %v1201
    %v1344 = vunpack.c.h.b16 %v1201
    %v1345 = vunpack.c.l.b16 %v1202
    %v1346 = vunpack.c.h.b16 %v1202
    %v1347 = vunpack.c.l.b16 %v1203
    %v1348 = vunpack.c.h.b16 %v1203
    %v1349 = vunpack.c.l.b16 %v1204
    %v1350 = vunpack.c.h.b16 %v1204
    %v1351 = vunpack.c.l.b16 %v1205
    %v1352 = vunpack.c.h.b16 %v1205
    %v1353 = vunpack.c.l.b16 %v1206
    %v1354 = vunpack.c.h.b16 %v1206
    %v1355 = vunpack.c.l.b16 %v1207
    %v1356 = vunpack.c.h.b16 %v1207
    %v1357 = vunpack.c.l.b16 %v1208
    %v1358 = vunpack.c.h.b16 %v1208
    %v1359 = vunpack.c.l.b16 %v1209
    %v1360 = vunpack.c.h.b16 %v1209
    %v1361 = vunpack.c.l.b16 %v1210
    %v1362 = vunpack.c.h.b16 %v1210
    %v1363 = vunpack.c.l.b16 %v1211
    %v1364 = vunpack.c.h.b16 %v1211
    %v1365 = vunpack.c.l.b16 %v1212
    %v1366 = vunpack.c.h.b16 %v1212
    %v1367 = vunpack.c.l.b16 %v1213
    %v1368 = vunpack.c.h.b16 %v1213
    %v1369 = vunpack.c.l.b16 %v1214
    %v1370 = vunpack.c.h.b16 %v1214
    %v1371 = vunpack.c.l.b16 %v1215
    %v1372 = vunpack.c.h.b16 %v1215
    %v1373 = vunpack.c.l.b16 %v1216
    %v1374 = vunpack.c.h.b16 %v1216
    %v1375 = vunpack.c.l.b16 %v1217
    %v1376 = vunpack.c.h.b16 %v1217
    %v1377 = vunpack.c.l.b16 %v1218
    %v1378 = vunpack.c.h.b16 %v1218
    %v1379 = vunpack.c.l.b16 %v1219
    %v1380 = vunpack.c.h.b16 %v1219
    %v1381 = vunpack.c.l.b16 %v1220
    %v1382 = vunpack.c.h.b16 %v1220
    %v1383 = vunpack.c.l.b16 %v1221
    %v1384 = vunpack.c.h.b16 %v1221
    %v1385 = vunpack.c.l.b16 %v1222
    %v1386 = vunpack.c.h.b16 %v1222
    %v1387 = vunpack.c.l.b16 %v1223
    %v1388 = vunpack.c.h.b16 %v1223
    %v1389 = vunpack.c.l.b16 %v1224
    %v1390 = vunpack.c.h.b16 %v1224
    %v1391 = vunpack.c.l.b16 %v1225
    %v1392 = vunpack.c.h.b16 %v1225
    %v1393 = vunpack.c.l.b16 %v1226
    %v1394 = vunpack.c.h.b16 %v1226
    %v1395 = vunpack.c.l.b16 %v1227
    %v1396 = vunpack.c.h.b16 %v1227
    %v1397 = vunpack.c.l.b16 %v1228
    %v1398 = vunpack.c.h.b16 %v1228
    %v1399 = vunpack.c.l.b16 %v1229
    %v1400 = vunpack.c.h.b16 %v1229
    %v1401 = vunpack.c.l.b16 %v1230
    %v1402 = vunpack.c.h.b16 %v1230
    %v1403 = vunpack.c.l.b16 %v1231
    %v1404 = vunpack.c.h.b16 %v1231
    %v1405 = vunpack.c.l.b16 %v1232
    %v1406 = vunpack.c.h.b16 %v1232
    %v1407 = vunpack.c.l.b16 %v1233
    %v1408 = vunpack.c.h.b16 %v1233
    %v1409 = vunpack.c.l.b16 %v1234
    %v1410 = vunpack.c.h.b16 %v1234
    %v1411 = vunpack.c.l.b16 %v1235
    %v1412 = vunpack.c.h.b16 %v1235
    %v1413 = vunpack.c.l.b16 %v1236
    %v1414 = vunpack.c.h.b16 %v1236
    %v1415 = vunpack.c.l.b16 %v1237
    %v1416 = vunpack.c.h.b16 %v1237
    %v1417 = vunpack.c.l.b16 %v1238
    %v1418 = vunpack.c.h.b16 %v1238
    %v1419 = vunpack.c.l.b16 %v1239
    %v1420 = vunpack.c.h.b16 %v1239
    %v1421 = vunpack.c.l.b16 %v1240
    %v1422 = vunpack.c.h.b16 %v1240
    %v1423 = vunpack.c.l.b16 %v1241
    %v1424 = vunpack.c.h.b16 %v1241
    %v1425 = vunpack.c.l.b16 %v1242
    %v1426 = vunpack.c.h.b16 %v1242
    %v1427 = vunpack.c.l.b16 %v1243
    %v1428 = vunpack.c.h.b16 %v1243
    %v1429 = vunpack.c.l.b16 %v1244
    %v1430 = vunpack.c.h.b16 %v1244
    %v1431 = vunpack.c.l.b16 %v1245
    %v1432 = vunpack.c.h.b16 %v1245
    %v1433 = vunpack.c.l.b16 %v1246
    %v1434 = vunpack.c.h.b16 %v1246
    %v1435 = vunpack.c.l.b16 %v1247
    %v1436 = vunpack.c.h.b16 %v1247
    %v1437 = vunpack.c.l.b16 %v1248
    %v1438 = vunpack.c.h.b16 %v1248
    %v1439 = vunpack.c.l.b16 %v1249
    %v1440 = vunpack.c.h.b16 %v1249
    %v1441 = vunpack.c.l.b16 %v1250
    %v1442 = vunpack.c.h.b16 %v1250
    %v1443 = vunpack.c.l.b16 %v1251
    %v1444 = vunpack.c.h.b16 %v1251
    %v1445 = vunpack.c.l.b16 %v1252
    %v1446 = vunpack.c.h.b16 %v1252
    %v1447 = vunpack.c.l.b16 %v1253
    %v1448 = vunpack.c.h.b16 %v1253
    %v1449 = vunpack.c.l.b16 %v1254
    %v1450 = vunpack.c.h.b16 %v1254
    %v1451 = vunpack.c.l.b16 %v1255
    %v1452 = vunpack.c.h.b16 %v1255
    %v1453 = vunpack.c.l.b16 %v1256
    %v1454 = vunpack.c.h.b16 %v1256
    %v1455 = vunpack.c.l.b16 %v1257
    %v1456 = vunpack.c.h.b16 %v1257
    %v1457 = vunpack.c.l.b16 %v1258
    %v1458 = vunpack.c.h.b16 %v1258
    %v1459 = vunpack.c.l.b16 %v1259
    %v1460 = vunpack.c.h.b16 %v1259
    %v1461 = vunpack.c.l.b16 %v1260
    %v1462 = vunpack.c.h.b16 %v1260
    %v1463 = vpack.c.b16 %v1339, %v1335
    %v1464 = vpack.c.b16 %v1340, %v1336
    %v1465 = vpack.c.b16 %v1341, %v1337
    %v1466 = vpack.c.b16 %v1342, %v1338
    %v1467 = vpack.c.b16 %v1347, %v1343
    %v1468 = vpack.c.b16 %v1348, %v1344
    %v1469 = vpack.c.b16 %v1349, %v1345
    %v1470 = vpack.c.b16 %v1350, %v1346
    %v1471 = vpack.c.b16 %v1355, %v1351
    %v1472 = vpack.c.b16 %v1356, %v1352
    %v1473 = vpack.c.b16 %v1357, %v1353
    %v1474 = vpack.c.b16 %v1358, %v1354
    %v1475 = vpack.c.b16 %v1363, %v1359
    %v1476 = vpack.c.b16 %v1364, %v1360
    %v1477 = vpack.c.b16 %v1365, %v1361
    %v1478 = vpack.c.b16 %v1366, %v1362
    %v1479 = vpack.c.b16 %v1371, %v1367
    %v1480 = vpack.c.b16 %v1372, %v1368
    %v1481 = vpack.c.b16 %v1373, %v1369
    %v1482 = vpack.c.b16 %v1374, %v1370
    %v1483 = vpack.c.b16 %v1379, %v1375
    %v1484 = vpack.c.b16 %v1380, %v1376
    %v1485 = vpack.c.b16 %v1381, %v1377
    %v1486 = vpack.c.b16 %v1382, %v1378
    %v1487 = vpack.c.b16 %v1387, %v1383
    %v1488 = vpack.c.b16 %v1388, %v1384
    %v1489 = vpack.c.b16 %v1389, %v1385
    %v1490 = vpack.c.b16 %v1390, %v1386
    %v1491 = vpack.c.b16 %v1395, %v1391
    %v1492 = vpack.c.b16 %v1396, %v1392
    %v1493 = vpack.c.b16 %v1397, %v1393
    %v1494 = vpack.c.b16 %v1398, %v1394
    %v1495 = vpack.c.b16 %v1403, %v1399
    %v1496 = vpack.c.b16 %v1404, %v1400
    %v1497 = vpack.c.b16 %v1405, %v1401
    %v1498 = vpack.c.b16 %v1406, %v1402
    %v1499 = vpack.c.b16 %v1411, %v1407
    %v1500 = vpack.c.b16 %v1412, %v1408
    %v1501 = vpack.c.b16 %v1413, %v1409
    %v1502 = vpack.c.b16 %v1414, %v1410
    %v1503 = vpack.c.b16 %v1419, %v1415
    %v1504 = vpack.c.b16 %v1420, %v1416
    %v1505 = vpack.c.b16 %v1421, %v1417
    %v1506 = vpack.c.b16 %v1422, %v1418
    %v1507 = vpack.c.b16 %v1427, %v1423
    %v1508 = vpack.c.b16 %v1428, %v1424
    %v1509 = vpack.c.b16 %v1429, %v1425
    %v1510 = vpack.c.b16 %v1430, %v1426
    %v1511 = vpack.c.b16 %v1435, %v1431
    %v1512 = vpack.c.b16 %v1436, %v1432
    %v1513 = vpack.c.b16 %v1437, %v1433
    %v1514 = vpack.c.b16 %v1438, %v1434
    %v1515 = vpack.c.b16 %v1443, %v1439
    %v1516 = vpack.c.b16 %v1444, %v1440
    %v1517 = vpack.c.b16 %v1445, %v1441
    %v1518 = vpack.c.b16 %v1446, %v1442
    %v1519 = vpack.c.b16 %v1451, %v1447
    %v1520 = vpack.c.b16 %v1452, %v1448
    %v1521 = vpack.c.b16 %v1453, %v1449
    %v1522 = vpack.c.b16 %v1454, %v1450
    %v1523 = vpack.c.b16 %v1459, %v1455
    %v1524 = vpack.c.b16 %v1460, %v1456
    %v1525 = vpack.c.b16 %v1461, %v1457
    %v1526 = vpack.c.b16 %v1462, %v1458
    %1591 = vmatpush.bf16.msra.mxu0 %v1491
    %1592 = vmatpush.bf16.msra.mxu0 %v1487
    %1593 = vmatpush.bf16.msra.mxu0 %v1483
    %1594 = vmatpush.bf16.msra.mxu0 %v1479
    %1595 = vmatpush.bf16.msra.mxu0 %v1475
    %1596 = vmatpush.bf16.msra.mxu0 %v1471
    %1597 = vmatpush.bf16.msra.mxu0 %v1467
    %1598 = vmatpush.bf16.msra.mxu0 %v1463
    %1599 = vmatmul.bf16.gmra.mxu0 %v1195
    %v1600 = vpop.f32.mrf.mxu0
    %v1601 = vadd.f32 %v1263, %v1600
    %v1602 = vpop.f32.mrf.mxu0
    %v1603 = vadd.f32 %v1263, %v1602
    %1604 = vdwg.mxu0
    %1605 = vmatpush.bf16.msra.mxu0 %v1523
    %1606 = vmatpush.bf16.msra.mxu0 %v1519
    %1607 = vmatpush.bf16.msra.mxu0 %v1515
    %1608 = vmatpush.bf16.msra.mxu0 %v1511
    %1609 = vmatpush.bf16.msra.mxu0 %v1507
    %1610 = vmatpush.bf16.msra.mxu0 %v1503
    %1611 = vmatpush.bf16.msra.mxu0 %v1499
    %1612 = vmatpush.bf16.msra.mxu0 %v1495
    %1613 = vmatmul.bf16.gmra.mxu0 %v1196
    %v1614 = vpop.f32.mrf.mxu0
    %v1615 = vadd.f32 %v1601, %v1614
    %v1616 = vpop.f32.mrf.mxu0
    %v1617 = vadd.f32 %v1603, %v1616
    %1618 = vdwg.mxu0
    %1619 = vmatpush.bf16.msra.mxu0 %v1492
    %1620 = vmatpush.bf16.msra.mxu0 %v1488
    %1621 = vmatpush.bf16.msra.mxu0 %v1484
    %1622 = vmatpush.bf16.msra.mxu0 %v1480
    %1623 = vmatpush.bf16.msra.mxu0 %v1476
    %1624 = vmatpush.bf16.msra.mxu0 %v1472
    %1625 = vmatpush.bf16.msra.mxu0 %v1468
    %1626 = vmatpush.bf16.msra.mxu0 %v1464
    %1627 = vmatmul.bf16.gmra.mxu0 %v1195
    %v1628 = vpop.f32.mrf.mxu0
    %v1629 = vadd.f32 %v1264, %v1628
    %v1630 = vpop.f32.mrf.mxu0
    %v1631 = vadd.f32 %v1264, %v1630
    %1632 = vdwg.mxu0
    %1633 = vmatpush.bf16.msra.mxu0 %v1524
    %1634 = vmatpush.bf16.msra.mxu0 %v1520
    %1635 = vmatpush.bf16.msra.mxu0 %v1516
    %1636 = vmatpush.bf16.msra.mxu0 %v1512
    %1637 = vmatpush.bf16.msra.mxu0 %v1508
    %1638 = vmatpush.bf16.msra.mxu0 %v1504
    %1639 = vmatpush.bf16.msra.mxu0 %v1500
    %1640 = vmatpush.bf16.msra.mxu0 %v1496
    %1641 = vmatmul.bf16.gmra.mxu0 %v1196
    %v1642 = vpop.f32.mrf.mxu0
    %v1643 = vadd.f32 %v1629, %v1642
    %v1644 = vpop.f32.mrf.mxu0
    %v1645 = vadd.f32 %v1631, %v1644
    %1646 = vdwg.mxu0
    %1647 = vmatpush.bf16.msra.mxu0 %v1493
    %1648 = vmatpush.bf16.msra.mxu0 %v1489
    %1649 = vmatpush.bf16.msra.mxu0 %v1485
    %1650 = vmatpush.bf16.msra.mxu0 %v1481
    %1651 = vmatpush.bf16.msra.mxu0 %v1477
    %1652 = vmatpush.bf16.msra.mxu0 %v1473
    %1653 = vmatpush.bf16.msra.mxu0 %v1469
    %1654 = vmatpush.bf16.msra.mxu0 %v1465
    %1655 = vmatmul.bf16.gmra.mxu0 %v1195
    %v1656 = vpop.f32.mrf.mxu0
    %v1657 = vadd.f32 %v1265, %v1656
    %v1658 = vpop.f32.mrf.mxu0
    %v1659 = vadd.f32 %v1265, %v1658
    %1660 = vdwg.mxu0
    %1661 = vmatpush.bf16.msra.mxu0 %v1525
    %1662 = vmatpush.bf16.msra.mxu0 %v1521
    %1663 = vmatpush.bf16.msra.mxu0 %v1517
    %1664 = vmatpush.bf16.msra.mxu0 %v1513
    %1665 = vmatpush.bf16.msra.mxu0 %v1509
    %1666 = vmatpush.bf16.msra.mxu0 %v1505
    %1667 = vmatpush.bf16.msra.mxu0 %v1501
    %1668 = vmatpush.bf16.msra.mxu0 %v1497
    %1669 = vmatmul.bf16.gmra.mxu0 %v1196
    %v1670 = vpop.f32.mrf.mxu0
    %v1671 = vadd.f32 %v1657, %v1670
    %v1672 = vpop.f32.mrf.mxu0
    %v1673 = vadd.f32 %v1659, %v1672
    %1674 = vdwg.mxu0
    %1675 = vmatpush.bf16.msra.mxu0 %v1494
    %1676 = vmatpush.bf16.msra.mxu0 %v1490
    %1677 = vmatpush.bf16.msra.mxu0 %v1486
    %1678 = vmatpush.bf16.msra.mxu0 %v1482
    %1679 = vmatpush.bf16.msra.mxu0 %v1478
    %1680 = vmatpush.bf16.msra.mxu0 %v1474
    %1681 = vmatpush.bf16.msra.mxu0 %v1470
    %1682 = vmatpush.bf16.msra.mxu0 %v1466
    %1683 = vmatmul.bf16.gmra.mxu0 %v1195
    %v1684 = vpop.f32.mrf.mxu0
    %v1685 = vadd.f32 %v1266, %v1684
    %v1686 = vpop.f32.mrf.mxu0
    %v1687 = vadd.f32 %v1266, %v1686
    %1688 = vdwg.mxu0
    %1689 = vmatpush.bf16.msra.mxu0 %v1526
    %1690 = vmatpush.bf16.msra.mxu0 %v1522
    %1691 = vmatpush.bf16.msra.mxu0 %v1518
    %1692 = vmatpush.bf16.msra.mxu0 %v1514
    %1693 = vmatpush.bf16.msra.mxu0 %v1510
    %1694 = vmatpush.bf16.msra.mxu0 %v1506
    %1695 = vmatpush.bf16.msra.mxu0 %v1502
    %1696 = vmatpush.bf16.msra.mxu0 %v1498
    %1697 = vmatmul.bf16.gmra.mxu0 %v1196
    %v1698 = vpop.f32.mrf.mxu0
    %v1699 = vadd.f32 %v1685, %v1698
    %v1700 = vpop.f32.mrf.mxu0
    %v1701 = vadd.f32 %v1687, %v1700
    %1702 = vdwg.mxu0
    %v1703 = vpack.c.bf16 %v1617, %v1615
    %v1704 = vpack.c.bf16 %v1645, %v1643
    %v1705 = vpack.c.bf16 %v1673, %v1671
    %v1706 = vpack.c.bf16 %v1701, %v1699
    %s1707 = smul.u32 4, 64
    %s1708 = smul.u32 %s1707, 4
    %s1709 = sshll.u32 %s1708, 4
    %1710 = dma.done %s109, %s1709
    %v1711 = vld [vmem:[#allocation6] sm:$0xff]
    %v1712 = vld [vmem:[#allocation6 + $0x10] sm:$0xff]
    %v1713 = vld [vmem:[#allocation6 + $0x20] sm:$0xff]
    %v1714 = vld [vmem:[#allocation6 + $0x30] sm:$0xff]
    %v1715 = vld [vmem:[#allocation6 + $0x40] sm:$0xff]
    %v1716 = vld [vmem:[#allocation6 + $0x50] sm:$0xff]
    %v1717 = vld [vmem:[#allocation6 + $0x60] sm:$0xff]
    %v1718 = vld [vmem:[#allocation6 + $0x70] sm:$0xff]
    %v1719 = vld [vmem:[#allocation6 + $0x80] sm:$0xff]
    %v1720 = vld [vmem:[#allocation6 + $0x90] sm:$0xff]
    %v1721 = vld [vmem:[#allocation6 + $0xa0] sm:$0xff]
    %v1722 = vld [vmem:[#allocation6 + $0xb0] sm:$0xff]
    %v1723 = vld [vmem:[#allocation6 + $0xc0] sm:$0xff]
    %v1724 = vld [vmem:[#allocation6 + $0xd0] sm:$0xff]
    %v1725 = vld [vmem:[#allocation6 + $0xe0] sm:$0xff]
    %v1726 = vld [vmem:[#allocation6 + $0xf0] sm:$0xff]
    %v1727 = vld [vmem:[#allocation6 + $0x100] sm:$0xff]
    %v1728 = vld [vmem:[#allocation6 + $0x110] sm:$0xff]
    %v1729 = vld [vmem:[#allocation6 + $0x120] sm:$0xff]
    %v1730 = vld [vmem:[#allocation6 + $0x130] sm:$0xff]
    %v1731 = vld [vmem:[#allocation6 + $0x140] sm:$0xff]
    %v1732 = vld [vmem:[#allocation6 + $0x150] sm:$0xff]
    %v1733 = vld [vmem:[#allocation6 + $0x160] sm:$0xff]
    %v1734 = vld [vmem:[#allocation6 + $0x170] sm:$0xff]
    %v1735 = vld [vmem:[#allocation6 + $0x180] sm:$0xff]
    %v1736 = vld [vmem:[#allocation6 + $0x190] sm:$0xff]
    %v1737 = vld [vmem:[#allocation6 + $0x1a0] sm:$0xff]
    %v1738 = vld [vmem:[#allocation6 + $0x1b0] sm:$0xff]
    %v1739 = vld [vmem:[#allocation6 + $0x1c0] sm:$0xff]
    %v1740 = vld [vmem:[#allocation6 + $0x1d0] sm:$0xff]
    %v1741 = vld [vmem:[#allocation6 + $0x1e0] sm:$0xff]
    %v1742 = vld [vmem:[#allocation6 + $0x1f0] sm:$0xff]
    %v1743 = vld [vmem:[#allocation6 + $0x200] sm:$0xff]
    %v1744 = vld [vmem:[#allocation6 + $0x210] sm:$0xff]
    %v1745 = vld [vmem:[#allocation6 + $0x220] sm:$0xff]
    %v1746 = vld [vmem:[#allocation6 + $0x230] sm:$0xff]
    %v1747 = vld [vmem:[#allocation6 + $0x240] sm:$0xff]
    %v1748 = vld [vmem:[#allocation6 + $0x250] sm:$0xff]
    %v1749 = vld [vmem:[#allocation6 + $0x260] sm:$0xff]
    %v1750 = vld [vmem:[#allocation6 + $0x270] sm:$0xff]
    %v1751 = vld [vmem:[#allocation6 + $0x280] sm:$0xff]
    %v1752 = vld [vmem:[#allocation6 + $0x290] sm:$0xff]
    %v1753 = vld [vmem:[#allocation6 + $0x2a0] sm:$0xff]
    %v1754 = vld [vmem:[#allocation6 + $0x2b0] sm:$0xff]
    %v1755 = vld [vmem:[#allocation6 + $0x2c0] sm:$0xff]
    %v1756 = vld [vmem:[#allocation6 + $0x2d0] sm:$0xff]
    %v1757 = vld [vmem:[#allocation6 + $0x2e0] sm:$0xff]
    %v1758 = vld [vmem:[#allocation6 + $0x2f0] sm:$0xff]
    %v1759 = vld [vmem:[#allocation6 + $0x300] sm:$0xff]
    %v1760 = vld [vmem:[#allocation6 + $0x310] sm:$0xff]
    %v1761 = vld [vmem:[#allocation6 + $0x320] sm:$0xff]
    %v1762 = vld [vmem:[#allocation6 + $0x330] sm:$0xff]
    %v1763 = vld [vmem:[#allocation6 + $0x340] sm:$0xff]
    %v1764 = vld [vmem:[#allocation6 + $0x350] sm:$0xff]
    %v1765 = vld [vmem:[#allocation6 + $0x360] sm:$0xff]
    %v1766 = vld [vmem:[#allocation6 + $0x370] sm:$0xff]
    %v1767 = vld [vmem:[#allocation6 + $0x380] sm:$0xff]
    %v1768 = vld [vmem:[#allocation6 + $0x390] sm:$0xff]
    %v1769 = vld [vmem:[#allocation6 + $0x3a0] sm:$0xff]
    %v1770 = vld [vmem:[#allocation6 + $0x3b0] sm:$0xff]
    %v1771 = vld [vmem:[#allocation6 + $0x3c0] sm:$0xff]
    %v1772 = vld [vmem:[#allocation6 + $0x3d0] sm:$0xff]
    %v1773 = vld [vmem:[#allocation6 + $0x3e0] sm:$0xff]
    %v1774 = vld [vmem:[#allocation6 + $0x3f0] sm:$0xff]
    %v1775 = vld [vmem:[%s3 + $0x17] sm:$0x3]
    %v1777 = vperm.slane %v1775, 0
    %v1778 = vperm.slane %v1775, 1
    %v1845 = vunpack.c.l.b16 %v1711
    %v1846 = vunpack.c.h.b16 %v1711
    %v1847 = vunpack.c.l.b16 %v1712
    %v1848 = vunpack.c.h.b16 %v1712
    %v1849 = vunpack.c.l.b16 %v1713
    %v1850 = vunpack.c.h.b16 %v1713
    %v1851 = vunpack.c.l.b16 %v1714
    %v1852 = vunpack.c.h.b16 %v1714
    %v1853 = vunpack.c.l.b16 %v1715
    %v1854 = vunpack.c.h.b16 %v1715
    %v1855 = vunpack.c.l.b16 %v1716
    %v1856 = vunpack.c.h.b16 %v1716
    %v1857 = vunpack.c.l.b16 %v1717
    %v1858 = vunpack.c.h.b16 %v1717
    %v1859 = vunpack.c.l.b16 %v1718
    %v1860 = vunpack.c.h.b16 %v1718
    %v1861 = vunpack.c.l.b16 %v1719
    %v1862 = vunpack.c.h.b16 %v1719
    %v1863 = vunpack.c.l.b16 %v1720
    %v1864 = vunpack.c.h.b16 %v1720
    %v1865 = vunpack.c.l.b16 %v1721
    %v1866 = vunpack.c.h.b16 %v1721
    %v1867 = vunpack.c.l.b16 %v1722
    %v1868 = vunpack.c.h.b16 %v1722
    %v1869 = vunpack.c.l.b16 %v1723
    %v1870 = vunpack.c.h.b16 %v1723
    %v1871 = vunpack.c.l.b16 %v1724
    %v1872 = vunpack.c.h.b16 %v1724
    %v1873 = vunpack.c.l.b16 %v1725
    %v1874 = vunpack.c.h.b16 %v1725
    %v1875 = vunpack.c.l.b16 %v1726
    %v1876 = vunpack.c.h.b16 %v1726
    %v1877 = vunpack.c.l.b16 %v1727
    %v1878 = vunpack.c.h.b16 %v1727
    %v1879 = vunpack.c.l.b16 %v1728
    %v1880 = vunpack.c.h.b16 %v1728
    %v1881 = vunpack.c.l.b16 %v1729
    %v1882 = vunpack.c.h.b16 %v1729
    %v1883 = vunpack.c.l.b16 %v1730
    %v1884 = vunpack.c.h.b16 %v1730
    %v1885 = vunpack.c.l.b16 %v1731
    %v1886 = vunpack.c.h.b16 %v1731
    %v1887 = vunpack.c.l.b16 %v1732
    %v1888 = vunpack.c.h.b16 %v1732
    %v1889 = vunpack.c.l.b16 %v1733
    %v1890 = vunpack.c.h.b16 %v1733
    %v1891 = vunpack.c.l.b16 %v1734
    %v1892 = vunpack.c.h.b16 %v1734
    %v1893 = vunpack.c.l.b16 %v1735
    %v1894 = vunpack.c.h.b16 %v1735
    %v1895 = vunpack.c.l.b16 %v1736
    %v1896 = vunpack.c.h.b16 %v1736
    %v1897 = vunpack.c.l.b16 %v1737
    %v1898 = vunpack.c.h.b16 %v1737
    %v1899 = vunpack.c.l.b16 %v1738
    %v1900 = vunpack.c.h.b16 %v1738
    %v1901 = vunpack.c.l.b16 %v1739
    %v1902 = vunpack.c.h.b16 %v1739
    %v1903 = vunpack.c.l.b16 %v1740
    %v1904 = vunpack.c.h.b16 %v1740
    %v1905 = vunpack.c.l.b16 %v1741
    %v1906 = vunpack.c.h.b16 %v1741
    %v1907 = vunpack.c.l.b16 %v1742
    %v1908 = vunpack.c.h.b16 %v1742
    %v1909 = vunpack.c.l.b16 %v1743
    %v1910 = vunpack.c.h.b16 %v1743
    %v1911 = vunpack.c.l.b16 %v1744
    %v1912 = vunpack.c.h.b16 %v1744
    %v1913 = vunpack.c.l.b16 %v1745
    %v1914 = vunpack.c.h.b16 %v1745
    %v1915 = vunpack.c.l.b16 %v1746
    %v1916 = vunpack.c.h.b16 %v1746
    %v1917 = vunpack.c.l.b16 %v1747
    %v1918 = vunpack.c.h.b16 %v1747
    %v1919 = vunpack.c.l.b16 %v1748
    %v1920 = vunpack.c.h.b16 %v1748
    %v1921 = vunpack.c.l.b16 %v1749
    %v1922 = vunpack.c.h.b16 %v1749
    %v1923 = vunpack.c.l.b16 %v1750
    %v1924 = vunpack.c.h.b16 %v1750
    %v1925 = vunpack.c.l.b16 %v1751
    %v1926 = vunpack.c.h.b16 %v1751
    %v1927 = vunpack.c.l.b16 %v1752
    %v1928 = vunpack.c.h.b16 %v1752
    %v1929 = vunpack.c.l.b16 %v1753
    %v1930 = vunpack.c.h.b16 %v1753
    %v1931 = vunpack.c.l.b16 %v1754
    %v1932 = vunpack.c.h.b16 %v1754
    %v1933 = vunpack.c.l.b16 %v1755
    %v1934 = vunpack.c.h.b16 %v1755
    %v1935 = vunpack.c.l.b16 %v1756
    %v1936 = vunpack.c.h.b16 %v1756
    %v1937 = vunpack.c.l.b16 %v1757
    %v1938 = vunpack.c.h.b16 %v1757
    %v1939 = vunpack.c.l.b16 %v1758
    %v1940 = vunpack.c.h.b16 %v1758
    %v1941 = vunpack.c.l.b16 %v1759
    %v1942 = vunpack.c.h.b16 %v1759
    %v1943 = vunpack.c.l.b16 %v1760
    %v1944 = vunpack.c.h.b16 %v1760
    %v1945 = vunpack.c.l.b16 %v1761
    %v1946 = vunpack.c.h.b16 %v1761
    %v1947 = vunpack.c.l.b16 %v1762
    %v1948 = vunpack.c.h.b16 %v1762
    %v1949 = vunpack.c.l.b16 %v1763
    %v1950 = vunpack.c.h.b16 %v1763
    %v1951 = vunpack.c.l.b16 %v1764
    %v1952 = vunpack.c.h.b16 %v1764
    %v1953 = vunpack.c.l.b16 %v1765
    %v1954 = vunpack.c.h.b16 %v1765
    %v1955 = vunpack.c.l.b16 %v1766
    %v1956 = vunpack.c.h.b16 %v1766
    %v1957 = vunpack.c.l.b16 %v1767
    %v1958 = vunpack.c.h.b16 %v1767
    %v1959 = vunpack.c.l.b16 %v1768
    %v1960 = vunpack.c.h.b16 %v1768
    %v1961 = vunpack.c.l.b16 %v1769
    %v1962 = vunpack.c.h.b16 %v1769
    %v1963 = vunpack.c.l.b16 %v1770
    %v1964 = vunpack.c.h.b16 %v1770
    %v1965 = vunpack.c.l.b16 %v1771
    %v1966 = vunpack.c.h.b16 %v1771
    %v1967 = vunpack.c.l.b16 %v1772
    %v1968 = vunpack.c.h.b16 %v1772
    %v1969 = vunpack.c.l.b16 %v1773
    %v1970 = vunpack.c.h.b16 %v1773
    %v1971 = vunpack.c.l.b16 %v1774
    %v1972 = vunpack.c.h.b16 %v1774
    %v1973 = vpack.c.b16 %v1847, %v1845
    %v1974 = vpack.c.b16 %v1848, %v1846
    %v1975 = vpack.c.b16 %v1851, %v1849
    %v1976 = vpack.c.b16 %v1852, %v1850
    %v1977 = vpack.c.b16 %v1855, %v1853
    %v1978 = vpack.c.b16 %v1856, %v1854
    %v1979 = vpack.c.b16 %v1859, %v1857
    %v1980 = vpack.c.b16 %v1860, %v1858
    %v1981 = vpack.c.b16 %v1863, %v1861
    %v1982 = vpack.c.b16 %v1864, %v1862
    %v1983 = vpack.c.b16 %v1867, %v1865
    %v1984 = vpack.c.b16 %v1868, %v1866
    %v1985 = vpack.c.b16 %v1871, %v1869
    %v1986 = vpack.c.b16 %v1872, %v1870
    %v1987 = vpack.c.b16 %v1875, %v1873
    %v1988 = vpack.c.b16 %v1876, %v1874
    %v1989 = vpack.c.b16 %v1879, %v1877
    %v1990 = vpack.c.b16 %v1880, %v1878
    %v1991 = vpack.c.b16 %v1883, %v1881
    %v1992 = vpack.c.b16 %v1884, %v1882
    %v1993 = vpack.c.b16 %v1887, %v1885
    %v1994 = vpack.c.b16 %v1888, %v1886
    %v1995 = vpack.c.b16 %v1891, %v1889
    %v1996 = vpack.c.b16 %v1892, %v1890
    %v1997 = vpack.c.b16 %v1895, %v1893
    %v1998 = vpack.c.b16 %v1896, %v1894
    %v1999 = vpack.c.b16 %v1899, %v1897
    %v2000 = vpack.c.b16 %v1900, %v1898
    %v2001 = vpack.c.b16 %v1903, %v1901
    %v2002 = vpack.c.b16 %v1904, %v1902
    %v2003 = vpack.c.b16 %v1907, %v1905
    %v2004 = vpack.c.b16 %v1908, %v1906
    %v2005 = vpack.c.b16 %v1911, %v1909
    %v2006 = vpack.c.b16 %v1912, %v1910
    %v2007 = vpack.c.b16 %v1915, %v1913
    %v2008 = vpack.c.b16 %v1916, %v1914
    %v2009 = vpack.c.b16 %v1919, %v1917
    %v2010 = vpack.c.b16 %v1920, %v1918
    %v2011 = vpack.c.b16 %v1923, %v1921
    %v2012 = vpack.c.b16 %v1924, %v1922
    %v2013 = vpack.c.b16 %v1927, %v1925
    %v2014 = vpack.c.b16 %v1928, %v1926
    %v2015 = vpack.c.b16 %v1931, %v1929
    %v2016 = vpack.c.b16 %v1932, %v1930
    %v2017 = vpack.c.b16 %v1935, %v1933
    %v2018 = vpack.c.b16 %v1936, %v1934
    %v2019 = vpack.c.b16 %v1939, %v1937
    %v2020 = vpack.c.b16 %v1940, %v1938
    %v2021 = vpack.c.b16 %v1943, %v1941
    %v2022 = vpack.c.b16 %v1944, %v1942
    %v2023 = vpack.c.b16 %v1947, %v1945
    %v2024 = vpack.c.b16 %v1948, %v1946
    %v2025 = vpack.c.b16 %v1951, %v1949
    %v2026 = vpack.c.b16 %v1952, %v1950
    %v2027 = vpack.c.b16 %v1955, %v1953
    %v2028 = vpack.c.b16 %v1956, %v1954
    %v2029 = vpack.c.b16 %v1959, %v1957
    %v2030 = vpack.c.b16 %v1960, %v1958
    %v2031 = vpack.c.b16 %v1963, %v1961
    %v2032 = vpack.c.b16 %v1964, %v1962
    %v2033 = vpack.c.b16 %v1967, %v1965
    %v2034 = vpack.c.b16 %v1968, %v1966
    %v2035 = vpack.c.b16 %v1971, %v1969
    %v2036 = vpack.c.b16 %v1972, %v1970
    %2101 = vmatpush.bf16.msra.mxu0 %v1987
    %2102 = vmatpush.bf16.msra.mxu0 %v1985
    %2103 = vmatpush.bf16.msra.mxu0 %v1983
    %2104 = vmatpush.bf16.msra.mxu0 %v1981
    %2105 = vmatpush.bf16.msra.mxu0 %v1979
    %2106 = vmatpush.bf16.msra.mxu0 %v1977
    %2107 = vmatpush.bf16.msra.mxu0 %v1975
    %2108 = vmatpush.bf16.msra.mxu0 %v1973
    %2109 = vmatmul.bf16.gmra.mxu0 %v1703
    %v2110 = vpop.f32.mrf.mxu0
    %v2111 = vadd.f32 %v1777, %v2110
    %v2112 = vpop.f32.mrf.mxu0
    %v2113 = vadd.f32 %v1777, %v2112
    %2114 = vdwg.mxu0
    %2115 = vmatpush.bf16.msra.mxu0 %v2003
    %2116 = vmatpush.bf16.msra.mxu0 %v2001
    %2117 = vmatpush.bf16.msra.mxu0 %v1999
    %2118 = vmatpush.bf16.msra.mxu0 %v1997
    %2119 = vmatpush.bf16.msra.mxu0 %v1995
    %2120 = vmatpush.bf16.msra.mxu0 %v1993
    %2121 = vmatpush.bf16.msra.mxu0 %v1991
    %2122 = vmatpush.bf16.msra.mxu0 %v1989
    %2123 = vmatmul.bf16.gmra.mxu0 %v1704
    %v2124 = vpop.f32.mrf.mxu0
    %v2125 = vadd.f32 %v2111, %v2124
    %v2126 = vpop.f32.mrf.mxu0
    %v2127 = vadd.f32 %v2113, %v2126
    %2128 = vdwg.mxu0
    %2129 = vmatpush.bf16.msra.mxu0 %v2019
    %2130 = vmatpush.bf16.msra.mxu0 %v2017
    %2131 = vmatpush.bf16.msra.mxu0 %v2015
    %2132 = vmatpush.bf16.msra.mxu0 %v2013
    %2133 = vmatpush.bf16.msra.mxu0 %v2011
    %2134 = vmatpush.bf16.msra.mxu0 %v2009
    %2135 = vmatpush.bf16.msra.mxu0 %v2007
    %2136 = vmatpush.bf16.msra.mxu0 %v2005
    %2137 = vmatmul.bf16.gmra.mxu0 %v1705
    %v2138 = vpop.f32.mrf.mxu0
    %v2139 = vadd.f32 %v2125, %v2138
    %v2140 = vpop.f32.mrf.mxu0
    %v2141 = vadd.f32 %v2127, %v2140
    %2142 = vdwg.mxu0
    %2143 = vmatpush.bf16.msra.mxu0 %v2035
    %2144 = vmatpush.bf16.msra.mxu0 %v2033
    %2145 = vmatpush.bf16.msra.mxu0 %v2031
    %2146 = vmatpush.bf16.msra.mxu0 %v2029
    %2147 = vmatpush.bf16.msra.mxu0 %v2027
    %2148 = vmatpush.bf16.msra.mxu0 %v2025
    %2149 = vmatpush.bf16.msra.mxu0 %v2023
    %2150 = vmatpush.bf16.msra.mxu0 %v2021
    %2151 = vmatmul.bf16.gmra.mxu0 %v1706
    %v2152 = vpop.f32.mrf.mxu0
    %v2153 = vadd.f32 %v2139, %v2152
    %v2154 = vpop.f32.mrf.mxu0
    %v2155 = vadd.f32 %v2141, %v2154
    %2156 = vdwg.mxu0
    %2157 = vmatpush.bf16.msra.mxu0 %v1988
    %2158 = vmatpush.bf16.msra.mxu0 %v1986
    %2159 = vmatpush.bf16.msra.mxu0 %v1984
    %2160 = vmatpush.bf16.msra.mxu0 %v1982
    %2161 = vmatpush.bf16.msra.mxu0 %v1980
    %2162 = vmatpush.bf16.msra.mxu0 %v1978
    %2163 = vmatpush.bf16.msra.mxu0 %v1976
    %2164 = vmatpush.bf16.msra.mxu0 %v1974
    %2165 = vmatmul.bf16.gmra.mxu0 %v1703
    %v2166 = vpop.f32.mrf.mxu0
    %v2167 = vadd.f32 %v1778, %v2166
    %v2168 = vpop.f32.mrf.mxu0
    %v2169 = vadd.f32 %v1778, %v2168
    %2170 = vdwg.mxu0
    %2171 = vmatpush.bf16.msra.mxu0 %v2004
    %2172 = vmatpush.bf16.msra.mxu0 %v2002
    %2173 = vmatpush.bf16.msra.mxu0 %v2000
    %2174 = vmatpush.bf16.msra.mxu0 %v1998
    %2175 = vmatpush.bf16.msra.mxu0 %v1996
    %2176 = vmatpush.bf16.msra.mxu0 %v1994
    %2177 = vmatpush.bf16.msra.mxu0 %v1992
    %2178 = vmatpush.bf16.msra.mxu0 %v1990
    %2179 = vmatmul.bf16.gmra.mxu0 %v1704
    %v2180 = vpop.f32.mrf.mxu0
    %v2181 = vadd.f32 %v2167, %v2180
    %v2182 = vpop.f32.mrf.mxu0
    %v2183 = vadd.f32 %v2169, %v2182
    %2184 = vdwg.mxu0
    %2185 = vmatpush.bf16.msra.mxu0 %v2020
    %2186 = vmatpush.bf16.msra.mxu0 %v2018
    %2187 = vmatpush.bf16.msra.mxu0 %v2016
    %2188 = vmatpush.bf16.msra.mxu0 %v2014
    %2189 = vmatpush.bf16.msra.mxu0 %v2012
    %2190 = vmatpush.bf16.msra.mxu0 %v2010
    %2191 = vmatpush.bf16.msra.mxu0 %v2008
    %2192 = vmatpush.bf16.msra.mxu0 %v2006
    %2193 = vmatmul.bf16.gmra.mxu0 %v1705
    %v2194 = vpop.f32.mrf.mxu0
    %v2195 = vadd.f32 %v2181, %v2194
    %v2196 = vpop.f32.mrf.mxu0
    %v2197 = vadd.f32 %v2183, %v2196
    %2198 = vdwg.mxu0
    %2199 = vmatpush.bf16.msra.mxu0 %v2036
    %2200 = vmatpush.bf16.msra.mxu0 %v2034
    %2201 = vmatpush.bf16.msra.mxu0 %v2032
    %2202 = vmatpush.bf16.msra.mxu0 %v2030
    %2203 = vmatpush.bf16.msra.mxu0 %v2028
    %2204 = vmatpush.bf16.msra.mxu0 %v2026
    %2205 = vmatpush.bf16.msra.mxu0 %v2024
    %2206 = vmatpush.bf16.msra.mxu0 %v2022
    %2207 = vmatmul.bf16.gmra.mxu0 %v1706
    %v2208 = vpop.f32.mrf.mxu0
    %v2209 = vadd.f32 %v2195, %v2208
    %v2210 = vpop.f32.mrf.mxu0
    %v2211 = vadd.f32 %v2197, %v2210
    %2212 = vdwg.mxu0
    %v2213 = vpack.c.bf16 %v2155, %v2153
    %v2214 = vpack.c.bf16 %v2211, %v2209
    %v2215 = vld [vmem:[#allocation5 + $0x14] sm:$0xff]
    %v2216 = vld [vmem:[#allocation5 + $0x1c] sm:$0xff]
    %v2217 = vld [vmem:[#allocation5 + $0x40] sm:$0xff]
    %v2218 = vld [vmem:[#allocation5 + $0x48] sm:$0xff]
    %v2219 = vld [vmem:[#allocation5 + $0x6c] sm:$0xff]
    %v2220 = vld [vmem:[#allocation5 + $0x74] sm:$0xff]
    %v2221 = vld [vmem:[#allocation5 + $0x98] sm:$0xff]
    %v2222 = vld [vmem:[#allocation5 + $0xa0] sm:$0xff]
    %v2223 = vld [vmem:[#allocation5 + $0xc4] sm:$0xff]
    %v2224 = vld [vmem:[#allocation5 + $0xcc] sm:$0xff]
    %v2225 = vld [vmem:[#allocation5 + $0xf0] sm:$0xff]
    %v2226 = vld [vmem:[#allocation5 + $0xf8] sm:$0xff]
    %v2227 = vld [vmem:[#allocation5 + $0x11c] sm:$0xff]
    %v2228 = vld [vmem:[#allocation5 + $0x124] sm:$0xff]
    %v2229 = vld [vmem:[#allocation5 + $0x148] sm:$0xff]
    %v2230 = vld [vmem:[#allocation5 + $0x150] sm:$0xff]
    %v2231 = vld [vmem:[#allocation5 + $0x174] sm:$0xff]
    %v2232 = vld [vmem:[#allocation5 + $0x17c] sm:$0xff]
    %v2233 = vld [vmem:[#allocation5 + $0x1a0] sm:$0xff]
    %v2234 = vld [vmem:[#allocation5 + $0x1a8] sm:$0xff]
    %v2235 = vld [vmem:[#allocation5 + $0x1cc] sm:$0xff]
    %v2236 = vld [vmem:[#allocation5 + $0x1d4] sm:$0xff]
    %v2237 = vld [vmem:[#allocation5 + $0x1f8] sm:$0xff]
    %v2238 = vld [vmem:[#allocation5 + $0x200] sm:$0xff]
    %v2239 = vld [vmem:[#allocation5 + $0x224] sm:$0xff]
    %v2240 = vld [vmem:[#allocation5 + $0x22c] sm:$0xff]
    %v2241 = vld [vmem:[#allocation5 + $0x250] sm:$0xff]
    %v2242 = vld [vmem:[#allocation5 + $0x258] sm:$0xff]
    %v2243 = vld [vmem:[#allocation5 + $0x27c] sm:$0xff]
    %v2244 = vld [vmem:[#allocation5 + $0x284] sm:$0xff]
    %v2245 = vld [vmem:[#allocation5 + $0x2a8] sm:$0xff]
    %v2246 = vld [vmem:[#allocation5 + $0x2b0] sm:$0xff]
    %v2247 = vld [vmem:[#allocation5 + $0x2d4] sm:$0xff]
    %v2248 = vld [vmem:[#allocation5 + $0x2dc] sm:$0xff]
    %v2249 = vld [vmem:[#allocation5 + $0x300] sm:$0xff]
    %v2250 = vld [vmem:[#allocation5 + $0x308] sm:$0xff]
    %v2251 = vld [vmem:[#allocation5 + $0x32c] sm:$0xff]
    %v2252 = vld [vmem:[#allocation5 + $0x334] sm:$0xff]
    %v2253 = vld [vmem:[#allocation5 + $0x358] sm:$0xff]
    %v2254 = vld [vmem:[#allocation5 + $0x360] sm:$0xff]
    %v2255 = vld [vmem:[#allocation5 + $0x384] sm:$0xff]
    %v2256 = vld [vmem:[#allocation5 + $0x38c] sm:$0xff]
    %v2257 = vld [vmem:[#allocation5 + $0x3b0] sm:$0xff]
    %v2258 = vld [vmem:[#allocation5 + $0x3b8] sm:$0xff]
    %v2259 = vld [vmem:[#allocation5 + $0x3dc] sm:$0xff]
    %v2260 = vld [vmem:[#allocation5 + $0x3e4] sm:$0xff]
    %v2261 = vld [vmem:[#allocation5 + $0x408] sm:$0xff]
    %v2262 = vld [vmem:[#allocation5 + $0x410] sm:$0xff]
    %v2263 = vld [vmem:[#allocation5 + $0x434] sm:$0xff]
    %v2264 = vld [vmem:[#allocation5 + $0x43c] sm:$0xff]
    %v2265 = vld [vmem:[#allocation5 + $0x460] sm:$0xff]
    %v2266 = vld [vmem:[#allocation5 + $0x468] sm:$0xff]
    %v2267 = vld [vmem:[#allocation5 + $0x48c] sm:$0xff]
    %v2268 = vld [vmem:[#allocation5 + $0x494] sm:$0xff]
    %v2269 = vld [vmem:[#allocation5 + $0x4b8] sm:$0xff]
    %v2270 = vld [vmem:[#allocation5 + $0x4c0] sm:$0xff]
    %v2271 = vld [vmem:[#allocation5 + $0x4e4] sm:$0xff]
    %v2272 = vld [vmem:[#allocation5 + $0x4ec] sm:$0xff]
    %v2273 = vld [vmem:[#allocation5 + $0x510] sm:$0xff]
    %v2274 = vld [vmem:[#allocation5 + $0x518] sm:$0xff]
    %v2275 = vld [vmem:[#allocation5 + $0x53c] sm:$0xff]
    %v2276 = vld [vmem:[#allocation5 + $0x544] sm:$0xff]
    %v2277 = vld [vmem:[#allocation5 + $0x568] sm:$0xff]
    %v2278 = vld [vmem:[#allocation5 + $0x570] sm:$0xff]
    %v2279 = vld [vmem:[%s3 + $0x19] sm:$0xf]
    %v2281 = vperm.slane %v2279, 0
    %v2282 = vperm.slane %v2279, 1
    %v2283 = vperm.slane %v2279, 2
    %v2284 = vperm.slane %v2279, 3
    %v2353 = vunpack.c.l.b16 %v2215
    %v2354 = vunpack.c.h.b16 %v2215
    %v2355 = vunpack.c.l.b16 %v2216
    %v2356 = vunpack.c.h.b16 %v2216
    %v2357 = vunpack.c.l.b16 %v2217
    %v2358 = vunpack.c.h.b16 %v2217
    %v2359 = vunpack.c.l.b16 %v2218
    %v2360 = vunpack.c.h.b16 %v2218
    %v2361 = vunpack.c.l.b16 %v2219
    %v2362 = vunpack.c.h.b16 %v2219
    %v2363 = vunpack.c.l.b16 %v2220
    %v2364 = vunpack.c.h.b16 %v2220
    %v2365 = vunpack.c.l.b16 %v2221
    %v2366 = vunpack.c.h.b16 %v2221
    %v2367 = vunpack.c.l.b16 %v2222
    %v2368 = vunpack.c.h.b16 %v2222
    %v2369 = vunpack.c.l.b16 %v2223
    %v2370 = vunpack.c.h.b16 %v2223
    %v2371 = vunpack.c.l.b16 %v2224
    %v2372 = vunpack.c.h.b16 %v2224
    %v2373 = vunpack.c.l.b16 %v2225
    %v2374 = vunpack.c.h.b16 %v2225
    %v2375 = vunpack.c.l.b16 %v2226
    %v2376 = vunpack.c.h.b16 %v2226
    %v2377 = vunpack.c.l.b16 %v2227
    %v2378 = vunpack.c.h.b16 %v2227
    %v2379 = vunpack.c.l.b16 %v2228
    %v2380 = vunpack.c.h.b16 %v2228
    %v2381 = vunpack.c.l.b16 %v2229
    %v2382 = vunpack.c.h.b16 %v2229
    %v2383 = vunpack.c.l.b16 %v2230
    %v2384 = vunpack.c.h.b16 %v2230
    %v2385 = vunpack.c.l.b16 %v2231
    %v2386 = vunpack.c.h.b16 %v2231
    %v2387 = vunpack.c.l.b16 %v2232
    %v2388 = vunpack.c.h.b16 %v2232
    %v2389 = vunpack.c.l.b16 %v2233
    %v2390 = vunpack.c.h.b16 %v2233
    %v2391 = vunpack.c.l.b16 %v2234
    %v2392 = vunpack.c.h.b16 %v2234
    %v2393 = vunpack.c.l.b16 %v2235
    %v2394 = vunpack.c.h.b16 %v2235
    %v2395 = vunpack.c.l.b16 %v2236
    %v2396 = vunpack.c.h.b16 %v2236
    %v2397 = vunpack.c.l.b16 %v2237
    %v2398 = vunpack.c.h.b16 %v2237
    %v2399 = vunpack.c.l.b16 %v2238
    %v2400 = vunpack.c.h.b16 %v2238
    %v2401 = vunpack.c.l.b16 %v2239
    %v2402 = vunpack.c.h.b16 %v2239
    %v2403 = vunpack.c.l.b16 %v2240
    %v2404 = vunpack.c.h.b16 %v2240
    %v2405 = vunpack.c.l.b16 %v2241
    %v2406 = vunpack.c.h.b16 %v2241
    %v2407 = vunpack.c.l.b16 %v2242
    %v2408 = vunpack.c.h.b16 %v2242
    %v2409 = vunpack.c.l.b16 %v2243
    %v2410 = vunpack.c.h.b16 %v2243
    %v2411 = vunpack.c.l.b16 %v2244
    %v2412 = vunpack.c.h.b16 %v2244
    %v2413 = vunpack.c.l.b16 %v2245
    %v2414 = vunpack.c.h.b16 %v2245
    %v2415 = vunpack.c.l.b16 %v2246
    %v2416 = vunpack.c.h.b16 %v2246
    %v2417 = vunpack.c.l.b16 %v2247
    %v2418 = vunpack.c.h.b16 %v2247
    %v2419 = vunpack.c.l.b16 %v2248
    %v2420 = vunpack.c.h.b16 %v2248
    %v2421 = vunpack.c.l.b16 %v2249
    %v2422 = vunpack.c.h.b16 %v2249
    %v2423 = vunpack.c.l.b16 %v2250
    %v2424 = vunpack.c.h.b16 %v2250
    %v2425 = vunpack.c.l.b16 %v2251
    %v2426 = vunpack.c.h.b16 %v2251
    %v2427 = vunpack.c.l.b16 %v2252
    %v2428 = vunpack.c.h.b16 %v2252
    %v2429 = vunpack.c.l.b16 %v2253
    %v2430 = vunpack.c.h.b16 %v2253
    %v2431 = vunpack.c.l.b16 %v2254
    %v2432 = vunpack.c.h.b16 %v2254
    %v2433 = vunpack.c.l.b16 %v2255
    %v2434 = vunpack.c.h.b16 %v2255
    %v2435 = vunpack.c.l.b16 %v2256
    %v2436 = vunpack.c.h.b16 %v2256
    %v2437 = vunpack.c.l.b16 %v2257
    %v2438 = vunpack.c.h.b16 %v2257
    %v2439 = vunpack.c.l.b16 %v2258
    %v2440 = vunpack.c.h.b16 %v2258
    %v2441 = vunpack.c.l.b16 %v2259
    %v2442 = vunpack.c.h.b16 %v2259
    %v2443 = vunpack.c.l.b16 %v2260
    %v2444 = vunpack.c.h.b16 %v2260
    %v2445 = vunpack.c.l.b16 %v2261
    %v2446 = vunpack.c.h.b16 %v2261
    %v2447 = vunpack.c.l.b16 %v2262
    %v2448 = vunpack.c.h.b16 %v2262
    %v2449 = vunpack.c.l.b16 %v2263
    %v2450 = vunpack.c.h.b16 %v2263
    %v2451 = vunpack.c.l.b16 %v2264
    %v2452 = vunpack.c.h.b16 %v2264
    %v2453 = vunpack.c.l.b16 %v2265
    %v2454 = vunpack.c.h.b16 %v2265
    %v2455 = vunpack.c.l.b16 %v2266
    %v2456 = vunpack.c.h.b16 %v2266
    %v2457 = vunpack.c.l.b16 %v2267
    %v2458 = vunpack.c.h.b16 %v2267
    %v2459 = vunpack.c.l.b16 %v2268
    %v2460 = vunpack.c.h.b16 %v2268
    %v2461 = vunpack.c.l.b16 %v2269
    %v2462 = vunpack.c.h.b16 %v2269
    %v2463 = vunpack.c.l.b16 %v2270
    %v2464 = vunpack.c.h.b16 %v2270
    %v2465 = vunpack.c.l.b16 %v2271
    %v2466 = vunpack.c.h.b16 %v2271
    %v2467 = vunpack.c.l.b16 %v2272
    %v2468 = vunpack.c.h.b16 %v2272
    %v2469 = vunpack.c.l.b16 %v2273
    %v2470 = vunpack.c.h.b16 %v2273
    %v2471 = vunpack.c.l.b16 %v2274
    %v2472 = vunpack.c.h.b16 %v2274
    %v2473 = vunpack.c.l.b16 %v2275
    %v2474 = vunpack.c.h.b16 %v2275
    %v2475 = vunpack.c.l.b16 %v2276
    %v2476 = vunpack.c.h.b16 %v2276
    %v2477 = vunpack.c.l.b16 %v2277
    %v2478 = vunpack.c.h.b16 %v2277
    %v2479 = vunpack.c.l.b16 %v2278
    %v2480 = vunpack.c.h.b16 %v2278
    %v2481 = vpack.c.b16 %v2357, %v2353
    %v2482 = vpack.c.b16 %v2358, %v2354
    %v2483 = vpack.c.b16 %v2359, %v2355
    %v2484 = vpack.c.b16 %v2360, %v2356
    %v2485 = vpack.c.b16 %v2365, %v2361
    %v2486 = vpack.c.b16 %v2366, %v2362
    %v2487 = vpack.c.b16 %v2367, %v2363
    %v2488 = vpack.c.b16 %v2368, %v2364
    %v2489 = vpack.c.b16 %v2373, %v2369
    %v2490 = vpack.c.b16 %v2374, %v2370
    %v2491 = vpack.c.b16 %v2375, %v2371
    %v2492 = vpack.c.b16 %v2376, %v2372
    %v2493 = vpack.c.b16 %v2381, %v2377
    %v2494 = vpack.c.b16 %v2382, %v2378
    %v2495 = vpack.c.b16 %v2383, %v2379
    %v2496 = vpack.c.b16 %v2384, %v2380
    %v2497 = vpack.c.b16 %v2389, %v2385
    %v2498 = vpack.c.b16 %v2390, %v2386
    %v2499 = vpack.c.b16 %v2391, %v2387
    %v2500 = vpack.c.b16 %v2392, %v2388
    %v2501 = vpack.c.b16 %v2397, %v2393
    %v2502 = vpack.c.b16 %v2398, %v2394
    %v2503 = vpack.c.b16 %v2399, %v2395
    %v2504 = vpack.c.b16 %v2400, %v2396
    %v2505 = vpack.c.b16 %v2405, %v2401
    %v2506 = vpack.c.b16 %v2406, %v2402
    %v2507 = vpack.c.b16 %v2407, %v2403
    %v2508 = vpack.c.b16 %v2408, %v2404
    %v2509 = vpack.c.b16 %v2413, %v2409
    %v2510 = vpack.c.b16 %v2414, %v2410
    %v2511 = vpack.c.b16 %v2415, %v2411
    %v2512 = vpack.c.b16 %v2416, %v2412
    %v2513 = vpack.c.b16 %v2421, %v2417
    %v2514 = vpack.c.b16 %v2422, %v2418
    %v2515 = vpack.c.b16 %v2423, %v2419
    %v2516 = vpack.c.b16 %v2424, %v2420
    %v2517 = vpack.c.b16 %v2429, %v2425
    %v2518 = vpack.c.b16 %v2430, %v2426
    %v2519 = vpack.c.b16 %v2431, %v2427
    %v2520 = vpack.c.b16 %v2432, %v2428
    %v2521 = vpack.c.b16 %v2437, %v2433
    %v2522 = vpack.c.b16 %v2438, %v2434
    %v2523 = vpack.c.b16 %v2439, %v2435
    %v2524 = vpack.c.b16 %v2440, %v2436
    %v2525 = vpack.c.b16 %v2445, %v2441
    %v2526 = vpack.c.b16 %v2446, %v2442
    %v2527 = vpack.c.b16 %v2447, %v2443
    %v2528 = vpack.c.b16 %v2448, %v2444
    %v2529 = vpack.c.b16 %v2453, %v2449
    %v2530 = vpack.c.b16 %v2454, %v2450
    %v2531 = vpack.c.b16 %v2455, %v2451
    %v2532 = vpack.c.b16 %v2456, %v2452
    %v2533 = vpack.c.b16 %v2461, %v2457
    %v2534 = vpack.c.b16 %v2462, %v2458
    %v2535 = vpack.c.b16 %v2463, %v2459
    %v2536 = vpack.c.b16 %v2464, %v2460
    %v2537 = vpack.c.b16 %v2469, %v2465
    %v2538 = vpack.c.b16 %v2470, %v2466
    %v2539 = vpack.c.b16 %v2471, %v2467
    %v2540 = vpack.c.b16 %v2472, %v2468
    %v2541 = vpack.c.b16 %v2477, %v2473
    %v2542 = vpack.c.b16 %v2478, %v2474
    %v2543 = vpack.c.b16 %v2479, %v2475
    %v2544 = vpack.c.b16 %v2480, %v2476
    %2609 = vmatpush.bf16.msra.mxu0 %v2509
    %2610 = vmatpush.bf16.msra.mxu0 %v2505
    %2611 = vmatpush.bf16.msra.mxu0 %v2501
    %2612 = vmatpush.bf16.msra.mxu0 %v2497
    %2613 = vmatpush.bf16.msra.mxu0 %v2493
    %2614 = vmatpush.bf16.msra.mxu0 %v2489
    %2615 = vmatpush.bf16.msra.mxu0 %v2485
    %2616 = vmatpush.bf16.msra.mxu0 %v2481
    %2617 = vmatmul.bf16.gmra.mxu0 %v2213
    %v2618 = vpop.f32.mrf.mxu0
    %v2619 = vadd.f32 %v2281, %v2618
    %v2620 = vpop.f32.mrf.mxu0
    %v2621 = vadd.f32 %v2281, %v2620
    %2622 = vdwg.mxu0
    %2623 = vmatpush.bf16.msra.mxu0 %v2541
    %2624 = vmatpush.bf16.msra.mxu0 %v2537
    %2625 = vmatpush.bf16.msra.mxu0 %v2533
    %2626 = vmatpush.bf16.msra.mxu0 %v2529
    %2627 = vmatpush.bf16.msra.mxu0 %v2525
    %2628 = vmatpush.bf16.msra.mxu0 %v2521
    %2629 = vmatpush.bf16.msra.mxu0 %v2517
    %2630 = vmatpush.bf16.msra.mxu0 %v2513
    %2631 = vmatmul.bf16.gmra.mxu0 %v2214
    %v2632 = vpop.f32.mrf.mxu0
    %v2633 = vadd.f32 %v2619, %v2632
    %v2634 = vpop.f32.mrf.mxu0
    %v2635 = vadd.f32 %v2621, %v2634
    %2636 = vdwg.mxu0
    %2637 = vmatpush.bf16.msra.mxu0 %v2510
    %2638 = vmatpush.bf16.msra.mxu0 %v2506
    %2639 = vmatpush.bf16.msra.mxu0 %v2502
    %2640 = vmatpush.bf16.msra.mxu0 %v2498
    %2641 = vmatpush.bf16.msra.mxu0 %v2494
    %2642 = vmatpush.bf16.msra.mxu0 %v2490
    %2643 = vmatpush.bf16.msra.mxu0 %v2486
    %2644 = vmatpush.bf16.msra.mxu0 %v2482
    %2645 = vmatmul.bf16.gmra.mxu0 %v2213
    %v2646 = vpop.f32.mrf.mxu0
    %v2647 = vadd.f32 %v2282, %v2646
    %v2648 = vpop.f32.mrf.mxu0
    %v2649 = vadd.f32 %v2282, %v2648
    %2650 = vdwg.mxu0
    %2651 = vmatpush.bf16.msra.mxu0 %v2542
    %2652 = vmatpush.bf16.msra.mxu0 %v2538
    %2653 = vmatpush.bf16.msra.mxu0 %v2534
    %2654 = vmatpush.bf16.msra.mxu0 %v2530
    %2655 = vmatpush.bf16.msra.mxu0 %v2526
    %2656 = vmatpush.bf16.msra.mxu0 %v2522
    %2657 = vmatpush.bf16.msra.mxu0 %v2518
    %2658 = vmatpush.bf16.msra.mxu0 %v2514
    %2659 = vmatmul.bf16.gmra.mxu0 %v2214
    %v2660 = vpop.f32.mrf.mxu0
    %v2661 = vadd.f32 %v2647, %v2660
    %v2662 = vpop.f32.mrf.mxu0
    %v2663 = vadd.f32 %v2649, %v2662
    %2664 = vdwg.mxu0
    %2665 = vmatpush.bf16.msra.mxu0 %v2511
    %2666 = vmatpush.bf16.msra.mxu0 %v2507
    %2667 = vmatpush.bf16.msra.mxu0 %v2503
    %2668 = vmatpush.bf16.msra.mxu0 %v2499
    %2669 = vmatpush.bf16.msra.mxu0 %v2495
    %2670 = vmatpush.bf16.msra.mxu0 %v2491
    %2671 = vmatpush.bf16.msra.mxu0 %v2487
    %2672 = vmatpush.bf16.msra.mxu0 %v2483
    %2673 = vmatmul.bf16.gmra.mxu0 %v2213
    %v2674 = vpop.f32.mrf.mxu0
    %v2675 = vadd.f32 %v2283, %v2674
    %v2676 = vpop.f32.mrf.mxu0
    %v2677 = vadd.f32 %v2283, %v2676
    %2678 = vdwg.mxu0
    %2679 = vmatpush.bf16.msra.mxu0 %v2543
    %2680 = vmatpush.bf16.msra.mxu0 %v2539
    %2681 = vmatpush.bf16.msra.mxu0 %v2535
    %2682 = vmatpush.bf16.msra.mxu0 %v2531
    %2683 = vmatpush.bf16.msra.mxu0 %v2527
    %2684 = vmatpush.bf16.msra.mxu0 %v2523
    %2685 = vmatpush.bf16.msra.mxu0 %v2519
    %2686 = vmatpush.bf16.msra.mxu0 %v2515
    %2687 = vmatmul.bf16.gmra.mxu0 %v2214
    %v2688 = vpop.f32.mrf.mxu0
    %v2689 = vadd.f32 %v2675, %v2688
    %v2690 = vpop.f32.mrf.mxu0
    %v2691 = vadd.f32 %v2677, %v2690
    %2692 = vdwg.mxu0
    %2693 = vmatpush.bf16.msra.mxu0 %v2512
    %2694 = vmatpush.bf16.msra.mxu0 %v2508
    %2695 = vmatpush.bf16.msra.mxu0 %v2504
    %2696 = vmatpush.bf16.msra.mxu0 %v2500
    %2697 = vmatpush.bf16.msra.mxu0 %v2496
    %2698 = vmatpush.bf16.msra.mxu0 %v2492
    %2699 = vmatpush.bf16.msra.mxu0 %v2488
    %2700 = vmatpush.bf16.msra.mxu0 %v2484
    %2701 = vmatmul.bf16.gmra.mxu0 %v2213
    %v2702 = vpop.f32.mrf.mxu0
    %v2703 = vadd.f32 %v2284, %v2702
    %v2704 = vpop.f32.mrf.mxu0
    %v2705 = vadd.f32 %v2284, %v2704
    %2706 = vdwg.mxu0
    %2707 = vmatpush.bf16.msra.mxu0 %v2544
    %2708 = vmatpush.bf16.msra.mxu0 %v2540
    %2709 = vmatpush.bf16.msra.mxu0 %v2536
    %2710 = vmatpush.bf16.msra.mxu0 %v2532
    %2711 = vmatpush.bf16.msra.mxu0 %v2528
    %2712 = vmatpush.bf16.msra.mxu0 %v2524
    %2713 = vmatpush.bf16.msra.mxu0 %v2520
    %2714 = vmatpush.bf16.msra.mxu0 %v2516
    %2715 = vmatmul.bf16.gmra.mxu0 %v2214
    %v2716 = vpop.f32.mrf.mxu0
    %v2717 = vadd.f32 %v2703, %v2716
    %v2718 = vpop.f32.mrf.mxu0
    %v2719 = vadd.f32 %v2705, %v2718
    %2720 = vdwg.mxu0
    %v2721 = vadd.f32 %v1615, %v2633
    %v2722 = vadd.f32 %v1643, %v2661
    %v2723 = vadd.f32 %v1671, %v2689
    %v2724 = vadd.f32 %v1699, %v2717
    %v2725 = vadd.f32 %v1617, %v2635
    %v2726 = vadd.f32 %v1645, %v2663
    %v2727 = vadd.f32 %v1673, %v2691
    %v2728 = vadd.f32 %v1701, %v2719
    %v2729 = vmul.f32 %v2721, %v286
    %v2730 = vmul.f32 %v2722, %v286
    %v2731 = vmul.f32 %v2723, %v286
    %v2732 = vmul.f32 %v2724, %v286
    %v2733 = vmul.f32 %v2725, %v291
    %v2734 = vmul.f32 %v2726, %v291
    %v2735 = vmul.f32 %v2727, %v291
    %v2736 = vmul.f32 %v2728, %v291
    %v2737 = vadd.f32 %v2729, %v2733
    %v2738 = vrot.slane %v2737, 4
    %v2739 = vadd.f32 %v2737, %v2738
    %v2740 = vrot.slane %v2739, 2
    %v2741 = vadd.f32 %v2739, %v2740
    %v2742 = vrot.slane %v2741, 1
    %v2743 = vadd.f32 %v2741, %v2742
    %v2744 = vadd.f32 %v2730, %v2734
    %v2745 = vrot.slane %v2744, 4
    %v2746 = vadd.f32 %v2744, %v2745
    %v2747 = vrot.slane %v2746, 2
    %v2748 = vadd.f32 %v2746, %v2747
    %v2749 = vrot.slane %v2748, 1
    %v2750 = vadd.f32 %v2748, %v2749
    %v2751 = vadd.f32 %v2731, %v2735
    %v2752 = vrot.slane %v2751, 4
    %v2753 = vadd.f32 %v2751, %v2752
    %v2754 = vrot.slane %v2753, 2
    %v2755 = vadd.f32 %v2753, %v2754
    %v2756 = vrot.slane %v2755, 1
    %v2757 = vadd.f32 %v2755, %v2756
    %v2758 = vadd.f32 %v2732, %v2736
    %v2759 = vrot.slane %v2758, 4
    %v2760 = vadd.f32 %v2758, %v2759
    %v2761 = vrot.slane %v2760, 2
    %v2762 = vadd.f32 %v2760, %v2761
    %v2763 = vrot.slane %v2762, 1
    %v2764 = vadd.f32 %v2762, %v2763
    %v2765 = vmul.f32 %v2743, %v304
    %v2766 = vmul.f32 %v2750, %v304
    %v2767 = vmul.f32 %v2757, %v304
    %v2768 = vmul.f32 %v2764, %v304
    %v2769 = vsub.f32 %v2721, %v2765
    %v2770 = vsub.f32 %v2722, %v2766
    %v2771 = vsub.f32 %v2723, %v2767
    %v2772 = vsub.f32 %v2724, %v2768
    %v2773 = vsub.f32 %v2725, %v2765
    %v2774 = vsub.f32 %v2726, %v2766
    %v2775 = vsub.f32 %v2727, %v2767
    %v2776 = vsub.f32 %v2728, %v2768
    %v2777 = vmul.f32 %v2769, %v286
    %v2778 = vmul.f32 %v2770, %v286
    %v2779 = vmul.f32 %v2771, %v286
    %v2780 = vmul.f32 %v2772, %v286
    %v2781 = vmul.f32 %v2773, %v291
    %v2782 = vmul.f32 %v2774, %v291
    %v2783 = vmul.f32 %v2775, %v291
    %v2784 = vmul.f32 %v2776, %v291
    %v2785 = vmul.f32 %v2777, %v2777
    %v2786 = vmul.f32 %v2778, %v2778
    %v2787 = vmul.f32 %v2779, %v2779
    %v2788 = vmul.f32 %v2780, %v2780
    %v2789 = vmul.f32 %v2781, %v2781
    %v2790 = vmul.f32 %v2782, %v2782
    %v2791 = vmul.f32 %v2783, %v2783
    %v2792 = vmul.f32 %v2784, %v2784
    %v2793 = vadd.f32 %v2785, %v2789
    %v2794 = vrot.slane %v2793, 4
    %v2795 = vadd.f32 %v2793, %v2794
    %v2796 = vrot.slane %v2795, 2
    %v2797 = vadd.f32 %v2795, %v2796
    %v2798 = vrot.slane %v2797, 1
    %v2799 = vadd.f32 %v2797, %v2798
    %v2800 = vadd.f32 %v2786, %v2790
    %v2801 = vrot.slane %v2800, 4
    %v2802 = vadd.f32 %v2800, %v2801
    %v2803 = vrot.slane %v2802, 2
    %v2804 = vadd.f32 %v2802, %v2803
    %v2805 = vrot.slane %v2804, 1
    %v2806 = vadd.f32 %v2804, %v2805
    %v2807 = vadd.f32 %v2787, %v2791
    %v2808 = vrot.slane %v2807, 4
    %v2809 = vadd.f32 %v2807, %v2808
    %v2810 = vrot.slane %v2809, 2
    %v2811 = vadd.f32 %v2809, %v2810
    %v2812 = vrot.slane %v2811, 1
    %v2813 = vadd.f32 %v2811, %v2812
    %v2814 = vadd.f32 %v2788, %v2792
    %v2815 = vrot.slane %v2814, 4
    %v2816 = vadd.f32 %v2814, %v2815
    %v2817 = vrot.slane %v2816, 2
    %v2818 = vadd.f32 %v2816, %v2817
    %v2819 = vrot.slane %v2818, 1
    %v2820 = vadd.f32 %v2818, %v2819
    %v2821 = vmul.f32 %v2799, %v304
    %v2822 = vmul.f32 %v2806, %v304
    %v2823 = vmul.f32 %v2813, %v304
    %v2824 = vmul.f32 %v2820, %v304
    %v2825 = vadd.f32 %v2821, 1e-05
    %v2826 = vadd.f32 %v2822, 1e-05
    %v2827 = vadd.f32 %v2823, 1e-05
    %v2828 = vadd.f32 %v2824, 1e-05
    %v2829 = vrsqrt.pop %v2825
    %v2830 = vmul.f32 %v2829, %v2825
    %v2831 = vmul.f32 %v2830, %v2829
    %v2832 = vmul.f32 0.5, %v2831
    %v2833 = vsub.f32 1.5, %v2832
    %v2834 = vmul.f32 %v2829, %v2833
    %vm2835 = vweird.f32 %v2825
    %vm2836 = vweird.f32 %v2829
    %vm2837 = vmor %vm2835, %vm2836
    %v2838 = vsel %vm2837, %v2829, %v2834
    %v2839 = vrsqrt.pop %v2826
    %v2840 = vmul.f32 %v2839, %v2826
    %v2841 = vmul.f32 %v2840, %v2839
    %v2842 = vmul.f32 0.5, %v2841
    %v2843 = vsub.f32 1.5, %v2842
    %v2844 = vmul.f32 %v2839, %v2843
    %vm2845 = vweird.f32 %v2826
    %vm2846 = vweird.f32 %v2839
    %vm2847 = vmor %vm2845, %vm2846
    %v2848 = vsel %vm2847, %v2839, %v2844
    %v2849 = vrsqrt.pop %v2827
    %v2850 = vmul.f32 %v2849, %v2827
    %v2851 = vmul.f32 %v2850, %v2849
    %v2852 = vmul.f32 0.5, %v2851
    %v2853 = vsub.f32 1.5, %v2852
    %v2854 = vmul.f32 %v2849, %v2853
    %vm2855 = vweird.f32 %v2827
    %vm2856 = vweird.f32 %v2849
    %vm2857 = vmor %vm2855, %vm2856
    %v2858 = vsel %vm2857, %v2849, %v2854
    %v2859 = vrsqrt.pop %v2828
    %v2860 = vmul.f32 %v2859, %v2828
    %v2861 = vmul.f32 %v2860, %v2859
    %v2862 = vmul.f32 0.5, %v2861
    %v2863 = vsub.f32 1.5, %v2862
    %v2864 = vmul.f32 %v2859, %v2863
    %vm2865 = vweird.f32 %v2828
    %vm2866 = vweird.f32 %v2859
    %vm2867 = vmor %vm2865, %vm2866
    %v2868 = vsel %vm2867, %v2859, %v2864
    %v2869 = vmul.f32 %v2769, %v2838
    %v2870 = vmul.f32 %v2770, %v2848
    %v2871 = vmul.f32 %v2771, %v2858
    %v2872 = vmul.f32 %v2772, %v2868
    %v2873 = vmul.f32 %v2773, %v2838
    %v2874 = vmul.f32 %v2774, %v2848
    %v2875 = vmul.f32 %v2775, %v2858
    %v2876 = vmul.f32 %v2776, %v2868
    %v2877 = vld [vmem:[%s1] sm:$0xff]
    %v2878 = vld [vmem:[%s1 + $0x8] sm:$0xff]
    %v2879 = vld [vmem:[%s3 + $0x1d] sm:$0xf]
    %2881 = vset.pattern.permute.xlu0 3
    %2882 = vperm.xlu0 %2881, %v2877
    %v2883 = vpop.permute.xlu0 %2882
    %2886 = vset.pattern.permute.xlu0 3
    %2887 = vperm.xlu0 %2886, %v2878
    %v2888 = vpop.permute.xlu0 %2887
    %v2891 = vperm.slane %v2879, 0
    %v2892 = vperm.slane %v2879, 1
    %v2893 = vperm.slane %v2879, 2
    %v2894 = vperm.slane %v2879, 3
    %v2899 = vadd.f32 %v2883, %v2891
    %v2900 = vadd.f32 %v2883, %v2892
    %v2901 = vadd.f32 %v2883, %v2893
    %v2902 = vadd.f32 %v2883, %v2894
    %v2903 = vadd.f32 %v2888, %v2891
    %v2904 = vadd.f32 %v2888, %v2892
    %v2905 = vadd.f32 %v2888, %v2893
    %v2906 = vadd.f32 %v2888, %v2894
    %v2907 = vmul.f32 %v2899, %v2869
    %v2908 = vmul.f32 %v2900, %v2870
    %v2909 = vmul.f32 %v2901, %v2871
    %v2910 = vmul.f32 %v2902, %v2872
    %v2911 = vmul.f32 %v2903, %v2873
    %v2912 = vmul.f32 %v2904, %v2874
    %v2913 = vmul.f32 %v2905, %v2875
    %v2914 = vmul.f32 %v2906, %v2876
    %v2915 = vld [vmem:[%s3 + $0x21] sm:$0xf]
    %v2917 = vperm.slane %v2915, 0
    %v2918 = vperm.slane %v2915, 1
    %v2919 = vperm.slane %v2915, 2
    %v2920 = vperm.slane %v2915, 3
    %v2925 = vadd.f32 %v2883, %v2917
    %v2926 = vadd.f32 %v2883, %v2918
    %v2927 = vadd.f32 %v2883, %v2919
    %v2928 = vadd.f32 %v2883, %v2920
    %v2929 = vadd.f32 %v2888, %v2917
    %v2930 = vadd.f32 %v2888, %v2918
    %v2931 = vadd.f32 %v2888, %v2919
    %v2932 = vadd.f32 %v2888, %v2920
    %v2933 = vadd.f32 %v2907, %v2925
    %v2934 = vadd.f32 %v2908, %v2926
    %v2935 = vadd.f32 %v2909, %v2927
    %v2936 = vadd.f32 %v2910, %v2928
    %v2937 = vadd.f32 %v2911, %v2929
    %v2938 = vadd.f32 %v2912, %v2930
    %v2939 = vadd.f32 %v2913, %v2931
    %v2940 = vadd.f32 %v2914, %v2932
    %vm2941 = vcmp.ge.f32.partialorder %v2933, 0.0
    %vm2942 = vcmp.ge.f32.partialorder %v2934, 0.0
    %vm2943 = vcmp.ge.f32.partialorder %v2935, 0.0
    %vm2944 = vcmp.ge.f32.partialorder %v2936, 0.0
    %vm2945 = vcmp.ge.f32.partialorder %v2937, 0.0
    %vm2946 = vcmp.ge.f32.partialorder %v2938, 0.0
    %vm2947 = vcmp.ge.f32.partialorder %v2939, 0.0
    %vm2948 = vcmp.ge.f32.partialorder %v2940, 0.0
    %v2949 = vmul.f32 %v2933, 0.2
    %v2950 = vmul.f32 %v2934, 0.2
    %v2951 = vmul.f32 %v2935, 0.2
    %v2952 = vmul.f32 %v2936, 0.2
    %v2953 = vmul.f32 %v2937, 0.2
    %v2954 = vmul.f32 %v2938, 0.2
    %v2955 = vmul.f32 %v2939, 0.2
    %v2956 = vmul.f32 %v2940, 0.2
    %v2957 = vsel %vm2941, %v2933, %v2949
    %v2958 = vsel %vm2942, %v2934, %v2950
    %v2959 = vsel %vm2943, %v2935, %v2951
    %v2960 = vsel %vm2944, %v2936, %v2952
    %v2961 = vsel %vm2945, %v2937, %v2953
    %v2962 = vsel %vm2946, %v2938, %v2954
    %v2963 = vsel %vm2947, %v2939, %v2955
    %v2964 = vsel %vm2948, %v2940, %v2956
    %v2965 = vpack.c.bf16 %v2961, %v2957
    %v2966 = vpack.c.bf16 %v2962, %v2958
    %v2967 = vpack.c.bf16 %v2963, %v2959
    %v2968 = vpack.c.bf16 %v2964, %v2960
    %v2969 = vld [vmem:[#allocation6 + $0x8] sm:$0xff]
    %v2970 = vld [vmem:[#allocation6 + $0x18] sm:$0xff]
    %v2971 = vld [vmem:[#allocation6 + $0x28] sm:$0xff]
    %v2972 = vld [vmem:[#allocation6 + $0x38] sm:$0xff]
    %v2973 = vld [vmem:[#allocation6 + $0x48] sm:$0xff]
    %v2974 = vld [vmem:[#allocation6 + $0x58] sm:$0xff]
    %v2975 = vld [vmem:[#allocation6 + $0x68] sm:$0xff]
    %v2976 = vld [vmem:[#allocation6 + $0x78] sm:$0xff]
    %v2977 = vld [vmem:[#allocation6 + $0x88] sm:$0xff]
    %v2978 = vld [vmem:[#allocation6 + $0x98] sm:$0xff]
    %v2979 = vld [vmem:[#allocation6 + $0xa8] sm:$0xff]
    %v2980 = vld [vmem:[#allocation6 + $0xb8] sm:$0xff]
    %v2981 = vld [vmem:[#allocation6 + $0xc8] sm:$0xff]
    %v2982 = vld [vmem:[#allocation6 + $0xd8] sm:$0xff]
    %v2983 = vld [vmem:[#allocation6 + $0xe8] sm:$0xff]
    %v2984 = vld [vmem:[#allocation6 + $0xf8] sm:$0xff]
    %v2985 = vld [vmem:[#allocation6 + $0x108] sm:$0xff]
    %v2986 = vld [vmem:[#allocation6 + $0x118] sm:$0xff]
    %v2987 = vld [vmem:[#allocation6 + $0x128] sm:$0xff]
    %v2988 = vld [vmem:[#allocation6 + $0x138] sm:$0xff]
    %v2989 = vld [vmem:[#allocation6 + $0x148] sm:$0xff]
    %v2990 = vld [vmem:[#allocation6 + $0x158] sm:$0xff]
    %v2991 = vld [vmem:[#allocation6 + $0x168] sm:$0xff]
    %v2992 = vld [vmem:[#allocation6 + $0x178] sm:$0xff]
    %v2993 = vld [vmem:[#allocation6 + $0x188] sm:$0xff]
    %v2994 = vld [vmem:[#allocation6 + $0x198] sm:$0xff]
    %v2995 = vld [vmem:[#allocation6 + $0x1a8] sm:$0xff]
    %v2996 = vld [vmem:[#allocation6 + $0x1b8] sm:$0xff]
    %v2997 = vld [vmem:[#allocation6 + $0x1c8] sm:$0xff]
    %v2998 = vld [vmem:[#allocation6 + $0x1d8] sm:$0xff]
    %v2999 = vld [vmem:[#allocation6 + $0x1e8] sm:$0xff]
    %v3000 = vld [vmem:[#allocation6 + $0x1f8] sm:$0xff]
    %v3001 = vld [vmem:[#allocation6 + $0x208] sm:$0xff]
    %v3002 = vld [vmem:[#allocation6 + $0x218] sm:$0xff]
    %v3003 = vld [vmem:[#allocation6 + $0x228] sm:$0xff]
    %v3004 = vld [vmem:[#allocation6 + $0x238] sm:$0xff]
    %v3005 = vld [vmem:[#allocation6 + $0x248] sm:$0xff]
    %v3006 = vld [vmem:[#allocation6 + $0x258] sm:$0xff]
    %v3007 = vld [vmem:[#allocation6 + $0x268] sm:$0xff]
    %v3008 = vld [vmem:[#allocation6 + $0x278] sm:$0xff]
    %v3009 = vld [vmem:[#allocation6 + $0x288] sm:$0xff]
    %v3010 = vld [vmem:[#allocation6 + $0x298] sm:$0xff]
    %v3011 = vld [vmem:[#allocation6 + $0x2a8] sm:$0xff]
    %v3012 = vld [vmem:[#allocation6 + $0x2b8] sm:$0xff]
    %v3013 = vld [vmem:[#allocation6 + $0x2c8] sm:$0xff]
    %v3014 = vld [vmem:[#allocation6 + $0x2d8] sm:$0xff]
    %v3015 = vld [vmem:[#allocation6 + $0x2e8] sm:$0xff]
    %v3016 = vld [vmem:[#allocation6 + $0x2f8] sm:$0xff]
    %v3017 = vld [vmem:[#allocation6 + $0x308] sm:$0xff]
    %v3018 = vld [vmem:[#allocation6 + $0x318] sm:$0xff]
    %v3019 = vld [vmem:[#allocation6 + $0x328] sm:$0xff]
    %v3020 = vld [vmem:[#allocation6 + $0x338] sm:$0xff]
    %v3021 = vld [vmem:[#allocation6 + $0x348] sm:$0xff]
    %v3022 = vld [vmem:[#allocation6 + $0x358] sm:$0xff]
    %v3023 = vld [vmem:[#allocation6 + $0x368] sm:$0xff]
    %v3024 = vld [vmem:[#allocation6 + $0x378] sm:$0xff]
    %v3025 = vld [vmem:[#allocation6 + $0x388] sm:$0xff]
    %v3026 = vld [vmem:[#allocation6 + $0x398] sm:$0xff]
    %v3027 = vld [vmem:[#allocation6 + $0x3a8] sm:$0xff]
    %v3028 = vld [vmem:[#allocation6 + $0x3b8] sm:$0xff]
    %v3029 = vld [vmem:[#allocation6 + $0x3c8] sm:$0xff]
    %v3030 = vld [vmem:[#allocation6 + $0x3d8] sm:$0xff]
    %v3031 = vld [vmem:[#allocation6 + $0x3e8] sm:$0xff]
    %v3032 = vld [vmem:[#allocation6 + $0x3f8] sm:$0xff]
    %v3033 = vld [vmem:[%s3 + $0x25] sm:$0x3]
    %v3035 = vperm.slane %v3033, 0
    %v3036 = vperm.slane %v3033, 1
    %v3103 = vunpack.c.l.b16 %v2969
    %v3104 = vunpack.c.h.b16 %v2969
    %v3105 = vunpack.c.l.b16 %v2970
    %v3106 = vunpack.c.h.b16 %v2970
    %v3107 = vunpack.c.l.b16 %v2971
    %v3108 = vunpack.c.h.b16 %v2971
    %v3109 = vunpack.c.l.b16 %v2972
    %v3110 = vunpack.c.h.b16 %v2972
    %v3111 = vunpack.c.l.b16 %v2973
    %v3112 = vunpack.c.h.b16 %v2973
    %v3113 = vunpack.c.l.b16 %v2974
    %v3114 = vunpack.c.h.b16 %v2974
    %v3115 = vunpack.c.l.b16 %v2975
    %v3116 = vunpack.c.h.b16 %v2975
    %v3117 = vunpack.c.l.b16 %v2976
    %v3118 = vunpack.c.h.b16 %v2976
    %v3119 = vunpack.c.l.b16 %v2977
    %v3120 = vunpack.c.h.b16 %v2977
    %v3121 = vunpack.c.l.b16 %v2978
    %v3122 = vunpack.c.h.b16 %v2978
    %v3123 = vunpack.c.l.b16 %v2979
    %v3124 = vunpack.c.h.b16 %v2979
    %v3125 = vunpack.c.l.b16 %v2980
    %v3126 = vunpack.c.h.b16 %v2980
    %v3127 = vunpack.c.l.b16 %v2981
    %v3128 = vunpack.c.h.b16 %v2981
    %v3129 = vunpack.c.l.b16 %v2982
    %v3130 = vunpack.c.h.b16 %v2982
    %v3131 = vunpack.c.l.b16 %v2983
    %v3132 = vunpack.c.h.b16 %v2983
    %v3133 = vunpack.c.l.b16 %v2984
    %v3134 = vunpack.c.h.b16 %v2984
    %v3135 = vunpack.c.l.b16 %v2985
    %v3136 = vunpack.c.h.b16 %v2985
    %v3137 = vunpack.c.l.b16 %v2986
    %v3138 = vunpack.c.h.b16 %v2986
    %v3139 = vunpack.c.l.b16 %v2987
    %v3140 = vunpack.c.h.b16 %v2987
    %v3141 = vunpack.c.l.b16 %v2988
    %v3142 = vunpack.c.h.b16 %v2988
    %v3143 = vunpack.c.l.b16 %v2989
    %v3144 = vunpack.c.h.b16 %v2989
    %v3145 = vunpack.c.l.b16 %v2990
    %v3146 = vunpack.c.h.b16 %v2990
    %v3147 = vunpack.c.l.b16 %v2991
    %v3148 = vunpack.c.h.b16 %v2991
    %v3149 = vunpack.c.l.b16 %v2992
    %v3150 = vunpack.c.h.b16 %v2992
    %v3151 = vunpack.c.l.b16 %v2993
    %v3152 = vunpack.c.h.b16 %v2993
    %v3153 = vunpack.c.l.b16 %v2994
    %v3154 = vunpack.c.h.b16 %v2994
    %v3155 = vunpack.c.l.b16 %v2995
    %v3156 = vunpack.c.h.b16 %v2995
    %v3157 = vunpack.c.l.b16 %v2996
    %v3158 = vunpack.c.h.b16 %v2996
    %v3159 = vunpack.c.l.b16 %v2997
    %v3160 = vunpack.c.h.b16 %v2997
    %v3161 = vunpack.c.l.b16 %v2998
    %v3162 = vunpack.c.h.b16 %v2998
    %v3163 = vunpack.c.l.b16 %v2999
    %v3164 = vunpack.c.h.b16 %v2999
    %v3165 = vunpack.c.l.b16 %v3000
    %v3166 = vunpack.c.h.b16 %v3000
    %v3167 = vunpack.c.l.b16 %v3001
    %v3168 = vunpack.c.h.b16 %v3001
    %v3169 = vunpack.c.l.b16 %v3002
    %v3170 = vunpack.c.h.b16 %v3002
    %v3171 = vunpack.c.l.b16 %v3003
    %v3172 = vunpack.c.h.b16 %v3003
    %v3173 = vunpack.c.l.b16 %v3004
    %v3174 = vunpack.c.h.b16 %v3004
    %v3175 = vunpack.c.l.b16 %v3005
    %v3176 = vunpack.c.h.b16 %v3005
    %v3177 = vunpack.c.l.b16 %v3006
    %v3178 = vunpack.c.h.b16 %v3006
    %v3179 = vunpack.c.l.b16 %v3007
    %v3180 = vunpack.c.h.b16 %v3007
    %v3181 = vunpack.c.l.b16 %v3008
    %v3182 = vunpack.c.h.b16 %v3008
    %v3183 = vunpack.c.l.b16 %v3009
    %v3184 = vunpack.c.h.b16 %v3009
    %v3185 = vunpack.c.l.b16 %v3010
    %v3186 = vunpack.c.h.b16 %v3010
    %v3187 = vunpack.c.l.b16 %v3011
    %v3188 = vunpack.c.h.b16 %v3011
    %v3189 = vunpack.c.l.b16 %v3012
    %v3190 = vunpack.c.h.b16 %v3012
    %v3191 = vunpack.c.l.b16 %v3013
    %v3192 = vunpack.c.h.b16 %v3013
    %v3193 = vunpack.c.l.b16 %v3014
    %v3194 = vunpack.c.h.b16 %v3014
    %v3195 = vunpack.c.l.b16 %v3015
    %v3196 = vunpack.c.h.b16 %v3015
    %v3197 = vunpack.c.l.b16 %v3016
    %v3198 = vunpack.c.h.b16 %v3016
    %v3199 = vunpack.c.l.b16 %v3017
    %v3200 = vunpack.c.h.b16 %v3017
    %v3201 = vunpack.c.l.b16 %v3018
    %v3202 = vunpack.c.h.b16 %v3018
    %v3203 = vunpack.c.l.b16 %v3019
    %v3204 = vunpack.c.h.b16 %v3019
    %v3205 = vunpack.c.l.b16 %v3020
    %v3206 = vunpack.c.h.b16 %v3020
    %v3207 = vunpack.c.l.b16 %v3021
    %v3208 = vunpack.c.h.b16 %v3021
    %v3209 = vunpack.c.l.b16 %v3022
    %v3210 = vunpack.c.h.b16 %v3022
    %v3211 = vunpack.c.l.b16 %v3023
    %v3212 = vunpack.c.h.b16 %v3023
    %v3213 = vunpack.c.l.b16 %v3024
    %v3214 = vunpack.c.h.b16 %v3024
    %v3215 = vunpack.c.l.b16 %v3025
    %v3216 = vunpack.c.h.b16 %v3025
    %v3217 = vunpack.c.l.b16 %v3026
    %v3218 = vunpack.c.h.b16 %v3026
    %v3219 = vunpack.c.l.b16 %v3027
    %v3220 = vunpack.c.h.b16 %v3027
    %v3221 = vunpack.c.l.b16 %v3028
    %v3222 = vunpack.c.h.b16 %v3028
    %v3223 = vunpack.c.l.b16 %v3029
    %v3224 = vunpack.c.h.b16 %v3029
    %v3225 = vunpack.c.l.b16 %v3030
    %v3226 = vunpack.c.h.b16 %v3030
    %v3227 = vunpack.c.l.b16 %v3031
    %v3228 = vunpack.c.h.b16 %v3031
    %v3229 = vunpack.c.l.b16 %v3032
    %v3230 = vunpack.c.h.b16 %v3032
    %v3231 = vpack.c.b16 %v3105, %v3103
    %v3232 = vpack.c.b16 %v3106, %v3104
    %v3233 = vpack.c.b16 %v3109, %v3107
    %v3234 = vpack.c.b16 %v3110, %v3108
    %v3235 = vpack.c.b16 %v3113, %v3111
    %v3236 = vpack.c.b16 %v3114, %v3112
    %v3237 = vpack.c.b16 %v3117, %v3115
    %v3238 = vpack.c.b16 %v3118, %v3116
    %v3239 = vpack.c.b16 %v3121, %v3119
    %v3240 = vpack.c.b16 %v3122, %v3120
    %v3241 = vpack.c.b16 %v3125, %v3123
    %v3242 = vpack.c.b16 %v3126, %v3124
    %v3243 = vpack.c.b16 %v3129, %v3127
    %v3244 = vpack.c.b16 %v3130, %v3128
    %v3245 = vpack.c.b16 %v3133, %v3131
    %v3246 = vpack.c.b16 %v3134, %v3132
    %v3247 = vpack.c.b16 %v3137, %v3135
    %v3248 = vpack.c.b16 %v3138, %v3136
    %v3249 = vpack.c.b16 %v3141, %v3139
    %v3250 = vpack.c.b16 %v3142, %v3140
    %v3251 = vpack.c.b16 %v3145, %v3143
    %v3252 = vpack.c.b16 %v3146, %v3144
    %v3253 = vpack.c.b16 %v3149, %v3147
    %v3254 = vpack.c.b16 %v3150, %v3148
    %v3255 = vpack.c.b16 %v3153, %v3151
    %v3256 = vpack.c.b16 %v3154, %v3152
    %v3257 = vpack.c.b16 %v3157, %v3155
    %v3258 = vpack.c.b16 %v3158, %v3156
    %v3259 = vpack.c.b16 %v3161, %v3159
    %v3260 = vpack.c.b16 %v3162, %v3160
    %v3261 = vpack.c.b16 %v3165, %v3163
    %v3262 = vpack.c.b16 %v3166, %v3164
    %v3263 = vpack.c.b16 %v3169, %v3167
    %v3264 = vpack.c.b16 %v3170, %v3168
    %v3265 = vpack.c.b16 %v3173, %v3171
    %v3266 = vpack.c.b16 %v3174, %v3172
    %v3267 = vpack.c.b16 %v3177, %v3175
    %v3268 = vpack.c.b16 %v3178, %v3176
    %v3269 = vpack.c.b16 %v3181, %v3179
    %v3270 = vpack.c.b16 %v3182, %v3180
    %v3271 = vpack.c.b16 %v3185, %v3183
    %v3272 = vpack.c.b16 %v3186, %v3184
    %v3273 = vpack.c.b16 %v3189, %v3187
    %v3274 = vpack.c.b16 %v3190, %v3188
    %v3275 = vpack.c.b16 %v3193, %v3191
    %v3276 = vpack.c.b16 %v3194, %v3192
    %v3277 = vpack.c.b16 %v3197, %v3195
    %v3278 = vpack.c.b16 %v3198, %v3196
    %v3279 = vpack.c.b16 %v3201, %v3199
    %v3280 = vpack.c.b16 %v3202, %v3200
    %v3281 = vpack.c.b16 %v3205, %v3203
    %v3282 = vpack.c.b16 %v3206, %v3204
    %v3283 = vpack.c.b16 %v3209, %v3207
    %v3284 = vpack.c.b16 %v3210, %v3208
    %v3285 = vpack.c.b16 %v3213, %v3211
    %v3286 = vpack.c.b16 %v3214, %v3212
    %v3287 = vpack.c.b16 %v3217, %v3215
    %v3288 = vpack.c.b16 %v3218, %v3216
    %v3289 = vpack.c.b16 %v3221, %v3219
    %v3290 = vpack.c.b16 %v3222, %v3220
    %v3291 = vpack.c.b16 %v3225, %v3223
    %v3292 = vpack.c.b16 %v3226, %v3224
    %v3293 = vpack.c.b16 %v3229, %v3227
    %v3294 = vpack.c.b16 %v3230, %v3228
    %3359 = vmatpush.bf16.msra.mxu0 %v3245
    %3360 = vmatpush.bf16.msra.mxu0 %v3243
    %3361 = vmatpush.bf16.msra.mxu0 %v3241
    %3362 = vmatpush.bf16.msra.mxu0 %v3239
    %3363 = vmatpush.bf16.msra.mxu0 %v3237
    %3364 = vmatpush.bf16.msra.mxu0 %v3235
    %3365 = vmatpush.bf16.msra.mxu0 %v3233
    %3366 = vmatpush.bf16.msra.mxu0 %v3231
    %3367 = vmatmul.bf16.gmra.mxu0 %v2965
    %v3368 = vpop.f32.mrf.mxu0
    %v3369 = vadd.f32 %v3035, %v3368
    %v3370 = vpop.f32.mrf.mxu0
    %v3371 = vadd.f32 %v3035, %v3370
    %3372 = vdwg.mxu0
    %3373 = vmatpush.bf16.msra.mxu0 %v3261
    %3374 = vmatpush.bf16.msra.mxu0 %v3259
    %3375 = vmatpush.bf16.msra.mxu0 %v3257
    %3376 = vmatpush.bf16.msra.mxu0 %v3255
    %3377 = vmatpush.bf16.msra.mxu0 %v3253
    %3378 = vmatpush.bf16.msra.mxu0 %v3251
    %3379 = vmatpush.bf16.msra.mxu0 %v3249
    %3380 = vmatpush.bf16.msra.mxu0 %v3247
    %3381 = vmatmul.bf16.gmra.mxu0 %v2966
    %v3382 = vpop.f32.mrf.mxu0
    %v3383 = vadd.f32 %v3369, %v3382
    %v3384 = vpop.f32.mrf.mxu0
    %v3385 = vadd.f32 %v3371, %v3384
    %3386 = vdwg.mxu0
    %3387 = vmatpush.bf16.msra.mxu0 %v3277
    %3388 = vmatpush.bf16.msra.mxu0 %v3275
    %3389 = vmatpush.bf16.msra.mxu0 %v3273
    %3390 = vmatpush.bf16.msra.mxu0 %v3271
    %3391 = vmatpush.bf16.msra.mxu0 %v3269
    %3392 = vmatpush.bf16.msra.mxu0 %v3267
    %3393 = vmatpush.bf16.msra.mxu0 %v3265
    %3394 = vmatpush.bf16.msra.mxu0 %v3263
    %3395 = vmatmul.bf16.gmra.mxu0 %v2967
    %v3396 = vpop.f32.mrf.mxu0
    %v3397 = vadd.f32 %v3383, %v3396
    %v3398 = vpop.f32.mrf.mxu0
    %v3399 = vadd.f32 %v3385, %v3398
    %3400 = vdwg.mxu0
    %3401 = vmatpush.bf16.msra.mxu0 %v3293
    %3402 = vmatpush.bf16.msra.mxu0 %v3291
    %3403 = vmatpush.bf16.msra.mxu0 %v3289
    %3404 = vmatpush.bf16.msra.mxu0 %v3287
    %3405 = vmatpush.bf16.msra.mxu0 %v3285
    %3406 = vmatpush.bf16.msra.mxu0 %v3283
    %3407 = vmatpush.bf16.msra.mxu0 %v3281
    %3408 = vmatpush.bf16.msra.mxu0 %v3279
    %3409 = vmatmul.bf16.gmra.mxu0 %v2968
    %v3410 = vpop.f32.mrf.mxu0
    %v3411 = vadd.f32 %v3397, %v3410
    %v3412 = vpop.f32.mrf.mxu0
    %v3413 = vadd.f32 %v3399, %v3412
    %3414 = vdwg.mxu0
    %3415 = vmatpush.bf16.msra.mxu0 %v3246
    %3416 = vmatpush.bf16.msra.mxu0 %v3244
    %3417 = vmatpush.bf16.msra.mxu0 %v3242
    %3418 = vmatpush.bf16.msra.mxu0 %v3240
    %3419 = vmatpush.bf16.msra.mxu0 %v3238
    %3420 = vmatpush.bf16.msra.mxu0 %v3236
    %3421 = vmatpush.bf16.msra.mxu0 %v3234
    %3422 = vmatpush.bf16.msra.mxu0 %v3232
    %3423 = vmatmul.bf16.gmra.mxu0 %v2965
    %v3424 = vpop.f32.mrf.mxu0
    %v3425 = vadd.f32 %v3036, %v3424
    %v3426 = vpop.f32.mrf.mxu0
    %v3427 = vadd.f32 %v3036, %v3426
    %3428 = vdwg.mxu0
    %3429 = vmatpush.bf16.msra.mxu0 %v3262
    %3430 = vmatpush.bf16.msra.mxu0 %v3260
    %3431 = vmatpush.bf16.msra.mxu0 %v3258
    %3432 = vmatpush.bf16.msra.mxu0 %v3256
    %3433 = vmatpush.bf16.msra.mxu0 %v3254
    %3434 = vmatpush.bf16.msra.mxu0 %v3252
    %3435 = vmatpush.bf16.msra.mxu0 %v3250
    %3436 = vmatpush.bf16.msra.mxu0 %v3248
    %3437 = vmatmul.bf16.gmra.mxu0 %v2966
    %v3438 = vpop.f32.mrf.mxu0
    %v3439 = vadd.f32 %v3425, %v3438
    %v3440 = vpop.f32.mrf.mxu0
    %v3441 = vadd.f32 %v3427, %v3440
    %3442 = vdwg.mxu0
    %3443 = vmatpush.bf16.msra.mxu0 %v3278
    %3444 = vmatpush.bf16.msra.mxu0 %v3276
    %3445 = vmatpush.bf16.msra.mxu0 %v3274
    %3446 = vmatpush.bf16.msra.mxu0 %v3272
    %3447 = vmatpush.bf16.msra.mxu0 %v3270
    %3448 = vmatpush.bf16.msra.mxu0 %v3268
    %3449 = vmatpush.bf16.msra.mxu0 %v3266
    %3450 = vmatpush.bf16.msra.mxu0 %v3264
    %3451 = vmatmul.bf16.gmra.mxu0 %v2967
    %v3452 = vpop.f32.mrf.mxu0
    %v3453 = vadd.f32 %v3439, %v3452
    %v3454 = vpop.f32.mrf.mxu0
    %v3455 = vadd.f32 %v3441, %v3454
    %3456 = vdwg.mxu0
    %3457 = vmatpush.bf16.msra.mxu0 %v3294
    %3458 = vmatpush.bf16.msra.mxu0 %v3292
    %3459 = vmatpush.bf16.msra.mxu0 %v3290
    %3460 = vmatpush.bf16.msra.mxu0 %v3288
    %3461 = vmatpush.bf16.msra.mxu0 %v3286
    %3462 = vmatpush.bf16.msra.mxu0 %v3284
    %3463 = vmatpush.bf16.msra.mxu0 %v3282
    %3464 = vmatpush.bf16.msra.mxu0 %v3280
    %3465 = vmatmul.bf16.gmra.mxu0 %v2968
    %v3466 = vpop.f32.mrf.mxu0
    %v3467 = vadd.f32 %v3453, %v3466
    %v3468 = vpop.f32.mrf.mxu0
    %v3469 = vadd.f32 %v3455, %v3468
    %3470 = vdwg.mxu0
    %v3471 = vpack.c.bf16 %v3413, %v3411
    %v3472 = vpack.c.bf16 %v3469, %v3467
    %v3473 = vld [vmem:[#allocation5 + $0x24] sm:$0xf]
    %v3474 = vld [vmem:[#allocation5 + $0x50] sm:$0xf]
    %v3475 = vld [vmem:[#allocation5 + $0x7c] sm:$0xf]
    %v3476 = vld [vmem:[#allocation5 + $0xa8] sm:$0xf]
    %v3477 = vld [vmem:[#allocation5 + $0xd4] sm:$0xf]
    %v3478 = vld [vmem:[#allocation5 + $0x100] sm:$0xf]
    %v3479 = vld [vmem:[#allocation5 + $0x12c] sm:$0xf]
    %v3480 = vld [vmem:[#allocation5 + $0x158] sm:$0xf]
    %v3481 = vld [vmem:[#allocation5 + $0x184] sm:$0xf]
    %v3482 = vld [vmem:[#allocation5 + $0x1b0] sm:$0xf]
    %v3483 = vld [vmem:[#allocation5 + $0x1dc] sm:$0xf]
    %v3484 = vld [vmem:[#allocation5 + $0x208] sm:$0xf]
    %v3485 = vld [vmem:[#allocation5 + $0x234] sm:$0xf]
    %v3486 = vld [vmem:[#allocation5 + $0x260] sm:$0xf]
    %v3487 = vld [vmem:[#allocation5 + $0x28c] sm:$0xf]
    %v3488 = vld [vmem:[#allocation5 + $0x2b8] sm:$0xf]
    %v3489 = vld [vmem:[#allocation5 + $0x2e4] sm:$0xf]
    %v3490 = vld [vmem:[#allocation5 + $0x310] sm:$0xf]
    %v3491 = vld [vmem:[#allocation5 + $0x33c] sm:$0xf]
    %v3492 = vld [vmem:[#allocation5 + $0x368] sm:$0xf]
    %v3493 = vld [vmem:[#allocation5 + $0x394] sm:$0xf]
    %v3494 = vld [vmem:[#allocation5 + $0x3c0] sm:$0xf]
    %v3495 = vld [vmem:[#allocation5 + $0x3ec] sm:$0xf]
    %v3496 = vld [vmem:[#allocation5 + $0x418] sm:$0xf]
    %v3497 = vld [vmem:[#allocation5 + $0x444] sm:$0xf]
    %v3498 = vld [vmem:[#allocation5 + $0x470] sm:$0xf]
    %v3499 = vld [vmem:[#allocation5 + $0x49c] sm:$0xf]
    %v3500 = vld [vmem:[#allocation5 + $0x4c8] sm:$0xf]
    %v3501 = vld [vmem:[#allocation5 + $0x4f4] sm:$0xf]
    %v3502 = vld [vmem:[#allocation5 + $0x520] sm:$0xf]
    %v3503 = vld [vmem:[#allocation5 + $0x54c] sm:$0xf]
    %v3504 = vld [vmem:[#allocation5 + $0x578] sm:$0xf]
    %v3505 = vld [vmem:[%s3 + $0x27] sm:$0x1]
    %v3507 = vperm.slane %v3505, 0
    %v3541 = vunpack.c.l.b16 %v3473
    %v3542 = vunpack.c.l.b16 %v3474
    %v3543 = vunpack.c.l.b16 %v3475
    %v3544 = vunpack.c.l.b16 %v3476
    %v3545 = vunpack.c.l.b16 %v3477
    %v3546 = vunpack.c.l.b16 %v3478
    %v3547 = vunpack.c.l.b16 %v3479
    %v3548 = vunpack.c.l.b16 %v3480
    %v3549 = vunpack.c.l.b16 %v3481
    %v3550 = vunpack.c.l.b16 %v3482
    %v3551 = vunpack.c.l.b16 %v3483
    %v3552 = vunpack.c.l.b16 %v3484
    %v3553 = vunpack.c.l.b16 %v3485
    %v3554 = vunpack.c.l.b16 %v3486
    %v3555 = vunpack.c.l.b16 %v3487
    %v3556 = vunpack.c.l.b16 %v3488
    %v3557 = vunpack.c.l.b16 %v3489
    %v3558 = vunpack.c.l.b16 %v3490
    %v3559 = vunpack.c.l.b16 %v3491
    %v3560 = vunpack.c.l.b16 %v3492
    %v3561 = vunpack.c.l.b16 %v3493
    %v3562 = vunpack.c.l.b16 %v3494
    %v3563 = vunpack.c.l.b16 %v3495
    %v3564 = vunpack.c.l.b16 %v3496
    %v3565 = vunpack.c.l.b16 %v3497
    %v3566 = vunpack.c.l.b16 %v3498
    %v3567 = vunpack.c.l.b16 %v3499
    %v3568 = vunpack.c.l.b16 %v3500
    %v3569 = vunpack.c.l.b16 %v3501
    %v3570 = vunpack.c.l.b16 %v3502
    %v3571 = vunpack.c.l.b16 %v3503
    %v3572 = vunpack.c.l.b16 %v3504
    %v3573 = vpack.c.b16 %v3542, %v3541
    %v3574 = vpack.c.b16 %v3544, %v3543
    %v3575 = vpack.c.b16 %v3546, %v3545
    %v3576 = vpack.c.b16 %v3548, %v3547
    %v3577 = vpack.c.b16 %v3550, %v3549
    %v3578 = vpack.c.b16 %v3552, %v3551
    %v3579 = vpack.c.b16 %v3554, %v3553
    %v3580 = vpack.c.b16 %v3556, %v3555
    %v3581 = vpack.c.b16 %v3558, %v3557
    %v3582 = vpack.c.b16 %v3560, %v3559
    %v3583 = vpack.c.b16 %v3562, %v3561
    %v3584 = vpack.c.b16 %v3564, %v3563
    %v3585 = vpack.c.b16 %v3566, %v3565
    %v3586 = vpack.c.b16 %v3568, %v3567
    %v3587 = vpack.c.b16 %v3570, %v3569
    %v3588 = vpack.c.b16 %v3572, %v3571
    %3605 = vmatpush.bf16.msra.mxu0 %v3580
    %3606 = vmatpush.bf16.msra.mxu0 %v3579
    %3607 = vmatpush.bf16.msra.mxu0 %v3578
    %3608 = vmatpush.bf16.msra.mxu0 %v3577
    %3609 = vmatpush.bf16.msra.mxu0 %v3576
    %3610 = vmatpush.bf16.msra.mxu0 %v3575
    %3611 = vmatpush.bf16.msra.mxu0 %v3574
    %3612 = vmatpush.bf16.msra.mxu0 %v3573
    %3613 = vmatmul.bf16.gmra.mxu0 %v3471
    %v3614 = vpop.f32.mrf.mxu0
    %v3615 = vadd.f32 %v3507, %v3614
    %v3616 = vpop.f32.mrf.mxu0
    %v3617 = vadd.f32 %v3507, %v3616
    %3618 = vdwg.mxu0
    %3619 = vmatpush.bf16.msra.mxu0 %v3588
    %3620 = vmatpush.bf16.msra.mxu0 %v3587
    %3621 = vmatpush.bf16.msra.mxu0 %v3586
    %3622 = vmatpush.bf16.msra.mxu0 %v3585
    %3623 = vmatpush.bf16.msra.mxu0 %v3584
    %3624 = vmatpush.bf16.msra.mxu0 %v3583
    %3625 = vmatpush.bf16.msra.mxu0 %v3582
    %3626 = vmatpush.bf16.msra.mxu0 %v3581
    %3627 = vmatmul.bf16.gmra.mxu0 %v3472
    %v3628 = vpop.f32.mrf.mxu0
    %v3629 = vadd.f32 %v3615, %v3628
    %v3630 = vpop.f32.mrf.mxu0
    %v3631 = vadd.f32 %v3617, %v3630
    %3632 = vdwg.mxu0
    %v3633 = vpack.c.bf16 %v3631, %v3629
    %v3634 = vld [vmem:[#allocation4 + $0x14] sm:$0xff]
    %v3635 = vld [vmem:[#allocation4 + $0x38] sm:$0xff]
    %v3636 = vld [vmem:[#allocation4 + $0x5c] sm:$0xff]
    %v3637 = vld [vmem:[#allocation4 + $0x80] sm:$0xff]
    %v3638 = vld [vmem:[#allocation4 + $0xa4] sm:$0xff]
    %v3639 = vld [vmem:[#allocation4 + $0xc8] sm:$0xff]
    %v3640 = vld [vmem:[#allocation4 + $0xec] sm:$0xff]
    %v3641 = vld [vmem:[#allocation4 + $0x110] sm:$0xff]
    %v3642 = vld [vmem:[#allocation4 + $0x134] sm:$0xff]
    %v3643 = vld [vmem:[#allocation4 + $0x158] sm:$0xff]
    %v3644 = vld [vmem:[#allocation4 + $0x17c] sm:$0xff]
    %v3645 = vld [vmem:[#allocation4 + $0x1a0] sm:$0xff]
    %v3646 = vld [vmem:[#allocation4 + $0x1c4] sm:$0xff]
    %v3647 = vld [vmem:[#allocation4 + $0x1e8] sm:$0xff]
    %v3648 = vld [vmem:[#allocation4 + $0x20c] sm:$0xff]
    %v3649 = vld [vmem:[#allocation4 + $0x230] sm:$0xff]
    %v3650 = vld [vmem:[%s3 + $0x28] sm:$0x3]
    %v3652 = vperm.slane %v3650, 0
    %v3653 = vperm.slane %v3650, 1
    %v3672 = vunpack.c.l.b16 %v3634
    %v3673 = vunpack.c.h.b16 %v3634
    %v3674 = vunpack.c.l.b16 %v3635
    %v3675 = vunpack.c.h.b16 %v3635
    %v3676 = vunpack.c.l.b16 %v3636
    %v3677 = vunpack.c.h.b16 %v3636
    %v3678 = vunpack.c.l.b16 %v3637
    %v3679 = vunpack.c.h.b16 %v3637
    %v3680 = vunpack.c.l.b16 %v3638
    %v3681 = vunpack.c.h.b16 %v3638
    %v3682 = vunpack.c.l.b16 %v3639
    %v3683 = vunpack.c.h.b16 %v3639
    %v3684 = vunpack.c.l.b16 %v3640
    %v3685 = vunpack.c.h.b16 %v3640
    %v3686 = vunpack.c.l.b16 %v3641
    %v3687 = vunpack.c.h.b16 %v3641
    %v3688 = vunpack.c.l.b16 %v3642
    %v3689 = vunpack.c.h.b16 %v3642
    %v3690 = vunpack.c.l.b16 %v3643
    %v3691 = vunpack.c.h.b16 %v3643
    %v3692 = vunpack.c.l.b16 %v3644
    %v3693 = vunpack.c.h.b16 %v3644
    %v3694 = vunpack.c.l.b16 %v3645
    %v3695 = vunpack.c.h.b16 %v3645
    %v3696 = vunpack.c.l.b16 %v3646
    %v3697 = vunpack.c.h.b16 %v3646
    %v3698 = vunpack.c.l.b16 %v3647
    %v3699 = vunpack.c.h.b16 %v3647
    %v3700 = vunpack.c.l.b16 %v3648
    %v3701 = vunpack.c.h.b16 %v3648
    %v3702 = vunpack.c.l.b16 %v3649
    %v3703 = vunpack.c.h.b16 %v3649
    %v3704 = vpack.c.b16 %v3674, %v3672
    %v3705 = vpack.c.b16 %v3675, %v3673
    %v3706 = vpack.c.b16 %v3678, %v3676
    %v3707 = vpack.c.b16 %v3679, %v3677
    %v3708 = vpack.c.b16 %v3682, %v3680
    %v3709 = vpack.c.b16 %v3683, %v3681
    %v3710 = vpack.c.b16 %v3686, %v3684
    %v3711 = vpack.c.b16 %v3687, %v3685
    %v3712 = vpack.c.b16 %v3690, %v3688
    %v3713 = vpack.c.b16 %v3691, %v3689
    %v3714 = vpack.c.b16 %v3694, %v3692
    %v3715 = vpack.c.b16 %v3695, %v3693
    %v3716 = vpack.c.b16 %v3698, %v3696
    %v3717 = vpack.c.b16 %v3699, %v3697
    %v3718 = vpack.c.b16 %v3702, %v3700
    %v3719 = vpack.c.b16 %v3703, %v3701
    %3736 = vmatpush.bf16.msra.mxu0 %v3718
    %3737 = vmatpush.bf16.msra.mxu0 %v3716
    %3738 = vmatpush.bf16.msra.mxu0 %v3714
    %3739 = vmatpush.bf16.msra.mxu0 %v3712
    %3740 = vmatpush.bf16.msra.mxu0 %v3710
    %3741 = vmatpush.bf16.msra.mxu0 %v3708
    %3742 = vmatpush.bf16.msra.mxu0 %v3706
    %3743 = vmatpush.bf16.msra.mxu0 %v3704
    %3744 = vmatmul.bf16.gmra.mxu0 %v3633
    %v3745 = vpop.f32.mrf.mxu0
    %v3746 = vadd.f32 %v3652, %v3745
    %v3747 = vpop.f32.mrf.mxu0
    %v3748 = vadd.f32 %v3652, %v3747
    %3749 = vdwg.mxu0
    %3750 = vmatpush.bf16.msra.mxu0 %v3719
    %3751 = vmatpush.bf16.msra.mxu0 %v3717
    %3752 = vmatpush.bf16.msra.mxu0 %v3715
    %3753 = vmatpush.bf16.msra.mxu0 %v3713
    %3754 = vmatpush.bf16.msra.mxu0 %v3711
    %3755 = vmatpush.bf16.msra.mxu0 %v3709
    %3756 = vmatpush.bf16.msra.mxu0 %v3707
    %3757 = vmatpush.bf16.msra.mxu0 %v3705
    %3758 = vmatmul.bf16.gmra.mxu0 %v3633
    %v3759 = vpop.f32.mrf.mxu0
    %v3760 = vadd.f32 %v3653, %v3759
    %v3761 = vpop.f32.mrf.mxu0
    %v3762 = vadd.f32 %v3653, %v3761
    %3763 = vdwg.mxu0
    %v3764 = vadd.f32 %v3411, %v3746
    %v3765 = vadd.f32 %v3467, %v3760
    %v3766 = vadd.f32 %v3413, %v3748
    %v3767 = vadd.f32 %v3469, %v3762
    %v3768 = vmul.f32 %v3764, %v286
    %v3769 = vmul.f32 %v3765, %v286
    %v3770 = vmul.f32 %v3766, %v291
    %v3771 = vmul.f32 %v3767, %v291
    %v3772 = vadd.f32 %v3768, %v3770
    %v3773 = vrot.slane %v3772, 4
    %v3774 = vadd.f32 %v3772, %v3773
    %v3775 = vrot.slane %v3774, 2
    %v3776 = vadd.f32 %v3774, %v3775
    %v3777 = vrot.slane %v3776, 1
    %v3778 = vadd.f32 %v3776, %v3777
    %v3779 = vadd.f32 %v3769, %v3771
    %v3780 = vrot.slane %v3779, 4
    %v3781 = vadd.f32 %v3779, %v3780
    %v3782 = vrot.slane %v3781, 2
    %v3783 = vadd.f32 %v3781, %v3782
    %v3784 = vrot.slane %v3783, 1
    %v3785 = vadd.f32 %v3783, %v3784
    %v3786 = vmul.f32 %v3778, %v304
    %v3787 = vmul.f32 %v3785, %v304
    %v3788 = vsub.f32 %v3764, %v3786
    %v3789 = vsub.f32 %v3765, %v3787
    %v3790 = vsub.f32 %v3766, %v3786
    %v3791 = vsub.f32 %v3767, %v3787
    %v3792 = vmul.f32 %v3788, %v286
    %v3793 = vmul.f32 %v3789, %v286
    %v3794 = vmul.f32 %v3790, %v291
    %v3795 = vmul.f32 %v3791, %v291
    %v3796 = vmul.f32 %v3792, %v3792
    %v3797 = vmul.f32 %v3793, %v3793
    %v3798 = vmul.f32 %v3794, %v3794
    %v3799 = vmul.f32 %v3795, %v3795
    %v3800 = vadd.f32 %v3796, %v3798
    %v3801 = vrot.slane %v3800, 4
    %v3802 = vadd.f32 %v3800, %v3801
    %v3803 = vrot.slane %v3802, 2
    %v3804 = vadd.f32 %v3802, %v3803
    %v3805 = vrot.slane %v3804, 1
    %v3806 = vadd.f32 %v3804, %v3805
    %v3807 = vadd.f32 %v3797, %v3799
    %v3808 = vrot.slane %v3807, 4
    %v3809 = vadd.f32 %v3807, %v3808
    %v3810 = vrot.slane %v3809, 2
    %v3811 = vadd.f32 %v3809, %v3810
    %v3812 = vrot.slane %v3811, 1
    %v3813 = vadd.f32 %v3811, %v3812
    %v3814 = vmul.f32 %v3806, %v304
    %v3815 = vmul.f32 %v3813, %v304
    %v3816 = vadd.f32 %v3814, 1e-05
    %v3817 = vadd.f32 %v3815, 1e-05
    %v3818 = vrsqrt.pop %v3816
    %v3819 = vmul.f32 %v3818, %v3816
    %v3820 = vmul.f32 %v3819, %v3818
    %v3821 = vmul.f32 0.5, %v3820
    %v3822 = vsub.f32 1.5, %v3821
    %v3823 = vmul.f32 %v3818, %v3822
    %vm3824 = vweird.f32 %v3816
    %vm3825 = vweird.f32 %v3818
    %vm3826 = vmor %vm3824, %vm3825
    %v3827 = vsel %vm3826, %v3818, %v3823
    %v3828 = vrsqrt.pop %v3817
    %v3829 = vmul.f32 %v3828, %v3817
    %v3830 = vmul.f32 %v3829, %v3828
    %v3831 = vmul.f32 0.5, %v3830
    %v3832 = vsub.f32 1.5, %v3831
    %v3833 = vmul.f32 %v3828, %v3832
    %vm3834 = vweird.f32 %v3817
    %vm3835 = vweird.f32 %v3828
    %vm3836 = vmor %vm3834, %vm3835
    %v3837 = vsel %vm3836, %v3828, %v3833
    %v3838 = vmul.f32 %v3788, %v3827
    %v3839 = vmul.f32 %v3789, %v3837
    %v3840 = vmul.f32 %v3790, %v3827
    %v3841 = vmul.f32 %v3791, %v3837
    %v3842 = vld [vmem:[%s3 + $0x2a] sm:$0x3]
    %3843 = vset.pattern.permute.xlu0 4
    %3844 = vperm.xlu0 %3843, %v2877
    %v3845 = vpop.permute.xlu0 %3844
    %3847 = vset.pattern.permute.xlu0 4
    %3848 = vperm.xlu0 %3847, %v2878
    %v3849 = vpop.permute.xlu0 %3848
    %v3852 = vperm.slane %v3842, 0
    %v3853 = vperm.slane %v3842, 1
    %v3856 = vadd.f32 %v3845, %v3852
    %v3857 = vadd.f32 %v3845, %v3853
    %v3858 = vadd.f32 %v3849, %v3852
    %v3859 = vadd.f32 %v3849, %v3853
    %v3860 = vmul.f32 %v3856, %v3838
    %v3861 = vmul.f32 %v3857, %v3839
    %v3862 = vmul.f32 %v3858, %v3840
    %v3863 = vmul.f32 %v3859, %v3841
    %v3864 = vld [vmem:[%s3 + $0x2c] sm:$0x3]
    %v3866 = vperm.slane %v3864, 0
    %v3867 = vperm.slane %v3864, 1
    %v3870 = vadd.f32 %v3845, %v3866
    %v3871 = vadd.f32 %v3845, %v3867
    %v3872 = vadd.f32 %v3849, %v3866
    %v3873 = vadd.f32 %v3849, %v3867
    %v3874 = vadd.f32 %v3860, %v3870
    %v3875 = vadd.f32 %v3861, %v3871
    %v3876 = vadd.f32 %v3862, %v3872
    %v3877 = vadd.f32 %v3863, %v3873
    %vm3878 = vcmp.ge.f32.partialorder %v3874, 0.0
    %vm3879 = vcmp.ge.f32.partialorder %v3875, 0.0
    %vm3880 = vcmp.ge.f32.partialorder %v3876, 0.0
    %vm3881 = vcmp.ge.f32.partialorder %v3877, 0.0
    %v3882 = vmul.f32 %v3874, 0.2
    %v3883 = vmul.f32 %v3875, 0.2
    %v3884 = vmul.f32 %v3876, 0.2
    %v3885 = vmul.f32 %v3877, 0.2
    %v3886 = vsel %vm3878, %v3874, %v3882
    %v3887 = vsel %vm3879, %v3875, %v3883
    %v3888 = vsel %vm3880, %v3876, %v3884
    %v3889 = vsel %vm3881, %v3877, %v3885
    %v3890 = vadd.f32 %v1191, %v3886
    %v3891 = vadd.f32 %v1192, %v3887
    %v3892 = vadd.f32 %v1193, %v3888
    %v3893 = vadd.f32 %v1194, %v3889
    %v3894 = vpack.c.bf16 %v3892, %v3890
    %v3895 = vpack.c.bf16 %v3893, %v3891
    %v3896 = vld [vmem:[#allocation5 + $0x28] sm:$0xf]
    %v3897 = vld [vmem:[#allocation5 + $0x54] sm:$0xf]
    %v3898 = vld [vmem:[#allocation5 + $0x80] sm:$0xf]
    %v3899 = vld [vmem:[#allocation5 + $0xac] sm:$0xf]
    %v3900 = vld [vmem:[#allocation5 + $0xd8] sm:$0xf]
    %v3901 = vld [vmem:[#allocation5 + $0x104] sm:$0xf]
    %v3902 = vld [vmem:[#allocation5 + $0x130] sm:$0xf]
    %v3903 = vld [vmem:[#allocation5 + $0x15c] sm:$0xf]
    %v3904 = vld [vmem:[#allocation5 + $0x188] sm:$0xf]
    %v3905 = vld [vmem:[#allocation5 + $0x1b4] sm:$0xf]
    %v3906 = vld [vmem:[#allocation5 + $0x1e0] sm:$0xf]
    %v3907 = vld [vmem:[#allocation5 + $0x20c] sm:$0xf]
    %v3908 = vld [vmem:[#allocation5 + $0x238] sm:$0xf]
    %v3909 = vld [vmem:[#allocation5 + $0x264] sm:$0xf]
    %v3910 = vld [vmem:[#allocation5 + $0x290] sm:$0xf]
    %v3911 = vld [vmem:[#allocation5 + $0x2bc] sm:$0xf]
    %v3912 = vld [vmem:[#allocation5 + $0x2e8] sm:$0xf]
    %v3913 = vld [vmem:[#allocation5 + $0x314] sm:$0xf]
    %v3914 = vld [vmem:[#allocation5 + $0x340] sm:$0xf]
    %v3915 = vld [vmem:[#allocation5 + $0x36c] sm:$0xf]
    %v3916 = vld [vmem:[#allocation5 + $0x398] sm:$0xf]
    %v3917 = vld [vmem:[#allocation5 + $0x3c4] sm:$0xf]
    %v3918 = vld [vmem:[#allocation5 + $0x3f0] sm:$0xf]
    %v3919 = vld [vmem:[#allocation5 + $0x41c] sm:$0xf]
    %v3920 = vld [vmem:[#allocation5 + $0x448] sm:$0xf]
    %v3921 = vld [vmem:[#allocation5 + $0x474] sm:$0xf]
    %v3922 = vld [vmem:[#allocation5 + $0x4a0] sm:$0xf]
    %v3923 = vld [vmem:[#allocation5 + $0x4cc] sm:$0xf]
    %v3924 = vld [vmem:[#allocation5 + $0x4f8] sm:$0xf]
    %v3925 = vld [vmem:[#allocation5 + $0x524] sm:$0xf]
    %v3926 = vld [vmem:[#allocation5 + $0x550] sm:$0xf]
    %v3927 = vld [vmem:[#allocation5 + $0x57c] sm:$0xf]
    %v3928 = vld [vmem:[%s3 + $0x2e] sm:$0x1]
    %v3930 = vperm.slane %v3928, 0
    %v3964 = vunpack.c.l.b16 %v3896
    %v3965 = vunpack.c.l.b16 %v3897
    %v3966 = vunpack.c.l.b16 %v3898
    %v3967 = vunpack.c.l.b16 %v3899
    %v3968 = vunpack.c.l.b16 %v3900
    %v3969 = vunpack.c.l.b16 %v3901
    %v3970 = vunpack.c.l.b16 %v3902
    %v3971 = vunpack.c.l.b16 %v3903
    %v3972 = vunpack.c.l.b16 %v3904
    %v3973 = vunpack.c.l.b16 %v3905
    %v3974 = vunpack.c.l.b16 %v3906
    %v3975 = vunpack.c.l.b16 %v3907
    %v3976 = vunpack.c.l.b16 %v3908
    %v3977 = vunpack.c.l.b16 %v3909
    %v3978 = vunpack.c.l.b16 %v3910
    %v3979 = vunpack.c.l.b16 %v3911
    %v3980 = vunpack.c.l.b16 %v3912
    %v3981 = vunpack.c.l.b16 %v3913
    %v3982 = vunpack.c.l.b16 %v3914
    %v3983 = vunpack.c.l.b16 %v3915
    %v3984 = vunpack.c.l.b16 %v3916
    %v3985 = vunpack.c.l.b16 %v3917
    %v3986 = vunpack.c.l.b16 %v3918
    %v3987 = vunpack.c.l.b16 %v3919
    %v3988 = vunpack.c.l.b16 %v3920
    %v3989 = vunpack.c.l.b16 %v3921
    %v3990 = vunpack.c.l.b16 %v3922
    %v3991 = vunpack.c.l.b16 %v3923
    %v3992 = vunpack.c.l.b16 %v3924
    %v3993 = vunpack.c.l.b16 %v3925
    %v3994 = vunpack.c.l.b16 %v3926
    %v3995 = vunpack.c.l.b16 %v3927
    %v3996 = vpack.c.b16 %v3965, %v3964
    %v3997 = vpack.c.b16 %v3967, %v3966
    %v3998 = vpack.c.b16 %v3969, %v3968
    %v3999 = vpack.c.b16 %v3971, %v3970
    %v4000 = vpack.c.b16 %v3973, %v3972
    %v4001 = vpack.c.b16 %v3975, %v3974
    %v4002 = vpack.c.b16 %v3977, %v3976
    %v4003 = vpack.c.b16 %v3979, %v3978
    %v4004 = vpack.c.b16 %v3981, %v3980
    %v4005 = vpack.c.b16 %v3983, %v3982
    %v4006 = vpack.c.b16 %v3985, %v3984
    %v4007 = vpack.c.b16 %v3987, %v3986
    %v4008 = vpack.c.b16 %v3989, %v3988
    %v4009 = vpack.c.b16 %v3991, %v3990
    %v4010 = vpack.c.b16 %v3993, %v3992
    %v4011 = vpack.c.b16 %v3995, %v3994
    %4028 = vmatpush.bf16.msra.mxu0 %v4003
    %4029 = vmatpush.bf16.msra.mxu0 %v4002
    %4030 = vmatpush.bf16.msra.mxu0 %v4001
    %4031 = vmatpush.bf16.msra.mxu0 %v4000
    %4032 = vmatpush.bf16.msra.mxu0 %v3999
    %4033 = vmatpush.bf16.msra.mxu0 %v3998
    %4034 = vmatpush.bf16.msra.mxu0 %v3997
    %4035 = vmatpush.bf16.msra.mxu0 %v3996
    %4036 = vmatmul.bf16.gmra.mxu0 %v3894
    %v4037 = vpop.f32.mrf.mxu0
    %v4038 = vadd.f32 %v3930, %v4037
    %v4039 = vpop.f32.mrf.mxu0
    %v4040 = vadd.f32 %v3930, %v4039
    %4041 = vdwg.mxu0
    %4042 = vmatpush.bf16.msra.mxu0 %v4011
    %4043 = vmatpush.bf16.msra.mxu0 %v4010
    %4044 = vmatpush.bf16.msra.mxu0 %v4009
    %4045 = vmatpush.bf16.msra.mxu0 %v4008
    %4046 = vmatpush.bf16.msra.mxu0 %v4007
    %4047 = vmatpush.bf16.msra.mxu0 %v4006
    %4048 = vmatpush.bf16.msra.mxu0 %v4005
    %4049 = vmatpush.bf16.msra.mxu0 %v4004
    %4050 = vmatmul.bf16.gmra.mxu0 %v3895
    %v4051 = vpop.f32.mrf.mxu0
    %v4052 = vadd.f32 %v4038, %v4051
    %v4053 = vpop.f32.mrf.mxu0
    %v4054 = vadd.f32 %v4040, %v4053
    %4055 = vdwg.mxu0
    %v4056 = vpack.c.bf16 %v4054, %v4052
    %v4057 = vld [vmem:[#allocation4 + $0x1c] sm:$0xf]
    %v4058 = vld [vmem:[#allocation4 + $0x40] sm:$0xf]
    %v4059 = vld [vmem:[#allocation4 + $0x64] sm:$0xf]
    %v4060 = vld [vmem:[#allocation4 + $0x88] sm:$0xf]
    %v4061 = vld [vmem:[#allocation4 + $0xac] sm:$0xf]
    %v4062 = vld [vmem:[#allocation4 + $0xd0] sm:$0xf]
    %v4063 = vld [vmem:[#allocation4 + $0xf4] sm:$0xf]
    %v4064 = vld [vmem:[#allocation4 + $0x118] sm:$0xf]
    %v4065 = vld [vmem:[#allocation4 + $0x13c] sm:$0xf]
    %v4066 = vld [vmem:[#allocation4 + $0x160] sm:$0xf]
    %v4067 = vld [vmem:[#allocation4 + $0x184] sm:$0xf]
    %v4068 = vld [vmem:[#allocation4 + $0x1a8] sm:$0xf]
    %v4069 = vld [vmem:[#allocation4 + $0x1cc] sm:$0xf]
    %v4070 = vld [vmem:[#allocation4 + $0x1f0] sm:$0xf]
    %v4071 = vld [vmem:[#allocation4 + $0x214] sm:$0xf]
    %v4072 = vld [vmem:[#allocation4 + $0x238] sm:$0xf]
    %v4073 = vld [vmem:[%s3 + $0x2f] sm:$0x1]
    %v4075 = vperm.slane %v4073, 0
    %v4093 = vunpack.c.l.b16 %v4057
    %v4094 = vunpack.c.l.b16 %v4058
    %v4095 = vunpack.c.l.b16 %v4059
    %v4096 = vunpack.c.l.b16 %v4060
    %v4097 = vunpack.c.l.b16 %v4061
    %v4098 = vunpack.c.l.b16 %v4062
    %v4099 = vunpack.c.l.b16 %v4063
    %v4100 = vunpack.c.l.b16 %v4064
    %v4101 = vunpack.c.l.b16 %v4065
    %v4102 = vunpack.c.l.b16 %v4066
    %v4103 = vunpack.c.l.b16 %v4067
    %v4104 = vunpack.c.l.b16 %v4068
    %v4105 = vunpack.c.l.b16 %v4069
    %v4106 = vunpack.c.l.b16 %v4070
    %v4107 = vunpack.c.l.b16 %v4071
    %v4108 = vunpack.c.l.b16 %v4072
    %v4109 = vpack.c.b16 %v4094, %v4093
    %v4110 = vpack.c.b16 %v4096, %v4095
    %v4111 = vpack.c.b16 %v4098, %v4097
    %v4112 = vpack.c.b16 %v4100, %v4099
    %v4113 = vpack.c.b16 %v4102, %v4101
    %v4114 = vpack.c.b16 %v4104, %v4103
    %v4115 = vpack.c.b16 %v4106, %v4105
    %v4116 = vpack.c.b16 %v4108, %v4107
    %4125 = vmatpush.bf16.msra.mxu0 %v4116
    %4126 = vmatpush.bf16.msra.mxu0 %v4115
    %4127 = vmatpush.bf16.msra.mxu0 %v4114
    %4128 = vmatpush.bf16.msra.mxu0 %v4113
    %4129 = vmatpush.bf16.msra.mxu0 %v4112
    %4130 = vmatpush.bf16.msra.mxu0 %v4111
    %4131 = vmatpush.bf16.msra.mxu0 %v4110
    %4132 = vmatpush.bf16.msra.mxu0 %v4109
    %4133 = vmatmul.bf16.gmra.mxu0 %v4056
    %v4134 = vpop.f32.mrf.mxu0
    %v4135 = vadd.f32 %v4075, %v4134
    %v4136 = vpop.f32.mrf.mxu0
    %v4137 = vadd.f32 %v4075, %v4136
    %4138 = vdwg.mxu0
    %v4139 = vpack.c.bf16 %v4137, %v4135
    %v4140 = vld [vmem:[#allocation2 + $0x10] sm:$0xf]
    %v4141 = vld [vmem:[#allocation2 + $0x38] sm:$0xf]
    %v4142 = vld [vmem:[#allocation2 + $0x60] sm:$0xf]
    %v4143 = vld [vmem:[#allocation2 + $0x88] sm:$0xf]
    %v4144 = vld [vmem:[#allocation2 + $0xb0] sm:$0xf]
    %v4145 = vld [vmem:[#allocation2 + $0xd8] sm:$0xf]
    %v4146 = vld [vmem:[#allocation2 + $0x100] sm:$0xf]
    %v4147 = vld [vmem:[#allocation2 + $0x128] sm:$0xf]
    %v4148 = vld [vmem:[%s3 + $0x30] sm:$0x1]
    %v4150 = vperm.slane %v4148, 0
    %v4160 = vunpack.c.l.b16 %v4140
    %v4161 = vunpack.c.l.b16 %v4141
    %v4162 = vunpack.c.l.b16 %v4142
    %v4163 = vunpack.c.l.b16 %v4143
    %v4164 = vunpack.c.l.b16 %v4144
    %v4165 = vunpack.c.l.b16 %v4145
    %v4166 = vunpack.c.l.b16 %v4146
    %v4167 = vunpack.c.l.b16 %v4147
    %v4168 = vpack.c.b16 %v4161, %v4160
    %v4169 = vpack.c.b16 %v4163, %v4162
    %v4170 = vpack.c.b16 %v4165, %v4164
    %v4171 = vpack.c.b16 %v4167, %v4166
    %v4177 = vsel %vm166, %v4139, 0
    %4179 = vmatpush.bf16.msra.mxu0 0
    %4180 = vmatpush.bf16.msra.mxu0 0
    %4181 = vmatpush.bf16.msra.mxu0 0
    %4182 = vmatpush.bf16.msra.mxu0 0
    %4183 = vmatpush.bf16.msra.mxu0 %v4171
    %4184 = vmatpush.bf16.msra.mxu0 %v4170
    %4185 = vmatpush.bf16.msra.mxu0 %v4169
    %4186 = vmatpush.bf16.msra.mxu0 %v4168
    %4187 = vmatmul.bf16.gmra.mxu0 %v4177
    %v4188 = vpop.f32.mrf.mxu0
    %v4189 = vadd.f32 %v4150, %v4188
    %v4190 = vpop.f32.mrf.mxu0
    %v4191 = vadd.f32 %v4150, %v4190
    %4192 = vdwg.mxu0
    %v4193 = vadd.f32 %v4052, %v4189
    %v4194 = vadd.f32 %v4054, %v4191
    %v4195 = vmul.f32 %v4193, %v286
    %v4196 = vmul.f32 %v4194, %v291
    %v4197 = vadd.f32 %v4195, %v4196
    %v4198 = vrot.slane %v4197, 4
    %v4199 = vadd.f32 %v4197, %v4198
    %v4200 = vrot.slane %v4199, 2
    %v4201 = vadd.f32 %v4199, %v4200
    %v4202 = vrot.slane %v4201, 1
    %v4203 = vadd.f32 %v4201, %v4202
    %v4204 = vmul.f32 %v4203, %v304
    %v4205 = vsub.f32 %v4193, %v4204
    %v4206 = vsub.f32 %v4194, %v4204
    %v4207 = vmul.f32 %v4205, %v286
    %v4208 = vmul.f32 %v4206, %v291
    %v4209 = vmul.f32 %v4207, %v4207
    %v4210 = vmul.f32 %v4208, %v4208
    %v4211 = vadd.f32 %v4209, %v4210
    %v4212 = vrot.slane %v4211, 4
    %v4213 = vadd.f32 %v4211, %v4212
    %v4214 = vrot.slane %v4213, 2
    %v4215 = vadd.f32 %v4213, %v4214
    %v4216 = vrot.slane %v4215, 1
    %v4217 = vadd.f32 %v4215, %v4216
    %v4218 = vmul.f32 %v4217, %v304
    %v4219 = vadd.f32 %v4218, 1e-05
    %v4220 = vrsqrt.pop %v4219
    %v4221 = vmul.f32 %v4220, %v4219
    %v4222 = vmul.f32 %v4221, %v4220
    %v4223 = vmul.f32 0.5, %v4222
    %v4224 = vsub.f32 1.5, %v4223
    %v4225 = vmul.f32 %v4220, %v4224
    %vm4226 = vweird.f32 %v4219
    %vm4227 = vweird.f32 %v4220
    %vm4228 = vmor %vm4226, %vm4227
    %v4229 = vsel %vm4228, %v4220, %v4225
    %v4230 = vmul.f32 %v4205, %v4229
    %v4231 = vmul.f32 %v4206, %v4229
    %v4232 = vld [vmem:[%s3 + $0x31] sm:$0x1]
    %4233 = vset.pattern.permute.xlu0 5
    %4234 = vperm.xlu0 %4233, %v2877
    %v4235 = vpop.permute.xlu0 %4234
    %4237 = vset.pattern.permute.xlu0 5
    %4238 = vperm.xlu0 %4237, %v2878
    %v4239 = vpop.permute.xlu0 %4238
    %v4242 = vperm.slane %v4232, 0
    %v4244 = vadd.f32 %v4235, %v4242
    %v4245 = vadd.f32 %v4239, %v4242
    %v4246 = vmul.f32 %v4244, %v4230
    %v4247 = vmul.f32 %v4245, %v4231
    %v4248 = vld [vmem:[%s3 + $0x32] sm:$0x1]
    %v4250 = vperm.slane %v4248, 0
    %v4252 = vadd.f32 %v4235, %v4250
    %v4253 = vadd.f32 %v4239, %v4250
    %v4254 = vadd.f32 %v4246, %v4252
    %v4255 = vadd.f32 %v4247, %v4253
    %vm4256 = vcmp.ge.f32.partialorder %v4254, 0.0
    %vm4257 = vcmp.ge.f32.partialorder %v4255, 0.0
    %v4258 = vmul.f32 %v4254, 0.2
    %v4259 = vmul.f32 %v4255, 0.2
    %v4260 = vsel %vm4256, %v4254, %v4258
    %v4261 = vsel %vm4257, %v4255, %v4259
    %v4262 = vadd.f32 %v635, %v4260
    %v4263 = vadd.f32 %v636, %v4261
    %v4264 = vpack.c.bf16 %v4263, %v4262
    %v4265 = vld [vmem:[#allocation4 + $0x20] sm:$0xf]
    %v4266 = vld [vmem:[#allocation4 + $0x44] sm:$0xf]
    %v4267 = vld [vmem:[#allocation4 + $0x68] sm:$0xf]
    %v4268 = vld [vmem:[#allocation4 + $0x8c] sm:$0xf]
    %v4269 = vld [vmem:[#allocation4 + $0xb0] sm:$0xf]
    %v4270 = vld [vmem:[#allocation4 + $0xd4] sm:$0xf]
    %v4271 = vld [vmem:[#allocation4 + $0xf8] sm:$0xf]
    %v4272 = vld [vmem:[#allocation4 + $0x11c] sm:$0xf]
    %v4273 = vld [vmem:[#allocation4 + $0x140] sm:$0xf]
    %v4274 = vld [vmem:[#allocation4 + $0x164] sm:$0xf]
    %v4275 = vld [vmem:[#allocation4 + $0x188] sm:$0xf]
    %v4276 = vld [vmem:[#allocation4 + $0x1ac] sm:$0xf]
    %v4277 = vld [vmem:[#allocation4 + $0x1d0] sm:$0xf]
    %v4278 = vld [vmem:[#allocation4 + $0x1f4] sm:$0xf]
    %v4279 = vld [vmem:[#allocation4 + $0x218] sm:$0xf]
    %v4280 = vld [vmem:[#allocation4 + $0x23c] sm:$0xf]
    %v4281 = vld [vmem:[%s3 + $0x33] sm:$0x1]
    %v4283 = vperm.slane %v4281, 0
    %v4301 = vunpack.c.l.b16 %v4265
    %v4302 = vunpack.c.l.b16 %v4266
    %v4303 = vunpack.c.l.b16 %v4267
    %v4304 = vunpack.c.l.b16 %v4268
    %v4305 = vunpack.c.l.b16 %v4269
    %v4306 = vunpack.c.l.b16 %v4270
    %v4307 = vunpack.c.l.b16 %v4271
    %v4308 = vunpack.c.l.b16 %v4272
    %v4309 = vunpack.c.l.b16 %v4273
    %v4310 = vunpack.c.l.b16 %v4274
    %v4311 = vunpack.c.l.b16 %v4275
    %v4312 = vunpack.c.l.b16 %v4276
    %v4313 = vunpack.c.l.b16 %v4277
    %v4314 = vunpack.c.l.b16 %v4278
    %v4315 = vunpack.c.l.b16 %v4279
    %v4316 = vunpack.c.l.b16 %v4280
    %v4317 = vpack.c.b16 %v4302, %v4301
    %v4318 = vpack.c.b16 %v4304, %v4303
    %v4319 = vpack.c.b16 %v4306, %v4305
    %v4320 = vpack.c.b16 %v4308, %v4307
    %v4321 = vpack.c.b16 %v4310, %v4309
    %v4322 = vpack.c.b16 %v4312, %v4311
    %v4323 = vpack.c.b16 %v4314, %v4313
    %v4324 = vpack.c.b16 %v4316, %v4315
    %4333 = vmatpush.bf16.msra.mxu0 %v4324
    %4334 = vmatpush.bf16.msra.mxu0 %v4323
    %4335 = vmatpush.bf16.msra.mxu0 %v4322
    %4336 = vmatpush.bf16.msra.mxu0 %v4321
    %4337 = vmatpush.bf16.msra.mxu0 %v4320
    %4338 = vmatpush.bf16.msra.mxu0 %v4319
    %4339 = vmatpush.bf16.msra.mxu0 %v4318
    %4340 = vmatpush.bf16.msra.mxu0 %v4317
    %4341 = vmatmul.bf16.gmra.mxu0 %v4264
    %v4342 = vpop.f32.mrf.mxu0
    %v4343 = vadd.f32 %v4283, %v4342
    %v4344 = vpop.f32.mrf.mxu0
    %v4345 = vadd.f32 %v4283, %v4344
    %4346 = vdwg.mxu0
    %v4347 = vpack.c.bf16 %v4345, %v4343
    %v4348 = vld [vmem:[#allocation2 + $0x14] sm:$0xf]
    %v4349 = vld [vmem:[#allocation2 + $0x3c] sm:$0xf]
    %v4350 = vld [vmem:[#allocation2 + $0x64] sm:$0xf]
    %v4351 = vld [vmem:[#allocation2 + $0x8c] sm:$0xf]
    %v4352 = vld [vmem:[#allocation2 + $0xb4] sm:$0xf]
    %v4353 = vld [vmem:[#allocation2 + $0xdc] sm:$0xf]
    %v4354 = vld [vmem:[#allocation2 + $0x104] sm:$0xf]
    %v4355 = vld [vmem:[#allocation2 + $0x12c] sm:$0xf]
    %v4356 = vld [vmem:[%s3 + $0x34] sm:$0x1]
    %v4358 = vperm.slane %v4356, 0
    %v4368 = vunpack.c.l.b16 %v4348
    %v4369 = vunpack.c.l.b16 %v4349
    %v4370 = vunpack.c.l.b16 %v4350
    %v4371 = vunpack.c.l.b16 %v4351
    %v4372 = vunpack.c.l.b16 %v4352
    %v4373 = vunpack.c.l.b16 %v4353
    %v4374 = vunpack.c.l.b16 %v4354
    %v4375 = vunpack.c.l.b16 %v4355
    %v4376 = vpack.c.b16 %v4369, %v4368
    %v4377 = vpack.c.b16 %v4371, %v4370
    %v4378 = vpack.c.b16 %v4373, %v4372
    %v4379 = vpack.c.b16 %v4375, %v4374
    %v4385 = vsel %vm166, %v4347, 0
    %4387 = vmatpush.bf16.msra.mxu0 0
    %4388 = vmatpush.bf16.msra.mxu0 0
    %4389 = vmatpush.bf16.msra.mxu0 0
    %4390 = vmatpush.bf16.msra.mxu0 0
    %4391 = vmatpush.bf16.msra.mxu0 %v4379
    %4392 = vmatpush.bf16.msra.mxu0 %v4378
    %4393 = vmatpush.bf16.msra.mxu0 %v4377
    %4394 = vmatpush.bf16.msra.mxu0 %v4376
    %4395 = vmatmul.bf16.gmra.mxu0 %v4385
    %v4396 = vpop.f32.mrf.mxu0
    %v4397 = vadd.f32 %v4358, %v4396
    %v4398 = vpop.f32.mrf.mxu0
    %v4399 = vadd.f32 %v4358, %v4398
    %4400 = vdwg.mxu0
    %v4401 = vpack.c.bf16 %v4399, %v4397
    %v4402 = vld [vmem:[#allocation3 + $0x4] sm:$0xf]
    %v4403 = vld [vmem:[#allocation3 + $0xc] sm:$0xf]
    %v4404 = vld [vmem:[#allocation3 + $0x14] sm:$0xf]
    %v4405 = vld [vmem:[#allocation3 + $0x1c] sm:$0xf]
    %v4406 = vld [vmem:[%s3 + $0x35] sm:$0x1]
    %v4408 = vperm.slane %v4406, 0
    %v4414 = vunpack.c.l.b16 %v4402
    %v4415 = vunpack.c.l.b16 %v4403
    %v4416 = vunpack.c.l.b16 %v4404
    %v4417 = vunpack.c.l.b16 %v4405
    %v4418 = vpack.c.b16 %v4415, %v4414
    %v4419 = vpack.c.b16 %v4417, %v4416
    %v4423 = vsel %vm263, %v4401, 0
    %4425 = vmatpush.bf16.msra.mxu0 0
    %4426 = vmatpush.bf16.msra.mxu0 0
    %4427 = vmatpush.bf16.msra.mxu0 0
    %4428 = vmatpush.bf16.msra.mxu0 0
    %4429 = vmatpush.bf16.msra.mxu0 0
    %4430 = vmatpush.bf16.msra.mxu0 0
    %4431 = vmatpush.bf16.msra.mxu0 %v4419
    %4432 = vmatpush.bf16.msra.mxu0 %v4418
    %4433 = vmatmul.bf16.gmra.mxu0 %v4423
    %v4434 = vpop.f32.mrf.mxu0
    %v4435 = vadd.f32 %v4408, %v4434
    %v4436 = vpop.f32.mrf.mxu0
    %v4437 = vadd.f32 %v4408, %v4436
    %4438 = vdwg.mxu0
    %v4439 = vadd.f32 %v4343, %v4435
    %v4440 = vadd.f32 %v4345, %v4437
    %v4441 = vmul.f32 %v4439, %v286
    %v4442 = vmul.f32 %v4440, %v291
    %v4443 = vsel %vm166, %v4441, 0.0
    %v4444 = vsel %vm166, %v4442, 0.0
    %v4445 = vadd.f32 %v4443, %v4444
    %v4446 = vrot.slane %v4445, 4
    %v4447 = vadd.f32 %v4445, %v4446
    %v4448 = vrot.slane %v4447, 2
    %v4449 = vadd.f32 %v4447, %v4448
    %v4450 = vrot.slane %v4449, 1
    %v4451 = vadd.f32 %v4449, %v4450
    %v4452 = vmul.f32 %v4451, %v304
    %v4453 = vsub.f32 %v4439, %v4452
    %v4454 = vsub.f32 %v4440, %v4452
    %v4455 = vmul.f32 %v4453, %v286
    %v4456 = vmul.f32 %v4454, %v291
    %v4457 = vmul.f32 %v4455, %v4455
    %v4458 = vmul.f32 %v4456, %v4456
    %v4459 = vsel %vm166, %v4457, 0.0
    %v4460 = vsel %vm166, %v4458, 0.0
    %v4461 = vadd.f32 %v4459, %v4460
    %v4462 = vrot.slane %v4461, 4
    %v4463 = vadd.f32 %v4461, %v4462
    %v4464 = vrot.slane %v4463, 2
    %v4465 = vadd.f32 %v4463, %v4464
    %v4466 = vrot.slane %v4465, 1
    %v4467 = vadd.f32 %v4465, %v4466
    %v4468 = vmul.f32 %v4467, %v304
    %v4469 = vadd.f32 %v4468, 1e-05
    %v4470 = vrsqrt.pop %v4469
    %v4471 = vmul.f32 %v4470, %v4469
    %v4472 = vmul.f32 %v4471, %v4470
    %v4473 = vmul.f32 0.5, %v4472
    %v4474 = vsub.f32 1.5, %v4473
    %v4475 = vmul.f32 %v4470, %v4474
    %vm4476 = vweird.f32 %v4469
    %vm4477 = vweird.f32 %v4470
    %vm4478 = vmor %vm4476, %vm4477
    %v4479 = vsel %vm4478, %v4470, %v4475
    %v4480 = vmul.f32 %v4453, %v4479
    %v4481 = vmul.f32 %v4454, %v4479
    %v4482 = vld [vmem:[%s3 + $0x36] sm:$0x1]
    %4483 = vset.pattern.permute.xlu0 6
    %4484 = vperm.xlu0 %4483, %v2877
    %v4485 = vpop.permute.xlu0 %4484
    %4487 = vset.pattern.permute.xlu0 6
    %4488 = vperm.xlu0 %4487, %v2878
    %v4489 = vpop.permute.xlu0 %4488
    %v4492 = vperm.slane %v4482, 0
    %v4494 = vadd.f32 %v4485, %v4492
    %v4495 = vadd.f32 %v4489, %v4492
    %v4496 = vmul.f32 %v4494, %v4480
    %v4497 = vmul.f32 %v4495, %v4481
    %v4498 = vld [vmem:[%s3 + $0x37] sm:$0x1]
    %v4500 = vperm.slane %v4498, 0
    %v4502 = vadd.f32 %v4485, %v4500
    %v4503 = vadd.f32 %v4489, %v4500
    %v4504 = vadd.f32 %v4496, %v4502
    %v4505 = vadd.f32 %v4497, %v4503
    %vm4506 = vcmp.ge.f32.partialorder %v4504, 0.0
    %vm4507 = vcmp.ge.f32.partialorder %v4505, 0.0
    %v4508 = vmul.f32 %v4504, 0.2
    %v4509 = vmul.f32 %v4505, 0.2
    %v4510 = vsel %vm4506, %v4504, %v4508
    %v4511 = vsel %vm4507, %v4505, %v4509
    %v4512 = vpack.c.bf16 %v4511, %v4510
    %v4513 = vld [vmem:[#allocation2 + $0x18] sm:$0xf]
    %v4514 = vld [vmem:[#allocation2 + $0x40] sm:$0xf]
    %v4515 = vld [vmem:[#allocation2 + $0x68] sm:$0xf]
    %v4516 = vld [vmem:[#allocation2 + $0x90] sm:$0xf]
    %v4517 = vld [vmem:[#allocation2 + $0xb8] sm:$0xf]
    %v4518 = vld [vmem:[#allocation2 + $0xe0] sm:$0xf]
    %v4519 = vld [vmem:[#allocation2 + $0x108] sm:$0xf]
    %v4520 = vld [vmem:[#allocation2 + $0x130] sm:$0xf]
    %v4521 = vld [vmem:[%s3 + $0x38] sm:$0x1]
    %v4523 = vperm.slane %v4521, 0
    %v4533 = vunpack.c.l.b16 %v4513
    %v4534 = vunpack.c.l.b16 %v4514
    %v4535 = vunpack.c.l.b16 %v4515
    %v4536 = vunpack.c.l.b16 %v4516
    %v4537 = vunpack.c.l.b16 %v4517
    %v4538 = vunpack.c.l.b16 %v4518
    %v4539 = vunpack.c.l.b16 %v4519
    %v4540 = vunpack.c.l.b16 %v4520
    %v4541 = vpack.c.b16 %v4534, %v4533
    %v4542 = vpack.c.b16 %v4536, %v4535
    %v4543 = vpack.c.b16 %v4538, %v4537
    %v4544 = vpack.c.b16 %v4540, %v4539
    %v4550 = vsel %vm166, %v4512, 0
    %4552 = vmatpush.bf16.msra.mxu0 0
    %4553 = vmatpush.bf16.msra.mxu0 0
    %4554 = vmatpush.bf16.msra.mxu0 0
    %4555 = vmatpush.bf16.msra.mxu0 0
    %4556 = vmatpush.bf16.msra.mxu0 %v4544
    %4557 = vmatpush.bf16.msra.mxu0 %v4543
    %4558 = vmatpush.bf16.msra.mxu0 %v4542
    %4559 = vmatpush.bf16.msra.mxu0 %v4541
    %4560 = vmatmul.bf16.gmra.mxu0 %v4550
    %v4561 = vpop.f32.mrf.mxu0
    %v4562 = vadd.f32 %v4523, %v4561
    %v4563 = vpop.f32.mrf.mxu0
    %v4564 = vadd.f32 %v4523, %v4563
    %4565 = vdwg.mxu0
    %v4566 = vld [vmem:[#allocation2 + $0x1c] sm:$0xf]
    %v4567 = vld [vmem:[#allocation2 + $0x44] sm:$0xf]
    %v4568 = vld [vmem:[#allocation2 + $0x6c] sm:$0xf]
    %v4569 = vld [vmem:[#allocation2 + $0x94] sm:$0xf]
    %v4570 = vld [vmem:[#allocation2 + $0xbc] sm:$0xf]
    %v4571 = vld [vmem:[#allocation2 + $0xe4] sm:$0xf]
    %v4572 = vld [vmem:[#allocation2 + $0x10c] sm:$0xf]
    %v4573 = vld [vmem:[#allocation2 + $0x134] sm:$0xf]
    %v4574 = vld [vmem:[%s3 + $0x39] sm:$0x1]
    %v4576 = vperm.slane %v4574, 0
    %v4586 = vunpack.c.l.b16 %v4566
    %v4587 = vunpack.c.l.b16 %v4567
    %v4588 = vunpack.c.l.b16 %v4568
    %v4589 = vunpack.c.l.b16 %v4569
    %v4590 = vunpack.c.l.b16 %v4570
    %v4591 = vunpack.c.l.b16 %v4571
    %v4592 = vunpack.c.l.b16 %v4572
    %v4593 = vunpack.c.l.b16 %v4573
    %v4594 = vpack.c.b16 %v4587, %v4586
    %v4595 = vpack.c.b16 %v4589, %v4588
    %v4596 = vpack.c.b16 %v4591, %v4590
    %v4597 = vpack.c.b16 %v4593, %v4592
    %4602 = vmatpush.bf16.msra.mxu0 0
    %4603 = vmatpush.bf16.msra.mxu0 0
    %4604 = vmatpush.bf16.msra.mxu0 0
    %4605 = vmatpush.bf16.msra.mxu0 0
    %4606 = vmatpush.bf16.msra.mxu0 %v4597
    %4607 = vmatpush.bf16.msra.mxu0 %v4596
    %4608 = vmatpush.bf16.msra.mxu0 %v4595
    %4609 = vmatpush.bf16.msra.mxu0 %v4594
    %4610 = vmatmul.bf16.gmra.mxu0 %v4550
    %v4611 = vpop.f32.mrf.mxu0
    %v4612 = vadd.f32 %v4576, %v4611
    %v4613 = vpop.f32.mrf.mxu0
    %v4614 = vadd.f32 %v4576, %v4613
    %4615 = vdwg.mxu0
    %v4616 = vld [vmem:[#allocation2 + $0x20] sm:$0xf]
    %v4617 = vld [vmem:[#allocation2 + $0x48] sm:$0xf]
    %v4618 = vld [vmem:[#allocation2 + $0x70] sm:$0xf]
    %v4619 = vld [vmem:[#allocation2 + $0x98] sm:$0xf]
    %v4620 = vld [vmem:[#allocation2 + $0xc0] sm:$0xf]
    %v4621 = vld [vmem:[#allocation2 + $0xe8] sm:$0xf]
    %v4622 = vld [vmem:[#allocation2 + $0x110] sm:$0xf]
    %v4623 = vld [vmem:[#allocation2 + $0x138] sm:$0xf]
    %v4624 = vld [vmem:[%s3 + $0x3a] sm:$0x1]
    %v4626 = vperm.slane %v4624, 0
    %v4636 = vunpack.c.l.b16 %v4616
    %v4637 = vunpack.c.l.b16 %v4617
    %v4638 = vunpack.c.l.b16 %v4618
    %v4639 = vunpack.c.l.b16 %v4619
    %v4640 = vunpack.c.l.b16 %v4620
    %v4641 = vunpack.c.l.b16 %v4621
    %v4642 = vunpack.c.l.b16 %v4622
    %v4643 = vunpack.c.l.b16 %v4623
    %v4644 = vpack.c.b16 %v4637, %v4636
    %v4645 = vpack.c.b16 %v4639, %v4638
    %v4646 = vpack.c.b16 %v4641, %v4640
    %v4647 = vpack.c.b16 %v4643, %v4642
    %4652 = vmatpush.bf16.msra.mxu0 0
    %4653 = vmatpush.bf16.msra.mxu0 0
    %4654 = vmatpush.bf16.msra.mxu0 0
    %4655 = vmatpush.bf16.msra.mxu0 0
    %4656 = vmatpush.bf16.msra.mxu0 %v4647
    %4657 = vmatpush.bf16.msra.mxu0 %v4646
    %4658 = vmatpush.bf16.msra.mxu0 %v4645
    %4659 = vmatpush.bf16.msra.mxu0 %v4644
    %4660 = vmatmul.bf16.gmra.mxu0 %v4550
    %v4661 = vpop.f32.mrf.mxu0
    %v4662 = vadd.f32 %v4626, %v4661
    %v4663 = vpop.f32.mrf.mxu0
    %v4664 = vadd.f32 %v4626, %v4663
    %4665 = vdwg.mxu0
    %v4666 = vperm.slane %v4612, 0
    %v4667 = vlaneseq
    %v4668 = vshrl.u32 %v4667, 7
    %4670 = vset.pattern.permute.xlu0 %v4668
    %4671 = vperm.xlu0 %4670, %v4666
    %v4672 = vpop.permute.xlu0 %4671
    %v4673 = vlaneseq
    %v4674 = vshrl.u32 %v4673, 7
    %v4675 = vadd.s32 %v4674, 8
    %4676 = vset.pattern.permute.xlu0 %v4675
    %4677 = vperm.xlu0 %4676, %v4666
    %v4678 = vpop.permute.xlu0 %4677
    %v4679 = vperm.slane %v4612, 1
    %v4680 = vlaneseq
    %v4681 = vshrl.u32 %v4680, 7
    %4683 = vset.pattern.permute.xlu0 %v4681
    %4684 = vperm.xlu0 %4683, %v4679
    %v4685 = vpop.permute.xlu0 %4684
    %v4686 = vlaneseq
    %v4687 = vshrl.u32 %v4686, 7
    %v4688 = vadd.s32 %v4687, 8
    %4689 = vset.pattern.permute.xlu0 %v4688
    %4690 = vperm.xlu0 %4689, %v4679
    %v4691 = vpop.permute.xlu0 %4690
    %v4692 = vperm.slane %v4612, 2
    %v4693 = vlaneseq
    %v4694 = vshrl.u32 %v4693, 7
    %4696 = vset.pattern.permute.xlu0 %v4694
    %4697 = vperm.xlu0 %4696, %v4692
    %v4698 = vpop.permute.xlu0 %4697
    %v4699 = vlaneseq
    %v4700 = vshrl.u32 %v4699, 7
    %v4701 = vadd.s32 %v4700, 8
    %4702 = vset.pattern.permute.xlu0 %v4701
    %4703 = vperm.xlu0 %4702, %v4692
    %v4704 = vpop.permute.xlu0 %4703
    %v4705 = vperm.slane %v4612, 3
    %v4706 = vlaneseq
    %v4707 = vshrl.u32 %v4706, 7
    %4709 = vset.pattern.permute.xlu0 %v4707
    %4710 = vperm.xlu0 %4709, %v4705
    %v4711 = vpop.permute.xlu0 %4710
    %v4712 = vlaneseq
    %v4713 = vshrl.u32 %v4712, 7
    %v4714 = vadd.s32 %v4713, 8
    %4715 = vset.pattern.permute.xlu0 %v4714
    %4716 = vperm.xlu0 %4715, %v4705
    %v4717 = vpop.permute.xlu0 %4716
    %v4718 = vperm.slane %v4612, 4
    %v4719 = vlaneseq
    %v4720 = vshrl.u32 %v4719, 7
    %4722 = vset.pattern.permute.xlu0 %v4720
    %4723 = vperm.xlu0 %4722, %v4718
    %v4724 = vpop.permute.xlu0 %4723
    %v4725 = vlaneseq
    %v4726 = vshrl.u32 %v4725, 7
    %v4727 = vadd.s32 %v4726, 8
    %4728 = vset.pattern.permute.xlu0 %v4727
    %4729 = vperm.xlu0 %4728, %v4718
    %v4730 = vpop.permute.xlu0 %4729
    %v4731 = vperm.slane %v4612, 5
    %v4732 = vlaneseq
    %v4733 = vshrl.u32 %v4732, 7
    %4735 = vset.pattern.permute.xlu0 %v4733
    %4736 = vperm.xlu0 %4735, %v4731
    %v4737 = vpop.permute.xlu0 %4736
    %v4738 = vlaneseq
    %v4739 = vshrl.u32 %v4738, 7
    %v4740 = vadd.s32 %v4739, 8
    %4741 = vset.pattern.permute.xlu0 %v4740
    %4742 = vperm.xlu0 %4741, %v4731
    %v4743 = vpop.permute.xlu0 %4742
    %v4744 = vperm.slane %v4612, 6
    %v4745 = vlaneseq
    %v4746 = vshrl.u32 %v4745, 7
    %4748 = vset.pattern.permute.xlu0 %v4746
    %4749 = vperm.xlu0 %4748, %v4744
    %v4750 = vpop.permute.xlu0 %4749
    %v4751 = vlaneseq
    %v4752 = vshrl.u32 %v4751, 7
    %v4753 = vadd.s32 %v4752, 8
    %4754 = vset.pattern.permute.xlu0 %v4753
    %4755 = vperm.xlu0 %4754, %v4744
    %v4756 = vpop.permute.xlu0 %4755
    %v4757 = vperm.slane %v4612, 7
    %v4758 = vlaneseq
    %v4759 = vshrl.u32 %v4758, 7
    %4761 = vset.pattern.permute.xlu0 %v4759
    %4762 = vperm.xlu0 %4761, %v4757
    %v4763 = vpop.permute.xlu0 %4762
    %v4764 = vlaneseq
    %v4765 = vshrl.u32 %v4764, 7
    %v4766 = vadd.s32 %v4765, 8
    %4767 = vset.pattern.permute.xlu0 %v4766
    %4768 = vperm.xlu0 %4767, %v4757
    %v4769 = vpop.permute.xlu0 %4768
    %v4770 = vperm.slane %v4614, 0
    %v4771 = vlaneseq
    %v4772 = vshrl.u32 %v4771, 7
    %4774 = vset.pattern.permute.xlu0 %v4772
    %4775 = vperm.xlu0 %4774, %v4770
    %v4776 = vpop.permute.xlu0 %4775
    %v4777 = vlaneseq
    %v4778 = vshrl.u32 %v4777, 7
    %v4779 = vadd.s32 %v4778, 8
    %4780 = vset.pattern.permute.xlu0 %v4779
    %4781 = vperm.xlu0 %4780, %v4770
    %v4782 = vpop.permute.xlu0 %4781
    %v4783 = vperm.slane %v4614, 1
    %v4784 = vlaneseq
    %v4785 = vshrl.u32 %v4784, 7
    %4787 = vset.pattern.permute.xlu0 %v4785
    %4788 = vperm.xlu0 %4787, %v4783
    %v4789 = vpop.permute.xlu0 %4788
    %v4790 = vlaneseq
    %v4791 = vshrl.u32 %v4790, 7
    %v4792 = vadd.s32 %v4791, 8
    %4793 = vset.pattern.permute.xlu0 %v4792
    %4794 = vperm.xlu0 %4793, %v4783
    %v4795 = vpop.permute.xlu0 %4794
    %v4796 = vperm.slane %v4614, 2
    %v4797 = vlaneseq
    %v4798 = vshrl.u32 %v4797, 7
    %4800 = vset.pattern.permute.xlu0 %v4798
    %4801 = vperm.xlu0 %4800, %v4796
    %v4802 = vpop.permute.xlu0 %4801
    %v4803 = vlaneseq
    %v4804 = vshrl.u32 %v4803, 7
    %v4805 = vadd.s32 %v4804, 8
    %4806 = vset.pattern.permute.xlu0 %v4805
    %4807 = vperm.xlu0 %4806, %v4796
    %v4808 = vpop.permute.xlu0 %4807
    %v4809 = vperm.slane %v4614, 3
    %v4810 = vlaneseq
    %v4811 = vshrl.u32 %v4810, 7
    %4813 = vset.pattern.permute.xlu0 %v4811
    %4814 = vperm.xlu0 %4813, %v4809
    %v4815 = vpop.permute.xlu0 %4814
    %v4816 = vlaneseq
    %v4817 = vshrl.u32 %v4816, 7
    %v4818 = vadd.s32 %v4817, 8
    %4819 = vset.pattern.permute.xlu0 %v4818
    %4820 = vperm.xlu0 %4819, %v4809
    %v4821 = vpop.permute.xlu0 %4820
    %v4822 = vperm.slane %v4614, 4
    %v4823 = vlaneseq
    %v4824 = vshrl.u32 %v4823, 7
    %4826 = vset.pattern.permute.xlu0 %v4824
    %4827 = vperm.xlu0 %4826, %v4822
    %v4828 = vpop.permute.xlu0 %4827
    %v4829 = vlaneseq
    %v4830 = vshrl.u32 %v4829, 7
    %v4831 = vadd.s32 %v4830, 8
    %4832 = vset.pattern.permute.xlu0 %v4831
    %4833 = vperm.xlu0 %4832, %v4822
    %v4834 = vpop.permute.xlu0 %4833
    %v4835 = vperm.slane %v4614, 5
    %v4836 = vlaneseq
    %v4837 = vshrl.u32 %v4836, 7
    %4839 = vset.pattern.permute.xlu0 %v4837
    %4840 = vperm.xlu0 %4839, %v4835
    %v4841 = vpop.permute.xlu0 %4840
    %v4842 = vlaneseq
    %v4843 = vshrl.u32 %v4842, 7
    %v4844 = vadd.s32 %v4843, 8
    %4845 = vset.pattern.permute.xlu0 %v4844
    %4846 = vperm.xlu0 %4845, %v4835
    %v4847 = vpop.permute.xlu0 %4846
    %v4848 = vperm.slane %v4614, 6
    %v4849 = vlaneseq
    %v4850 = vshrl.u32 %v4849, 7
    %4852 = vset.pattern.permute.xlu0 %v4850
    %4853 = vperm.xlu0 %4852, %v4848
    %v4854 = vpop.permute.xlu0 %4853
    %v4855 = vlaneseq
    %v4856 = vshrl.u32 %v4855, 7
    %v4857 = vadd.s32 %v4856, 8
    %4858 = vset.pattern.permute.xlu0 %v4857
    %4859 = vperm.xlu0 %4858, %v4848
    %v4860 = vpop.permute.xlu0 %4859
    %v4861 = vperm.slane %v4614, 7
    %v4862 = vlaneseq
    %v4863 = vshrl.u32 %v4862, 7
    %4865 = vset.pattern.permute.xlu0 %v4863
    %4866 = vperm.xlu0 %4865, %v4861
    %v4867 = vpop.permute.xlu0 %4866
    %v4868 = vlaneseq
    %v4869 = vshrl.u32 %v4868, 7
    %v4870 = vadd.s32 %v4869, 8
    %4871 = vset.pattern.permute.xlu0 %v4870
    %4872 = vperm.xlu0 %4871, %v4861
    %v4873 = vpop.permute.xlu0 %4872
    %v4876 = vrot.slane %v4562, 1
    %v4877 = vrot.slane %v4562, 2
    %v4878 = vrot.slane %v4562, 3
    %v4879 = vrot.slane %v4562, 4
    %v4880 = vrot.slane %v4562, 5
    %v4881 = vrot.slane %v4562, 6
    %v4882 = vrot.slane %v4562, 7
    %v4883 = vrot.slane %v4564, 1
    %v4884 = vrot.slane %v4564, 2
    %v4885 = vrot.slane %v4564, 3
    %v4886 = vrot.slane %v4564, 4
    %v4887 = vrot.slane %v4564, 5
    %v4888 = vrot.slane %v4564, 6
    %v4889 = vrot.slane %v4564, 7
    %v4890 = vperm.slane %v4562, 0
    %v4891 = vperm.slane %v4876, 0
    %v4892 = vperm.slane %v4877, 0
    %v4893 = vperm.slane %v4878, 0
    %v4894 = vperm.slane %v4879, 0
    %v4895 = vperm.slane %v4880, 0
    %v4896 = vperm.slane %v4881, 0
    %v4897 = vperm.slane %v4882, 0
    %v4898 = vperm.slane %v4564, 0
    %v4899 = vperm.slane %v4883, 0
    %v4900 = vperm.slane %v4884, 0
    %v4901 = vperm.slane %v4885, 0
    %v4902 = vperm.slane %v4886, 0
    %v4903 = vperm.slane %v4887, 0
    %v4904 = vperm.slane %v4888, 0
    %v4905 = vperm.slane %v4889, 0
    %v4922 = vmul.f32 %v4672, %v4890
    %v4923 = vmul.f32 %v4678, %v4890
    %v4924 = vmul.f32 %v4685, %v4891
    %v4925 = vmul.f32 %v4691, %v4891
    %v4926 = vmul.f32 %v4698, %v4892
    %v4927 = vmul.f32 %v4704, %v4892
    %v4928 = vmul.f32 %v4711, %v4893
    %v4929 = vmul.f32 %v4717, %v4893
    %v4930 = vmul.f32 %v4724, %v4894
    %v4931 = vmul.f32 %v4730, %v4894
    %v4932 = vmul.f32 %v4737, %v4895
    %v4933 = vmul.f32 %v4743, %v4895
    %v4934 = vmul.f32 %v4750, %v4896
    %v4935 = vmul.f32 %v4756, %v4896
    %v4936 = vmul.f32 %v4763, %v4897
    %v4937 = vmul.f32 %v4769, %v4897
    %v4938 = vmul.f32 %v4776, %v4898
    %v4939 = vmul.f32 %v4782, %v4898
    %v4940 = vmul.f32 %v4789, %v4899
    %v4941 = vmul.f32 %v4795, %v4899
    %v4942 = vmul.f32 %v4802, %v4900
    %v4943 = vmul.f32 %v4808, %v4900
    %v4944 = vmul.f32 %v4815, %v4901
    %v4945 = vmul.f32 %v4821, %v4901
    %v4946 = vmul.f32 %v4828, %v4902
    %v4947 = vmul.f32 %v4834, %v4902
    %v4948 = vmul.f32 %v4841, %v4903
    %v4949 = vmul.f32 %v4847, %v4903
    %v4950 = vmul.f32 %v4854, %v4904
    %v4951 = vmul.f32 %v4860, %v4904
    %v4952 = vmul.f32 %v4867, %v4905
    %v4953 = vmul.f32 %v4873, %v4905
    %v4954 = vsel %vm166, %v4922, -inf
    %v4955 = vsel %vm166, %v4923, -inf
    %v4956 = vmax.f32 %v4954, %v4955
    %v4957 = vrot.slane %v4956, 4
    %v4958 = vmax.f32 %v4956, %v4957
    %v4959 = vrot.slane %v4958, 2
    %v4960 = vmax.f32 %v4958, %v4959
    %v4961 = vrot.slane %v4960, 1
    %v4962 = vmax.f32 %v4960, %v4961
    %v4963 = vsel %vm166, %v4924, -inf
    %v4964 = vsel %vm166, %v4925, -inf
    %v4965 = vmax.f32 %v4963, %v4964
    %v4966 = vrot.slane %v4965, 4
    %v4967 = vmax.f32 %v4965, %v4966
    %v4968 = vrot.slane %v4967, 2
    %v4969 = vmax.f32 %v4967, %v4968
    %v4970 = vrot.slane %v4969, 1
    %v4971 = vmax.f32 %v4969, %v4970
    %v4972 = vsel %vm166, %v4926, -inf
    %v4973 = vsel %vm166, %v4927, -inf
    %v4974 = vmax.f32 %v4972, %v4973
    %v4975 = vrot.slane %v4974, 4
    %v4976 = vmax.f32 %v4974, %v4975
    %v4977 = vrot.slane %v4976, 2
    %v4978 = vmax.f32 %v4976, %v4977
    %v4979 = vrot.slane %v4978, 1
    %v4980 = vmax.f32 %v4978, %v4979
    %v4981 = vsel %vm166, %v4928, -inf
    %v4982 = vsel %vm166, %v4929, -inf
    %v4983 = vmax.f32 %v4981, %v4982
    %v4984 = vrot.slane %v4983, 4
    %v4985 = vmax.f32 %v4983, %v4984
    %v4986 = vrot.slane %v4985, 2
    %v4987 = vmax.f32 %v4985, %v4986
    %v4988 = vrot.slane %v4987, 1
    %v4989 = vmax.f32 %v4987, %v4988
    %v4990 = vsel %vm166, %v4930, -inf
    %v4991 = vsel %vm166, %v4931, -inf
    %v4992 = vmax.f32 %v4990, %v4991
    %v4993 = vrot.slane %v4992, 4
    %v4994 = vmax.f32 %v4992, %v4993
    %v4995 = vrot.slane %v4994, 2
    %v4996 = vmax.f32 %v4994, %v4995
    %v4997 = vrot.slane %v4996, 1
    %v4998 = vmax.f32 %v4996, %v4997
    %v4999 = vsel %vm166, %v4932, -inf
    %v5000 = vsel %vm166, %v4933, -inf
    %v5001 = vmax.f32 %v4999, %v5000
    %v5002 = vrot.slane %v5001, 4
    %v5003 = vmax.f32 %v5001, %v5002
    %v5004 = vrot.slane %v5003, 2
    %v5005 = vmax.f32 %v5003, %v5004
    %v5006 = vrot.slane %v5005, 1
    %v5007 = vmax.f32 %v5005, %v5006
    %v5008 = vsel %vm166, %v4934, -inf
    %v5009 = vsel %vm166, %v4935, -inf
    %v5010 = vmax.f32 %v5008, %v5009
    %v5011 = vrot.slane %v5010, 4
    %v5012 = vmax.f32 %v5010, %v5011
    %v5013 = vrot.slane %v5012, 2
    %v5014 = vmax.f32 %v5012, %v5013
    %v5015 = vrot.slane %v5014, 1
    %v5016 = vmax.f32 %v5014, %v5015
    %v5017 = vsel %vm166, %v4936, -inf
    %v5018 = vsel %vm166, %v4937, -inf
    %v5019 = vmax.f32 %v5017, %v5018
    %v5020 = vrot.slane %v5019, 4
    %v5021 = vmax.f32 %v5019, %v5020
    %v5022 = vrot.slane %v5021, 2
    %v5023 = vmax.f32 %v5021, %v5022
    %v5024 = vrot.slane %v5023, 1
    %v5025 = vmax.f32 %v5023, %v5024
    %v5026 = vsel %vm166, %v4938, -inf
    %v5027 = vsel %vm166, %v4939, -inf
    %v5028 = vmax.f32 %v5026, %v5027
    %v5029 = vrot.slane %v5028, 4
    %v5030 = vmax.f32 %v5028, %v5029
    %v5031 = vrot.slane %v5030, 2
    %v5032 = vmax.f32 %v5030, %v5031
    %v5033 = vrot.slane %v5032, 1
    %v5034 = vmax.f32 %v5032, %v5033
    %v5035 = vsel %vm166, %v4940, -inf
    %v5036 = vsel %vm166, %v4941, -inf
    %v5037 = vmax.f32 %v5035, %v5036
    %v5038 = vrot.slane %v5037, 4
    %v5039 = vmax.f32 %v5037, %v5038
    %v5040 = vrot.slane %v5039, 2
    %v5041 = vmax.f32 %v5039, %v5040
    %v5042 = vrot.slane %v5041, 1
    %v5043 = vmax.f32 %v5041, %v5042
    %v5044 = vsel %vm166, %v4942, -inf
    %v5045 = vsel %vm166, %v4943, -inf
    %v5046 = vmax.f32 %v5044, %v5045
    %v5047 = vrot.slane %v5046, 4
    %v5048 = vmax.f32 %v5046, %v5047
    %v5049 = vrot.slane %v5048, 2
    %v5050 = vmax.f32 %v5048, %v5049
    %v5051 = vrot.slane %v5050, 1
    %v5052 = vmax.f32 %v5050, %v5051
    %v5053 = vsel %vm166, %v4944, -inf
    %v5054 = vsel %vm166, %v4945, -inf
    %v5055 = vmax.f32 %v5053, %v5054
    %v5056 = vrot.slane %v5055, 4
    %v5057 = vmax.f32 %v5055, %v5056
    %v5058 = vrot.slane %v5057, 2
    %v5059 = vmax.f32 %v5057, %v5058
    %v5060 = vrot.slane %v5059, 1
    %v5061 = vmax.f32 %v5059, %v5060
    %v5062 = vsel %vm166, %v4946, -inf
    %v5063 = vsel %vm166, %v4947, -inf
    %v5064 = vmax.f32 %v5062, %v5063
    %v5065 = vrot.slane %v5064, 4
    %v5066 = vmax.f32 %v5064, %v5065
    %v5067 = vrot.slane %v5066, 2
    %v5068 = vmax.f32 %v5066, %v5067
    %v5069 = vrot.slane %v5068, 1
    %v5070 = vmax.f32 %v5068, %v5069
    %v5071 = vsel %vm166, %v4948, -inf
    %v5072 = vsel %vm166, %v4949, -inf
    %v5073 = vmax.f32 %v5071, %v5072
    %v5074 = vrot.slane %v5073, 4
    %v5075 = vmax.f32 %v5073, %v5074
    %v5076 = vrot.slane %v5075, 2
    %v5077 = vmax.f32 %v5075, %v5076
    %v5078 = vrot.slane %v5077, 1
    %v5079 = vmax.f32 %v5077, %v5078
    %v5080 = vsel %vm166, %v4950, -inf
    %v5081 = vsel %vm166, %v4951, -inf
    %v5082 = vmax.f32 %v5080, %v5081
    %v5083 = vrot.slane %v5082, 4
    %v5084 = vmax.f32 %v5082, %v5083
    %v5085 = vrot.slane %v5084, 2
    %v5086 = vmax.f32 %v5084, %v5085
    %v5087 = vrot.slane %v5086, 1
    %v5088 = vmax.f32 %v5086, %v5087
    %v5089 = vsel %vm166, %v4952, -inf
    %v5090 = vsel %vm166, %v4953, -inf
    %v5091 = vmax.f32 %v5089, %v5090
    %v5092 = vrot.slane %v5091, 4
    %v5093 = vmax.f32 %v5091, %v5092
    %v5094 = vrot.slane %v5093, 2
    %v5095 = vmax.f32 %v5093, %v5094
    %v5096 = vrot.slane %v5095, 1
    %v5097 = vmax.f32 %v5095, %v5096
    %v5098 = vsub.f32 %v4922, %v4962
    %v5099 = vsub.f32 %v4923, %v4962
    %v5100 = vsub.f32 %v4924, %v4971
    %v5101 = vsub.f32 %v4925, %v4971
    %v5102 = vsub.f32 %v4926, %v4980
    %v5103 = vsub.f32 %v4927, %v4980
    %v5104 = vsub.f32 %v4928, %v4989
    %v5105 = vsub.f32 %v4929, %v4989
    %v5106 = vsub.f32 %v4930, %v4998
    %v5107 = vsub.f32 %v4931, %v4998
    %v5108 = vsub.f32 %v4932, %v5007
    %v5109 = vsub.f32 %v4933, %v5007
    %v5110 = vsub.f32 %v4934, %v5016
    %v5111 = vsub.f32 %v4935, %v5016
    %v5112 = vsub.f32 %v4936, %v5025
    %v5113 = vsub.f32 %v4937, %v5025
    %v5114 = vsub.f32 %v4938, %v5034
    %v5115 = vsub.f32 %v4939, %v5034
    %v5116 = vsub.f32 %v4940, %v5043
    %v5117 = vsub.f32 %v4941, %v5043
    %v5118 = vsub.f32 %v4942, %v5052
    %v5119 = vsub.f32 %v4943, %v5052
    %v5120 = vsub.f32 %v4944, %v5061
    %v5121 = vsub.f32 %v4945, %v5061
    %v5122 = vsub.f32 %v4946, %v5070
    %v5123 = vsub.f32 %v4947, %v5070
    %v5124 = vsub.f32 %v4948, %v5079
    %v5125 = vsub.f32 %v4949, %v5079
    %v5126 = vsub.f32 %v4950, %v5088
    %v5127 = vsub.f32 %v4951, %v5088
    %v5128 = vsub.f32 %v4952, %v5097
    %v5129 = vsub.f32 %v4953, %v5097
    %v5130 = vmul.f32 %v5098, 1.442695
    %v5131 = vpow.pop %v5130
    %v5132 = vmul.f32 %v5099, 1.442695
    %v5133 = vpow.pop %v5132
    %v5134 = vmul.f32 %v5100, 1.442695
    %v5135 = vpow.pop %v5134
    %v5136 = vmul.f32 %v5101, 1.442695
    %v5137 = vpow.pop %v5136
    %v5138 = vmul.f32 %v5102, 1.442695
    %v5139 = vpow.pop %v5138
    %v5140 = vmul.f32 %v5103, 1.442695
    %v5141 = vpow.pop %v5140
    %v5142 = vmul.f32 %v5104, 1.442695
    %v5143 = vpow.pop %v5142
    %v5144 = vmul.f32 %v5105, 1.442695
    %v5145 = vpow.pop %v5144
    %v5146 = vmul.f32 %v5106, 1.442695
    %v5147 = vpow.pop %v5146
    %v5148 = vmul.f32 %v5107, 1.442695
    %v5149 = vpow.pop %v5148
    %v5150 = vmul.f32 %v5108, 1.442695
    %v5151 = vpow.pop %v5150
    %v5152 = vmul.f32 %v5109, 1.442695
    %v5153 = vpow.pop %v5152
    %v5154 = vmul.f32 %v5110, 1.442695
    %v5155 = vpow.pop %v5154
    %v5156 = vmul.f32 %v5111, 1.442695
    %v5157 = vpow.pop %v5156
    %v5158 = vmul.f32 %v5112, 1.442695
    %v5159 = vpow.pop %v5158
    %v5160 = vmul.f32 %v5113, 1.442695
    %v5161 = vpow.pop %v5160
    %v5162 = vmul.f32 %v5114, 1.442695
    %v5163 = vpow.pop %v5162
    %v5164 = vmul.f32 %v5115, 1.442695
    %v5165 = vpow.pop %v5164
    %v5166 = vmul.f32 %v5116, 1.442695
    %v5167 = vpow.pop %v5166
    %v5168 = vmul.f32 %v5117, 1.442695
    %v5169 = vpow.pop %v5168
    %v5170 = vmul.f32 %v5118, 1.442695
    %v5171 = vpow.pop %v5170
    %v5172 = vmul.f32 %v5119, 1.442695
    %v5173 = vpow.pop %v5172
    %v5174 = vmul.f32 %v5120, 1.442695
    %v5175 = vpow.pop %v5174
    %v5176 = vmul.f32 %v5121, 1.442695
    %v5177 = vpow.pop %v5176
    %v5178 = vmul.f32 %v5122, 1.442695
    %v5179 = vpow.pop %v5178
    %v5180 = vmul.f32 %v5123, 1.442695
    %v5181 = vpow.pop %v5180
    %v5182 = vmul.f32 %v5124, 1.442695
    %v5183 = vpow.pop %v5182
    %v5184 = vmul.f32 %v5125, 1.442695
    %v5185 = vpow.pop %v5184
    %v5186 = vmul.f32 %v5126, 1.442695
    %v5187 = vpow.pop %v5186
    %v5188 = vmul.f32 %v5127, 1.442695
    %v5189 = vpow.pop %v5188
    %v5190 = vmul.f32 %v5128, 1.442695
    %v5191 = vpow.pop %v5190
    %v5192 = vmul.f32 %v5129, 1.442695
    %v5193 = vpow.pop %v5192
    %v5194 = vsel %vm166, %v5131, 0.0
    %v5195 = vsel %vm166, %v5133, 0.0
    %v5196 = vadd.f32 %v5194, %v5195
    %v5197 = vrot.slane %v5196, 4
    %v5198 = vadd.f32 %v5196, %v5197
    %v5199 = vrot.slane %v5198, 2
    %v5200 = vadd.f32 %v5198, %v5199
    %v5201 = vrot.slane %v5200, 1
    %v5202 = vadd.f32 %v5200, %v5201
    %v5203 = vsel %vm166, %v5135, 0.0
    %v5204 = vsel %vm166, %v5137, 0.0
    %v5205 = vadd.f32 %v5203, %v5204
    %v5206 = vrot.slane %v5205, 4
    %v5207 = vadd.f32 %v5205, %v5206
    %v5208 = vrot.slane %v5207, 2
    %v5209 = vadd.f32 %v5207, %v5208
    %v5210 = vrot.slane %v5209, 1
    %v5211 = vadd.f32 %v5209, %v5210
    %v5212 = vsel %vm166, %v5139, 0.0
    %v5213 = vsel %vm166, %v5141, 0.0
    %v5214 = vadd.f32 %v5212, %v5213
    %v5215 = vrot.slane %v5214, 4
    %v5216 = vadd.f32 %v5214, %v5215
    %v5217 = vrot.slane %v5216, 2
    %v5218 = vadd.f32 %v5216, %v5217
    %v5219 = vrot.slane %v5218, 1
    %v5220 = vadd.f32 %v5218, %v5219
    %v5221 = vsel %vm166, %v5143, 0.0
    %v5222 = vsel %vm166, %v5145, 0.0
    %v5223 = vadd.f32 %v5221, %v5222
    %v5224 = vrot.slane %v5223, 4
    %v5225 = vadd.f32 %v5223, %v5224
    %v5226 = vrot.slane %v5225, 2
    %v5227 = vadd.f32 %v5225, %v5226
    %v5228 = vrot.slane %v5227, 1
    %v5229 = vadd.f32 %v5227, %v5228
    %v5230 = vsel %vm166, %v5147, 0.0
    %v5231 = vsel %vm166, %v5149, 0.0
    %v5232 = vadd.f32 %v5230, %v5231
    %v5233 = vrot.slane %v5232, 4
    %v5234 = vadd.f32 %v5232, %v5233
    %v5235 = vrot.slane %v5234, 2
    %v5236 = vadd.f32 %v5234, %v5235
    %v5237 = vrot.slane %v5236, 1
    %v5238 = vadd.f32 %v5236, %v5237
    %v5239 = vsel %vm166, %v5151, 0.0
    %v5240 = vsel %vm166, %v5153, 0.0
    %v5241 = vadd.f32 %v5239, %v5240
    %v5242 = vrot.slane %v5241, 4
    %v5243 = vadd.f32 %v5241, %v5242
    %v5244 = vrot.slane %v5243, 2
    %v5245 = vadd.f32 %v5243, %v5244
    %v5246 = vrot.slane %v5245, 1
    %v5247 = vadd.f32 %v5245, %v5246
    %v5248 = vsel %vm166, %v5155, 0.0
    %v5249 = vsel %vm166, %v5157, 0.0
    %v5250 = vadd.f32 %v5248, %v5249
    %v5251 = vrot.slane %v5250, 4
    %v5252 = vadd.f32 %v5250, %v5251
    %v5253 = vrot.slane %v5252, 2
    %v5254 = vadd.f32 %v5252, %v5253
    %v5255 = vrot.slane %v5254, 1
    %v5256 = vadd.f32 %v5254, %v5255
    %v5257 = vsel %vm166, %v5159, 0.0
    %v5258 = vsel %vm166, %v5161, 0.0
    %v5259 = vadd.f32 %v5257, %v5258
    %v5260 = vrot.slane %v5259, 4
    %v5261 = vadd.f32 %v5259, %v5260
    %v5262 = vrot.slane %v5261, 2
    %v5263 = vadd.f32 %v5261, %v5262
    %v5264 = vrot.slane %v5263, 1
    %v5265 = vadd.f32 %v5263, %v5264
    %v5266 = vsel %vm166, %v5163, 0.0
    %v5267 = vsel %vm166, %v5165, 0.0
    %v5268 = vadd.f32 %v5266, %v5267
    %v5269 = vrot.slane %v5268, 4
    %v5270 = vadd.f32 %v5268, %v5269
    %v5271 = vrot.slane %v5270, 2
    %v5272 = vadd.f32 %v5270, %v5271
    %v5273 = vrot.slane %v5272, 1
    %v5274 = vadd.f32 %v5272, %v5273
    %v5275 = vsel %vm166, %v5167, 0.0
    %v5276 = vsel %vm166, %v5169, 0.0
    %v5277 = vadd.f32 %v5275, %v5276
    %v5278 = vrot.slane %v5277, 4
    %v5279 = vadd.f32 %v5277, %v5278
    %v5280 = vrot.slane %v5279, 2
    %v5281 = vadd.f32 %v5279, %v5280
    %v5282 = vrot.slane %v5281, 1
    %v5283 = vadd.f32 %v5281, %v5282
    %v5284 = vsel %vm166, %v5171, 0.0
    %v5285 = vsel %vm166, %v5173, 0.0
    %v5286 = vadd.f32 %v5284, %v5285
    %v5287 = vrot.slane %v5286, 4
    %v5288 = vadd.f32 %v5286, %v5287
    %v5289 = vrot.slane %v5288, 2
    %v5290 = vadd.f32 %v5288, %v5289
    %v5291 = vrot.slane %v5290, 1
    %v5292 = vadd.f32 %v5290, %v5291
    %v5293 = vsel %vm166, %v5175, 0.0
    %v5294 = vsel %vm166, %v5177, 0.0
    %v5295 = vadd.f32 %v5293, %v5294
    %v5296 = vrot.slane %v5295, 4
    %v5297 = vadd.f32 %v5295, %v5296
    %v5298 = vrot.slane %v5297, 2
    %v5299 = vadd.f32 %v5297, %v5298
    %v5300 = vrot.slane %v5299, 1
    %v5301 = vadd.f32 %v5299, %v5300
    %v5302 = vsel %vm166, %v5179, 0.0
    %v5303 = vsel %vm166, %v5181, 0.0
    %v5304 = vadd.f32 %v5302, %v5303
    %v5305 = vrot.slane %v5304, 4
    %v5306 = vadd.f32 %v5304, %v5305
    %v5307 = vrot.slane %v5306, 2
    %v5308 = vadd.f32 %v5306, %v5307
    %v5309 = vrot.slane %v5308, 1
    %v5310 = vadd.f32 %v5308, %v5309
    %v5311 = vsel %vm166, %v5183, 0.0
    %v5312 = vsel %vm166, %v5185, 0.0
    %v5313 = vadd.f32 %v5311, %v5312
    %v5314 = vrot.slane %v5313, 4
    %v5315 = vadd.f32 %v5313, %v5314
    %v5316 = vrot.slane %v5315, 2
    %v5317 = vadd.f32 %v5315, %v5316
    %v5318 = vrot.slane %v5317, 1
    %v5319 = vadd.f32 %v5317, %v5318
    %v5320 = vsel %vm166, %v5187, 0.0
    %v5321 = vsel %vm166, %v5189, 0.0
    %v5322 = vadd.f32 %v5320, %v5321
    %v5323 = vrot.slane %v5322, 4
    %v5324 = vadd.f32 %v5322, %v5323
    %v5325 = vrot.slane %v5324, 2
    %v5326 = vadd.f32 %v5324, %v5325
    %v5327 = vrot.slane %v5326, 1
    %v5328 = vadd.f32 %v5326, %v5327
    %v5329 = vsel %vm166, %v5191, 0.0
    %v5330 = vsel %vm166, %v5193, 0.0
    %v5331 = vadd.f32 %v5329, %v5330
    %v5332 = vrot.slane %v5331, 4
    %v5333 = vadd.f32 %v5331, %v5332
    %v5334 = vrot.slane %v5333, 2
    %v5335 = vadd.f32 %v5333, %v5334
    %v5336 = vrot.slane %v5335, 1
    %v5337 = vadd.f32 %v5335, %v5336
    %v5338 = vrcp.pop %v5202
    %v5339 = vrcp.pop %v5211
    %v5340 = vrcp.pop %v5220
    %v5341 = vrcp.pop %v5229
    %v5342 = vrcp.pop %v5238
    %v5343 = vrcp.pop %v5247
    %v5344 = vrcp.pop %v5256
    %v5345 = vrcp.pop %v5265
    %v5346 = vrcp.pop %v5274
    %v5347 = vrcp.pop %v5283
    %v5348 = vrcp.pop %v5292
    %v5349 = vrcp.pop %v5301
    %v5350 = vrcp.pop %v5310
    %v5351 = vrcp.pop %v5319
    %v5352 = vrcp.pop %v5328
    %v5353 = vrcp.pop %v5337
    %v5354 = vmul.f32 %v5131, %v5338
    %v5355 = vmul.f32 %v5133, %v5338
    %v5356 = vmul.f32 %v5135, %v5339
    %v5357 = vmul.f32 %v5137, %v5339
    %v5358 = vmul.f32 %v5139, %v5340
    %v5359 = vmul.f32 %v5141, %v5340
    %v5360 = vmul.f32 %v5143, %v5341
    %v5361 = vmul.f32 %v5145, %v5341
    %v5362 = vmul.f32 %v5147, %v5342
    %v5363 = vmul.f32 %v5149, %v5342
    %v5364 = vmul.f32 %v5151, %v5343
    %v5365 = vmul.f32 %v5153, %v5343
    %v5366 = vmul.f32 %v5155, %v5344
    %v5367 = vmul.f32 %v5157, %v5344
    %v5368 = vmul.f32 %v5159, %v5345
    %v5369 = vmul.f32 %v5161, %v5345
    %v5370 = vmul.f32 %v5163, %v5346
    %v5371 = vmul.f32 %v5165, %v5346
    %v5372 = vmul.f32 %v5167, %v5347
    %v5373 = vmul.f32 %v5169, %v5347
    %v5374 = vmul.f32 %v5171, %v5348
    %v5375 = vmul.f32 %v5173, %v5348
    %v5376 = vmul.f32 %v5175, %v5349
    %v5377 = vmul.f32 %v5177, %v5349
    %v5378 = vmul.f32 %v5179, %v5350
    %v5379 = vmul.f32 %v5181, %v5350
    %v5380 = vmul.f32 %v5183, %v5351
    %v5381 = vmul.f32 %v5185, %v5351
    %v5382 = vmul.f32 %v5187, %v5352
    %v5383 = vmul.f32 %v5189, %v5352
    %v5384 = vmul.f32 %v5191, %v5353
    %v5385 = vmul.f32 %v5193, %v5353
    %v5386 = vperm.slane %v4662, 0
    %v5387 = vlaneseq
    %v5388 = vshrl.u32 %v5387, 7
    %5390 = vset.pattern.permute.xlu0 %v5388
    %5391 = vperm.xlu0 %5390, %v5386
    %v5392 = vpop.permute.xlu0 %5391
    %v5393 = vlaneseq
    %v5394 = vshrl.u32 %v5393, 7
    %v5395 = vadd.s32 %v5394, 8
    %5396 = vset.pattern.permute.xlu0 %v5395
    %5397 = vperm.xlu0 %5396, %v5386
    %v5398 = vpop.permute.xlu0 %5397
    %v5399 = vperm.slane %v4662, 1
    %v5400 = vlaneseq
    %v5401 = vshrl.u32 %v5400, 7
    %5403 = vset.pattern.permute.xlu0 %v5401
    %5404 = vperm.xlu0 %5403, %v5399
    %v5405 = vpop.permute.xlu0 %5404
    %v5406 = vlaneseq
    %v5407 = vshrl.u32 %v5406, 7
    %v5408 = vadd.s32 %v5407, 8
    %5409 = vset.pattern.permute.xlu0 %v5408
    %5410 = vperm.xlu0 %5409, %v5399
    %v5411 = vpop.permute.xlu0 %5410
    %v5412 = vperm.slane %v4662, 2
    %v5413 = vlaneseq
    %v5414 = vshrl.u32 %v5413, 7
    %5416 = vset.pattern.permute.xlu0 %v5414
    %5417 = vperm.xlu0 %5416, %v5412
    %v5418 = vpop.permute.xlu0 %5417
    %v5419 = vlaneseq
    %v5420 = vshrl.u32 %v5419, 7
    %v5421 = vadd.s32 %v5420, 8
    %5422 = vset.pattern.permute.xlu0 %v5421
    %5423 = vperm.xlu0 %5422, %v5412
    %v5424 = vpop.permute.xlu0 %5423
    %v5425 = vperm.slane %v4662, 3
    %v5426 = vlaneseq
    %v5427 = vshrl.u32 %v5426, 7
    %5429 = vset.pattern.permute.xlu0 %v5427
    %5430 = vperm.xlu0 %5429, %v5425
    %v5431 = vpop.permute.xlu0 %5430
    %v5432 = vlaneseq
    %v5433 = vshrl.u32 %v5432, 7
    %v5434 = vadd.s32 %v5433, 8
    %5435 = vset.pattern.permute.xlu0 %v5434
    %5436 = vperm.xlu0 %5435, %v5425
    %v5437 = vpop.permute.xlu0 %5436
    %v5438 = vperm.slane %v4662, 4
    %v5439 = vlaneseq
    %v5440 = vshrl.u32 %v5439, 7
    %5442 = vset.pattern.permute.xlu0 %v5440
    %5443 = vperm.xlu0 %5442, %v5438
    %v5444 = vpop.permute.xlu0 %5443
    %v5445 = vlaneseq
    %v5446 = vshrl.u32 %v5445, 7
    %v5447 = vadd.s32 %v5446, 8
    %5448 = vset.pattern.permute.xlu0 %v5447
    %5449 = vperm.xlu0 %5448, %v5438
    %v5450 = vpop.permute.xlu0 %5449
    %v5451 = vperm.slane %v4662, 5
    %v5452 = vlaneseq
    %v5453 = vshrl.u32 %v5452, 7
    %5455 = vset.pattern.permute.xlu0 %v5453
    %5456 = vperm.xlu0 %5455, %v5451
    %v5457 = vpop.permute.xlu0 %5456
    %v5458 = vlaneseq
    %v5459 = vshrl.u32 %v5458, 7
    %v5460 = vadd.s32 %v5459, 8
    %5461 = vset.pattern.permute.xlu0 %v5460
    %5462 = vperm.xlu0 %5461, %v5451
    %v5463 = vpop.permute.xlu0 %5462
    %v5464 = vperm.slane %v4662, 6
    %v5465 = vlaneseq
    %v5466 = vshrl.u32 %v5465, 7
    %5468 = vset.pattern.permute.xlu0 %v5466
    %5469 = vperm.xlu0 %5468, %v5464
    %v5470 = vpop.permute.xlu0 %5469
    %v5471 = vlaneseq
    %v5472 = vshrl.u32 %v5471, 7
    %v5473 = vadd.s32 %v5472, 8
    %5474 = vset.pattern.permute.xlu0 %v5473
    %5475 = vperm.xlu0 %5474, %v5464
    %v5476 = vpop.permute.xlu0 %5475
    %v5477 = vperm.slane %v4662, 7
    %v5478 = vlaneseq
    %v5479 = vshrl.u32 %v5478, 7
    %5481 = vset.pattern.permute.xlu0 %v5479
    %5482 = vperm.xlu0 %5481, %v5477
    %v5483 = vpop.permute.xlu0 %5482
    %v5484 = vlaneseq
    %v5485 = vshrl.u32 %v5484, 7
    %v5486 = vadd.s32 %v5485, 8
    %5487 = vset.pattern.permute.xlu0 %v5486
    %5488 = vperm.xlu0 %5487, %v5477
    %v5489 = vpop.permute.xlu0 %5488
    %v5490 = vperm.slane %v4664, 0
    %v5491 = vlaneseq
    %v5492 = vshrl.u32 %v5491, 7
    %5494 = vset.pattern.permute.xlu0 %v5492
    %5495 = vperm.xlu0 %5494, %v5490
    %v5496 = vpop.permute.xlu0 %5495
    %v5497 = vlaneseq
    %v5498 = vshrl.u32 %v5497, 7
    %v5499 = vadd.s32 %v5498, 8
    %5500 = vset.pattern.permute.xlu0 %v5499
    %5501 = vperm.xlu0 %5500, %v5490
    %v5502 = vpop.permute.xlu0 %5501
    %v5503 = vperm.slane %v4664, 1
    %v5504 = vlaneseq
    %v5505 = vshrl.u32 %v5504, 7
    %5507 = vset.pattern.permute.xlu0 %v5505
    %5508 = vperm.xlu0 %5507, %v5503
    %v5509 = vpop.permute.xlu0 %5508
    %v5510 = vlaneseq
    %v5511 = vshrl.u32 %v5510, 7
    %v5512 = vadd.s32 %v5511, 8
    %5513 = vset.pattern.permute.xlu0 %v5512
    %5514 = vperm.xlu0 %5513, %v5503
    %v5515 = vpop.permute.xlu0 %5514
    %v5516 = vperm.slane %v4664, 2
    %v5517 = vlaneseq
    %v5518 = vshrl.u32 %v5517, 7
    %5520 = vset.pattern.permute.xlu0 %v5518
    %5521 = vperm.xlu0 %5520, %v5516
    %v5522 = vpop.permute.xlu0 %5521
    %v5523 = vlaneseq
    %v5524 = vshrl.u32 %v5523, 7
    %v5525 = vadd.s32 %v5524, 8
    %5526 = vset.pattern.permute.xlu0 %v5525
    %5527 = vperm.xlu0 %5526, %v5516
    %v5528 = vpop.permute.xlu0 %5527
    %v5529 = vperm.slane %v4664, 3
    %v5530 = vlaneseq
    %v5531 = vshrl.u32 %v5530, 7
    %5533 = vset.pattern.permute.xlu0 %v5531
    %5534 = vperm.xlu0 %5533, %v5529
    %v5535 = vpop.permute.xlu0 %5534
    %v5536 = vlaneseq
    %v5537 = vshrl.u32 %v5536, 7
    %v5538 = vadd.s32 %v5537, 8
    %5539 = vset.pattern.permute.xlu0 %v5538
    %5540 = vperm.xlu0 %5539, %v5529
    %v5541 = vpop.permute.xlu0 %5540
    %v5542 = vperm.slane %v4664, 4
    %v5543 = vlaneseq
    %v5544 = vshrl.u32 %v5543, 7
    %5546 = vset.pattern.permute.xlu0 %v5544
    %5547 = vperm.xlu0 %5546, %v5542
    %v5548 = vpop.permute.xlu0 %5547
    %v5549 = vlaneseq
    %v5550 = vshrl.u32 %v5549, 7
    %v5551 = vadd.s32 %v5550, 8
    %5552 = vset.pattern.permute.xlu0 %v5551
    %5553 = vperm.xlu0 %5552, %v5542
    %v5554 = vpop.permute.xlu0 %5553
    %v5555 = vperm.slane %v4664, 5
    %v5556 = vlaneseq
    %v5557 = vshrl.u32 %v5556, 7
    %5559 = vset.pattern.permute.xlu0 %v5557
    %5560 = vperm.xlu0 %5559, %v5555
    %v5561 = vpop.permute.xlu0 %5560
    %v5562 = vlaneseq
    %v5563 = vshrl.u32 %v5562, 7
    %v5564 = vadd.s32 %v5563, 8
    %5565 = vset.pattern.permute.xlu0 %v5564
    %5566 = vperm.xlu0 %5565, %v5555
    %v5567 = vpop.permute.xlu0 %5566
    %v5568 = vperm.slane %v4664, 6
    %v5569 = vlaneseq
    %v5570 = vshrl.u32 %v5569, 7
    %5572 = vset.pattern.permute.xlu0 %v5570
    %5573 = vperm.xlu0 %5572, %v5568
    %v5574 = vpop.permute.xlu0 %5573
    %v5575 = vlaneseq
    %v5576 = vshrl.u32 %v5575, 7
    %v5577 = vadd.s32 %v5576, 8
    %5578 = vset.pattern.permute.xlu0 %v5577
    %5579 = vperm.xlu0 %5578, %v5568
    %v5580 = vpop.permute.xlu0 %5579
    %v5581 = vperm.slane %v4664, 7
    %v5582 = vlaneseq
    %v5583 = vshrl.u32 %v5582, 7
    %5585 = vset.pattern.permute.xlu0 %v5583
    %5586 = vperm.xlu0 %5585, %v5581
    %v5587 = vpop.permute.xlu0 %5586
    %v5588 = vlaneseq
    %v5589 = vshrl.u32 %v5588, 7
    %v5590 = vadd.s32 %v5589, 8
    %5591 = vset.pattern.permute.xlu0 %v5590
    %5592 = vperm.xlu0 %5591, %v5581
    %v5593 = vpop.permute.xlu0 %5592
    %v5594 = vmul.f32 %v5354, %v5392
    %v5595 = vmul.f32 %v5355, %v5398
    %v5596 = vmul.f32 %v5356, %v5405
    %v5597 = vmul.f32 %v5357, %v5411
    %v5598 = vmul.f32 %v5358, %v5418
    %v5599 = vmul.f32 %v5359, %v5424
    %v5600 = vmul.f32 %v5360, %v5431
    %v5601 = vmul.f32 %v5361, %v5437
    %v5602 = vmul.f32 %v5362, %v5444
    %v5603 = vmul.f32 %v5363, %v5450
    %v5604 = vmul.f32 %v5364, %v5457
    %v5605 = vmul.f32 %v5365, %v5463
    %v5606 = vmul.f32 %v5366, %v5470
    %v5607 = vmul.f32 %v5367, %v5476
    %v5608 = vmul.f32 %v5368, %v5483
    %v5609 = vmul.f32 %v5369, %v5489
    %v5610 = vmul.f32 %v5370, %v5496
    %v5611 = vmul.f32 %v5371, %v5502
    %v5612 = vmul.f32 %v5372, %v5509
    %v5613 = vmul.f32 %v5373, %v5515
    %v5614 = vmul.f32 %v5374, %v5522
    %v5615 = vmul.f32 %v5375, %v5528
    %v5616 = vmul.f32 %v5376, %v5535
    %v5617 = vmul.f32 %v5377, %v5541
    %v5618 = vmul.f32 %v5378, %v5548
    %v5619 = vmul.f32 %v5379, %v5554
    %v5620 = vmul.f32 %v5380, %v5561
    %v5621 = vmul.f32 %v5381, %v5567
    %v5622 = vmul.f32 %v5382, %v5574
    %v5623 = vmul.f32 %v5383, %v5580
    %v5624 = vmul.f32 %v5384, %v5587
    %v5625 = vmul.f32 %v5385, %v5593
    %v5626 = vsel %vm166, %v5594, 0.0
    %v5627 = vsel %vm166, %v5595, 0.0
    %v5628 = vadd.f32 %v5626, %v5627
    %v5629 = vrot.slane %v5628, 4
    %v5630 = vadd.f32 %v5628, %v5629
    %v5631 = vrot.slane %v5630, 2
    %v5632 = vadd.f32 %v5630, %v5631
    %v5633 = vrot.slane %v5632, 1
    %v5634 = vadd.f32 %v5632, %v5633
    %v5635 = vsel %vm166, %v5596, 0.0
    %v5636 = vsel %vm166, %v5597, 0.0
    %v5637 = vadd.f32 %v5635, %v5636
    %v5638 = vrot.slane %v5637, 4
    %v5639 = vadd.f32 %v5637, %v5638
    %v5640 = vrot.slane %v5639, 2
    %v5641 = vadd.f32 %v5639, %v5640
    %v5642 = vrot.slane %v5641, 1
    %v5643 = vadd.f32 %v5641, %v5642
    %v5644 = vsel %vm166, %v5598, 0.0
    %v5645 = vsel %vm166, %v5599, 0.0
    %v5646 = vadd.f32 %v5644, %v5645
    %v5647 = vrot.slane %v5646, 4
    %v5648 = vadd.f32 %v5646, %v5647
    %v5649 = vrot.slane %v5648, 2
    %v5650 = vadd.f32 %v5648, %v5649
    %v5651 = vrot.slane %v5650, 1
    %v5652 = vadd.f32 %v5650, %v5651
    %v5653 = vsel %vm166, %v5600, 0.0
    %v5654 = vsel %vm166, %v5601, 0.0
    %v5655 = vadd.f32 %v5653, %v5654
    %v5656 = vrot.slane %v5655, 4
    %v5657 = vadd.f32 %v5655, %v5656
    %v5658 = vrot.slane %v5657, 2
    %v5659 = vadd.f32 %v5657, %v5658
    %v5660 = vrot.slane %v5659, 1
    %v5661 = vadd.f32 %v5659, %v5660
    %v5662 = vsel %vm166, %v5602, 0.0
    %v5663 = vsel %vm166, %v5603, 0.0
    %v5664 = vadd.f32 %v5662, %v5663
    %v5665 = vrot.slane %v5664, 4
    %v5666 = vadd.f32 %v5664, %v5665
    %v5667 = vrot.slane %v5666, 2
    %v5668 = vadd.f32 %v5666, %v5667
    %v5669 = vrot.slane %v5668, 1
    %v5670 = vadd.f32 %v5668, %v5669
    %v5671 = vsel %vm166, %v5604, 0.0
    %v5672 = vsel %vm166, %v5605, 0.0
    %v5673 = vadd.f32 %v5671, %v5672
    %v5674 = vrot.slane %v5673, 4
    %v5675 = vadd.f32 %v5673, %v5674
    %v5676 = vrot.slane %v5675, 2
    %v5677 = vadd.f32 %v5675, %v5676
    %v5678 = vrot.slane %v5677, 1
    %v5679 = vadd.f32 %v5677, %v5678
    %v5680 = vsel %vm166, %v5606, 0.0
    %v5681 = vsel %vm166, %v5607, 0.0
    %v5682 = vadd.f32 %v5680, %v5681
    %v5683 = vrot.slane %v5682, 4
    %v5684 = vadd.f32 %v5682, %v5683
    %v5685 = vrot.slane %v5684, 2
    %v5686 = vadd.f32 %v5684, %v5685
    %v5687 = vrot.slane %v5686, 1
    %v5688 = vadd.f32 %v5686, %v5687
    %v5689 = vsel %vm166, %v5608, 0.0
    %v5690 = vsel %vm166, %v5609, 0.0
    %v5691 = vadd.f32 %v5689, %v5690
    %v5692 = vrot.slane %v5691, 4
    %v5693 = vadd.f32 %v5691, %v5692
    %v5694 = vrot.slane %v5693, 2
    %v5695 = vadd.f32 %v5693, %v5694
    %v5696 = vrot.slane %v5695, 1
    %v5697 = vadd.f32 %v5695, %v5696
    %v5698 = vsel %vm166, %v5610, 0.0
    %v5699 = vsel %vm166, %v5611, 0.0
    %v5700 = vadd.f32 %v5698, %v5699
    %v5701 = vrot.slane %v5700, 4
    %v5702 = vadd.f32 %v5700, %v5701
    %v5703 = vrot.slane %v5702, 2
    %v5704 = vadd.f32 %v5702, %v5703
    %v5705 = vrot.slane %v5704, 1
    %v5706 = vadd.f32 %v5704, %v5705
    %v5707 = vsel %vm166, %v5612, 0.0
    %v5708 = vsel %vm166, %v5613, 0.0
    %v5709 = vadd.f32 %v5707, %v5708
    %v5710 = vrot.slane %v5709, 4
    %v5711 = vadd.f32 %v5709, %v5710
    %v5712 = vrot.slane %v5711, 2
    %v5713 = vadd.f32 %v5711, %v5712
    %v5714 = vrot.slane %v5713, 1
    %v5715 = vadd.f32 %v5713, %v5714
    %v5716 = vsel %vm166, %v5614, 0.0
    %v5717 = vsel %vm166, %v5615, 0.0
    %v5718 = vadd.f32 %v5716, %v5717
    %v5719 = vrot.slane %v5718, 4
    %v5720 = vadd.f32 %v5718, %v5719
    %v5721 = vrot.slane %v5720, 2
    %v5722 = vadd.f32 %v5720, %v5721
    %v5723 = vrot.slane %v5722, 1
    %v5724 = vadd.f32 %v5722, %v5723
    %v5725 = vsel %vm166, %v5616, 0.0
    %v5726 = vsel %vm166, %v5617, 0.0
    %v5727 = vadd.f32 %v5725, %v5726
    %v5728 = vrot.slane %v5727, 4
    %v5729 = vadd.f32 %v5727, %v5728
    %v5730 = vrot.slane %v5729, 2
    %v5731 = vadd.f32 %v5729, %v5730
    %v5732 = vrot.slane %v5731, 1
    %v5733 = vadd.f32 %v5731, %v5732
    %v5734 = vsel %vm166, %v5618, 0.0
    %v5735 = vsel %vm166, %v5619, 0.0
    %v5736 = vadd.f32 %v5734, %v5735
    %v5737 = vrot.slane %v5736, 4
    %v5738 = vadd.f32 %v5736, %v5737
    %v5739 = vrot.slane %v5738, 2
    %v5740 = vadd.f32 %v5738, %v5739
    %v5741 = vrot.slane %v5740, 1
    %v5742 = vadd.f32 %v5740, %v5741
    %v5743 = vsel %vm166, %v5620, 0.0
    %v5744 = vsel %vm166, %v5621, 0.0
    %v5745 = vadd.f32 %v5743, %v5744
    %v5746 = vrot.slane %v5745, 4
    %v5747 = vadd.f32 %v5745, %v5746
    %v5748 = vrot.slane %v5747, 2
    %v5749 = vadd.f32 %v5747, %v5748
    %v5750 = vrot.slane %v5749, 1
    %v5751 = vadd.f32 %v5749, %v5750
    %v5752 = vsel %vm166, %v5622, 0.0
    %v5753 = vsel %vm166, %v5623, 0.0
    %v5754 = vadd.f32 %v5752, %v5753
    %v5755 = vrot.slane %v5754, 4
    %v5756 = vadd.f32 %v5754, %v5755
    %v5757 = vrot.slane %v5756, 2
    %v5758 = vadd.f32 %v5756, %v5757
    %v5759 = vrot.slane %v5758, 1
    %v5760 = vadd.f32 %v5758, %v5759
    %v5761 = vsel %vm166, %v5624, 0.0
    %v5762 = vsel %vm166, %v5625, 0.0
    %v5763 = vadd.f32 %v5761, %v5762
    %v5764 = vrot.slane %v5763, 4
    %v5765 = vadd.f32 %v5763, %v5764
    %v5766 = vrot.slane %v5765, 2
    %v5767 = vadd.f32 %v5765, %v5766
    %v5768 = vrot.slane %v5767, 1
    %v5769 = vadd.f32 %v5767, %v5768
    %v5770 = vstv %s39
    %v5771 = vmul.f32 %v5770, %v5634
    %v5772 = vmul.f32 %v5770, %v5643
    %v5773 = vmul.f32 %v5770, %v5652
    %v5774 = vmul.f32 %v5770, %v5661
    %v5775 = vmul.f32 %v5770, %v5670
    %v5776 = vmul.f32 %v5770, %v5679
    %v5777 = vmul.f32 %v5770, %v5688
    %v5778 = vmul.f32 %v5770, %v5697
    %v5779 = vmul.f32 %v5770, %v5706
    %v5780 = vmul.f32 %v5770, %v5715
    %v5781 = vmul.f32 %v5770, %v5724
    %v5782 = vmul.f32 %v5770, %v5733
    %v5783 = vmul.f32 %v5770, %v5742
    %v5784 = vmul.f32 %v5770, %v5751
    %v5785 = vmul.f32 %v5770, %v5760
    %v5786 = vmul.f32 %v5770, %v5769
    %v5789 = vrot.slane %v4510, 1
    %v5790 = vrot.slane %v4510, 2
    %v5791 = vrot.slane %v4510, 3
    %v5792 = vrot.slane %v4510, 4
    %v5793 = vrot.slane %v4510, 5
    %v5794 = vrot.slane %v4510, 6
    %v5795 = vrot.slane %v4510, 7
    %v5796 = vrot.slane %v4511, 1
    %v5797 = vrot.slane %v4511, 2
    %v5798 = vrot.slane %v4511, 3
    %v5799 = vrot.slane %v4511, 4
    %v5800 = vrot.slane %v4511, 5
    %v5801 = vrot.slane %v4511, 6
    %v5802 = vrot.slane %v4511, 7
    %v5819 = vadd.f32 %v5771, %v4510
    %v5820 = vadd.f32 %v5772, %v5789
    %v5821 = vadd.f32 %v5773, %v5790
    %v5822 = vadd.f32 %v5774, %v5791
    %v5823 = vadd.f32 %v5775, %v5792
    %v5824 = vadd.f32 %v5776, %v5793
    %v5825 = vadd.f32 %v5777, %v5794
    %v5826 = vadd.f32 %v5778, %v5795
    %v5827 = vadd.f32 %v5779, %v4511
    %v5828 = vadd.f32 %v5780, %v5796
    %v5829 = vadd.f32 %v5781, %v5797
    %v5830 = vadd.f32 %v5782, %v5798
    %v5831 = vadd.f32 %v5783, %v5799
    %v5832 = vadd.f32 %v5784, %v5800
    %v5833 = vadd.f32 %v5785, %v5801
    %v5834 = vadd.f32 %v5786, %v5802
    %v5851 = vrot.slane %v5820, 7
    %vm5852 = vcmask 1041409
    %v5853 = vsel %vm5852, %v5851, %v5819
    %v5854 = vrot.slane %v5821, 6
    %vm5855 = vcmask 1042434
    %v5856 = vsel %vm5855, %v5854, %v5853
    %v5857 = vrot.slane %v5822, 5
    %vm5858 = vcmask 1043459
    %v5859 = vsel %vm5858, %v5857, %v5856
    %v5860 = vrot.slane %v5823, 4
    %vm5861 = vcmask 1044484
    %v5862 = vsel %vm5861, %v5860, %v5859
    %v5863 = vrot.slane %v5824, 3
    %vm5864 = vcmask 1045509
    %v5865 = vsel %vm5864, %v5863, %v5862
    %v5866 = vrot.slane %v5825, 2
    %vm5867 = vcmask 1046534
    %v5868 = vsel %vm5867, %v5866, %v5865
    %v5869 = vrot.slane %v5826, 1
    %vm5870 = vcmask 1047559
    %v5871 = vsel %vm5870, %v5869, %v5868
    %v5872 = vrot.slane %v5828, 7
    %v5873 = vsel %vm5852, %v5872, %v5827
    %v5874 = vrot.slane %v5829, 6
    %v5875 = vsel %vm5855, %v5874, %v5873
    %v5876 = vrot.slane %v5830, 5
    %v5877 = vsel %vm5858, %v5876, %v5875
    %v5878 = vrot.slane %v5831, 4
    %v5879 = vsel %vm5861, %v5878, %v5877
    %v5880 = vrot.slane %v5832, 3
    %v5881 = vsel %vm5864, %v5880, %v5879
    %v5882 = vrot.slane %v5833, 2
    %v5883 = vsel %vm5867, %v5882, %v5881
    %v5884 = vrot.slane %v5834, 1
    %v5885 = vsel %vm5870, %v5884, %v5883
    %v5888 = vadd.f32 %v367, %v5871
    %v5889 = vadd.f32 %v368, %v5885
    %v5890 = vpack.c.bf16 %v5889, %v5888
    %v5891 = vld [vmem:[#allocation2 + $0x24] sm:$0xf]
    %v5892 = vld [vmem:[#allocation2 + $0x4c] sm:$0xf]
    %v5893 = vld [vmem:[#allocation2 + $0x74] sm:$0xf]
    %v5894 = vld [vmem:[#allocation2 + $0x9c] sm:$0xf]
    %v5895 = vld [vmem:[#allocation2 + $0xc4] sm:$0xf]
    %v5896 = vld [vmem:[#allocation2 + $0xec] sm:$0xf]
    %v5897 = vld [vmem:[#allocation2 + $0x114] sm:$0xf]
    %v5898 = vld [vmem:[#allocation2 + $0x13c] sm:$0xf]
    %v5899 = vld [vmem:[%s3 + $0x3b] sm:$0x1]
    %v5901 = vperm.slane %v5899, 0
    %v5911 = vunpack.c.l.b16 %v5891
    %v5912 = vunpack.c.l.b16 %v5892
    %v5913 = vunpack.c.l.b16 %v5893
    %v5914 = vunpack.c.l.b16 %v5894
    %v5915 = vunpack.c.l.b16 %v5895
    %v5916 = vunpack.c.l.b16 %v5896
    %v5917 = vunpack.c.l.b16 %v5897
    %v5918 = vunpack.c.l.b16 %v5898
    %v5919 = vpack.c.b16 %v5912, %v5911
    %v5920 = vpack.c.b16 %v5914, %v5913
    %v5921 = vpack.c.b16 %v5916, %v5915
    %v5922 = vpack.c.b16 %v5918, %v5917
    %v5928 = vsel %vm166, %v5890, 0
    %5930 = vmatpush.bf16.msra.mxu0 0
    %5931 = vmatpush.bf16.msra.mxu0 0
    %5932 = vmatpush.bf16.msra.mxu0 0
    %5933 = vmatpush.bf16.msra.mxu0 0
    %5934 = vmatpush.bf16.msra.mxu0 %v5922
    %5935 = vmatpush.bf16.msra.mxu0 %v5921
    %5936 = vmatpush.bf16.msra.mxu0 %v5920
    %5937 = vmatpush.bf16.msra.mxu0 %v5919
    %5938 = vmatmul.bf16.gmra.mxu0 %v5928
    %v5939 = vpop.f32.mrf.mxu0
    %v5940 = vadd.f32 %v5901, %v5939
    %v5941 = vpop.f32.mrf.mxu0
    %v5942 = vadd.f32 %v5901, %v5941
    %5943 = vdwg.mxu0
    %5944 = vst.msk [vmem:[%s10] sm:$0xff] %vm263, %v5940
    %5945 = vst.msk [vmem:[%s10 + $0x8] sm:$0xff] %vm263, %v5942
    // Predicated region
    $region61: #{generator_forward.1} parent=1 // pred_check
      _
    $region62: #{generator_forward.1} parent=1 // pred_check_branch
      %5947 = sbr.rel (0) target = $region64
    $region63: #{generator_forward.1} parent=1 // pred_region
      _
    $region64: #{generator_forward.1} parent=1 // pred_fallthru
      _
    // Predicated region
    $region65: #{generator_forward.1} parent=1 // pred_check
      _
    $region66: #{generator_forward.1} parent=1 // pred_check_branch
      %5949 = sbr.rel (0) target = $region68
    $region67: #{generator_forward.1} parent=1 // pred_region
      _
    $region68: #{generator_forward.1} parent=1 // pred_fallthru
      _
    %5950 = vsyncpa [#allocation9], 1
  %5951 = vsyncmov [#allocation7]
  %s5952 = vpop.sfrf %5951
  %p5953 = scmp.eq.s32.totalorder %s5952, 0
  %p5954 = pneg %p5953
  %5956 = shalt.err (%p5954)
  %s5957 = scalar_lea.sflag [#allocation7], 1
  %5958 = vsyncmov %s5957
  %s5959 = vpop.sfrf %5958
  %p5960 = scmp.eq.s32.totalorder %s5959, 0
  %p5961 = pneg %p5960
  %5963 = shalt.err (%p5961)
  %s5964 = scalar_lea.sflag [#allocation7], 2
  %5965 = vsyncmov %s5964
  %s5966 = vpop.sfrf %5965
  %p5967 = scmp.eq.s32.totalorder %s5966, 0
  %p5968 = pneg %p5967
  %5970 = shalt.err (%p5968)
  %s5971 = scalar_lea.sflag [#allocation7], 3
  %5972 = vsyncmov %s5971
  %s5973 = vpop.sfrf %5972
  %p5974 = scmp.eq.s32.totalorder %s5973, 0
  %p5975 = pneg %p5974
  %5977 = shalt.err (%p5975)
  %s5978 = scalar_lea.sflag [#allocation7], 4
  %5979 = vsyncmov %s5978
  %s5980 = vpop.sfrf %5979
  %p5981 = scmp.eq.s32.totalorder %s5980, 0
  %p5982 = pneg %p5981
  %5984 = shalt.err (%p5982)

</llo_original>
